<compile_context>
chip_gen: v6e
topology: v6e:2x2x1
jax: 0.10.0
libtpu: 0.0.40
codegen_flags: <defaults>
</compile_context>

<pallas_src>
import functools
import math

import jax
import jax.numpy as jnp
from jax import lax
from jax.experimental import pallas as pl
from jax.experimental.pallas import tpu as pltpu

D_MODEL = 32
N_HEAD = 4
D_HEAD = D_MODEL // N_HEAD
D_FF = 64
N_LAYER = 2
EPS = 1e-5           # nn.LayerNorm default
NEG_INF = -1e9


# ---------------------------------------------------------------------------
# Packed parameter slab layouts (lane offsets shared by packer and kernel)
# ---------------------------------------------------------------------------
def _offsets(layout):
    out, off = {}, 0
    for name, width in layout:
        out[name] = (off, width)
        off += width
    return out, off


_WA_LAYOUT = (("sa_wqkv", 3 * D_MODEL), ("sa_wo", D_MODEL), ("ca_wq", D_MODEL),
              ("ca_wkv", 2 * D_MODEL), ("ca_wo", D_MODEL), ("w1", D_FF))
_BIAS_LAYOUT = (("sa_bqkv", 3 * D_MODEL), ("sa_bo", D_MODEL), ("ca_bq", D_MODEL),
                ("ca_bkv", 2 * D_MODEL), ("ca_bo", D_MODEL), ("b1", D_FF),
                ("b2", D_MODEL))
_WA_OFF, _WA_WIDTH = _offsets(_WA_LAYOUT)        # 320 lanes
_B_OFF, _B_WIDTH = _offsets(_BIAS_LAYOUT)        # 352 lanes


def _wslice(wa, name):
    off, width = _WA_OFF[name]
    return wa[:, off:off + width]


def _bslice(bias, name):
    off, width = _B_OFF[name]
    return bias[:, off:off + width]


# ---------------------------------------------------------------------------
# Kernel helpers
# ---------------------------------------------------------------------------
def _layernorm(y, g, b):
    """Add&Norm with fused sum / sum-of-squares (one cross-lane reduce)."""
    rows = y.shape[0]
    cat = jnp.concatenate([y, y * y], axis=0)                     # (2*rows, D)
    s = jnp.sum(cat, axis=-1, keepdims=True) * (1.0 / D_MODEL)    # (2*rows, 1)
    mean = s[:rows]
    var = s[rows:] - mean * mean
    return (y - mean) * lax.rsqrt(var + EPS) * g + b


def _attention(q2d, k2d, v2d, mask2d):
    """Multi-head attention as two batched contractions (heads = batch dim).

    q2d: (Nq, D), k2d/v2d: (Nk, D), mask2d: (Nq, Nk) additive (block-diagonal
    across batch, so one contraction covers every batch element and head).
    Softmax scale is already folded into the Q projection weights.
    """
    qh = jnp.stack([q2d[:, h * D_HEAD:(h + 1) * D_HEAD] for h in range(N_HEAD)], axis=0)
    kh = jnp.stack([k2d[:, h * D_HEAD:(h + 1) * D_HEAD] for h in range(N_HEAD)], axis=0)
    vh = jnp.stack([v2d[:, h * D_HEAD:(h + 1) * D_HEAD] for h in range(N_HEAD)], axis=0)
    # scores: contract last dims of both (K transpose folded into the contraction)
    s = lax.dot_general(qh, kh, (((2,), (2,)), ((0,), (0,))),
                        preferred_element_type=jnp.float32)       # (H, Nq, Nk)
    s = s + mask2d[None, :, :]
    m = jnp.max(s, axis=-1, keepdims=True)
    p = jnp.exp(s - m)
    p = p / jnp.sum(p, axis=-1, keepdims=True)                    # exact softmax
    ctx = lax.dot_general(p, vh, (((2,), (1,)), ((0,), (0,))),
                          preferred_element_type=jnp.float32)     # (H, Nq, Dh)
    return jnp.concatenate([ctx[h] for h in range(N_HEAD)], axis=-1)   # (Nq, D)


# ---------------------------------------------------------------------------
# Fused decoder kernel (whole n_layer stack in one launch)
# ---------------------------------------------------------------------------
def _decoder_kernel(acts_ref, masks_ref, wa_ref, wb_ref, sm_ref, out_ref,
                    *, n_layer, bt, bs):
    acts = acts_ref[...]                       # (bt+bs, D)
    x = acts[0:bt]                             # target activations
    enc = acts[bt:bt + bs]                     # encoder output
    masks = masks_ref[...]                     # (2*bt, max(bt, bs))
    tmask = masks[0:bt, 0:bt]                  # block-diag self-attn mask
    smask = masks[bt:2 * bt, 0:bs]             # block-diag cross-attn mask

    for l in range(n_layer):                   # static unroll over layers
        wa = wa_ref[l]                         # (D_MODEL, 320) packed weights
        w2 = wb_ref[l]                         # (D_FF, D_MODEL)
        sm = sm_ref[l]                         # (8, 352) biases + LN params
        bias = sm[0:1, :]
        ln_g = sm[1:4, 0:D_MODEL]              # (3, D) layernorm gammas
        ln_b = sm[4:7, 0:D_MODEL]              # (3, D) layernorm betas

        # ---- masked self-attention (fused QKV; scale folded into Wq/bq) ----
        qkv = jnp.dot(x, _wslice(wa, "sa_wqkv"),
                      preferred_element_type=jnp.float32) + _bslice(bias, "sa_bqkv")
        ctx = _attention(qkv[:, 0:D_MODEL], qkv[:, D_MODEL:2 * D_MODEL],
                         qkv[:, 2 * D_MODEL:3 * D_MODEL], tmask)
        attn = jnp.dot(ctx, _wslice(wa, "sa_wo"),
                       preferred_element_type=jnp.float32) + _bslice(bias, "sa_bo")
        x = _layernorm(x + attn, ln_g[0:1], ln_b[0:1])

        # ---- cross-attention over encoder output (fused KV) ----
        q = jnp.dot(x, _wslice(wa, "ca_wq"),
                    preferred_element_type=jnp.float32) + _bslice(bias, "ca_bq")
        kv = jnp.dot(enc, _wslice(wa, "ca_wkv"),
                     preferred_element_type=jnp.float32) + _bslice(bias, "ca_bkv")
        ctx = _attention(q, kv[:, 0:D_MODEL], kv[:, D_MODEL:2 * D_MODEL], smask)
        attn = jnp.dot(ctx, _wslice(wa, "ca_wo"),
                       preferred_element_type=jnp.float32) + _bslice(bias, "ca_bo")
        x = _layernorm(x + attn, ln_g[1:2], ln_b[1:2])

        # ---- position-wise FFN ----
        h = jnp.dot(x, _wslice(wa, "w1"),
                    preferred_element_type=jnp.float32) + _bslice(bias, "b1")
        h = jnp.maximum(h, 0.0)
        h = jnp.dot(h, w2, preferred_element_type=jnp.float32) + _bslice(bias, "b2")
        x = _layernorm(x + h, ln_g[2:3], ln_b[2:3])

    out_ref[...] = x.astype(out_ref.dtype)


# ---------------------------------------------------------------------------
# Wrapper-side layout plumbing
# ---------------------------------------------------------------------------
def _pack_params(params):
    """Fold the softmax scale into the Q projections and pack the 16 per-layer
    tensors into three lane-dense slabs (cuts input DMAs from 20 to 3)."""
    scale = 1.0 / math.sqrt(D_HEAD)
    p = dict(params)
    p["sa_wqkv"] = p["sa_wqkv"].at[:, :, 0:D_MODEL].multiply(scale)
    p["sa_bqkv"] = p["sa_bqkv"].at[:, :, 0:D_MODEL].multiply(scale)
    p["ca_wq"] = p["ca_wq"] * scale
    p["ca_bq"] = p["ca_bq"] * scale

    wa = jnp.concatenate([p[name] for name, _ in _WA_LAYOUT], axis=-1)    # (L, 32, 320)
    wb = p["w2"]                                                           # (L, 64, 32)
    bias = jnp.concatenate([p[name] for name, _ in _BIAS_LAYOUT], axis=-1)  # (L, 1, 352)

    def _pad(a):
        return jnp.pad(a, ((0, 0), (0, 0), (0, _B_WIDTH - a.shape[-1])))

    n_layer = p["ln_g"].shape[0]
    sm = jnp.concatenate([bias, _pad(p["ln_g"]), _pad(p["ln_b"]),
                          jnp.zeros((n_layer, 1, _B_WIDTH), jnp.float32)], axis=1)  # (L, 8, 352)
    return wa, wb, sm


def _expand_mask(mask, nq, nk):
    """(B, Tq, Tk) additive mask -> (B*Tq, B*Tk) block-diagonal additive mask.
    Cross-batch entries get -1e9 so one softmax covers all batch elements."""
    B = mask.shape[0]
    big = jnp.full((B, nq, B, nk), NEG_INF, jnp.float32)
    idx = jnp.arange(B)
    big = big.at[idx, :, idx, :].set(mask.astype(jnp.float32))
    return big.reshape(B * nq, B * nk)


def _full_spec(arr):
    nd = arr.ndim
    return pl.BlockSpec(arr.shape, lambda i, _nd=nd: (0,) * _nd)


@jax.jit
def decoder(tgt, encoder_out, tgt_mask, src_tgt_mask, params):
    """Mirrors PyTorch Decoder.forward (sequential layer loop), fully fused."""
    B, T, D = tgt.shape
    S = encoder_out.shape[1]
    bt, bs = B * T, B * S

    acts = jnp.concatenate([tgt.reshape(bt, D), encoder_out.reshape(bs, D)], axis=0)
    tmask = _expand_mask(tgt_mask, T, T)                # (bt, bt)
    smask = _expand_mask(src_tgt_mask, T, S)            # (bt, bs)
    kmax = max(bt, bs)
    masks = jnp.concatenate(
        [jnp.pad(tmask, ((0, 0), (0, kmax - bt))),
         jnp.pad(smask, ((0, 0), (0, kmax - bs)))], axis=0)   # (2*bt, kmax)

    wa, wb, sm = _pack_params(params)
    args = [acts, masks, wa, wb, sm]

    kernel = functools.partial(_decoder_kernel, n_layer=N_LAYER, bt=bt, bs=bs)
    out2 = pl.pallas_call(
        kernel,
        out_shape=jax.ShapeDtypeStruct((bt, D), tgt.dtype),
        grid=(1,),
        in_specs=[_full_spec(a) for a in args],
        out_specs=pl.BlockSpec((bt, D), lambda i: (0, 0)),
        compiler_params=pltpu.CompilerParams(
            dimension_semantics=("arbitrary",)),
    )(*args)
    return out2.reshape(B, T, D)


# ---------------------------------------------------------------------------
# Deterministic parameter init (synthetic; no checkpoint)
# ---------------------------------------------------------------------------
def init_layer_params(key):
    ks = jax.random.split(key, 10)

    def w(k, din, dout):
        return (0.02 * jax.random.normal(k, (din, dout))).astype(jnp.float32)

    zb = lambda n: jnp.zeros((1, n), jnp.float32)

    single = {
        "sa_wqkv": jnp.concatenate([w(ks[0], D_MODEL, D_MODEL),
                                    w(ks[1], D_MODEL, D_MODEL),
                                    w(ks[2], D_MODEL, D_MODEL)], axis=1),
        "sa_bqkv": zb(3 * D_MODEL),
        "sa_wo": w(ks[3], D_MODEL, D_MODEL), "sa_bo": zb(D_MODEL),
        "ca_wq": w(ks[4], D_MODEL, D_MODEL), "ca_bq": zb(D_MODEL),
        "ca_wkv": jnp.concatenate([w(ks[5], D_MODEL, D_MODEL),
                                   w(ks[6], D_MODEL, D_MODEL)], axis=1),
        "ca_bkv": zb(2 * D_MODEL),
        "ca_wo": w(ks[7], D_MODEL, D_MODEL), "ca_bo": zb(D_MODEL),
        "w1": w(ks[8], D_MODEL, D_FF), "b1": zb(D_FF),
        "w2": w(ks[9], D_FF, D_MODEL), "b2": zb(D_MODEL),
        "ln_g": jnp.ones((3, D_MODEL), jnp.float32),
        "ln_b": jnp.zeros((3, D_MODEL), jnp.float32),
    }
    # nn.Decoder deep-copies one layer -> identical initial weights per layer.
    return {name: jnp.stack([val] * N_LAYER, axis=0) for name, val in single.items()}


# ---------------------------------------------------------------------------
# Pure-JAX reference (mirrors the PyTorch decoder layer math) for a sanity check
# ---------------------------------------------------------------------------
def _reference(tgt, enc, tgt_mask, src_tgt_mask, params):
    hp = jax.lax.Precision.HIGHEST
    scale = 1.0 / math.sqrt(D_HEAD)

    def split_heads(a):
        b, n, _ = a.shape
        return a.reshape(b, n, N_HEAD, D_HEAD).transpose(0, 2, 1, 3)

    def attn(q, k, v, mask):
        qh, kh, vh = split_heads(q), split_heads(k), split_heads(v)
        s = jnp.einsum('bhqd,bhkd->bhqk', qh, kh, precision=hp) * scale
        s = s + mask[:, None, :, :]
        p = jax.nn.softmax(s, axis=-1)
        o = jnp.einsum('bhqk,bhkd->bhqd', p, vh, precision=hp)
        b, h, n, d = o.shape
        return o.transpose(0, 2, 1, 3).reshape(b, n, h * d)

    def ln(y, g, b):
        mean = y.mean(-1, keepdims=True)
        var = jnp.mean((y - mean) ** 2, -1, keepdims=True)
        return (y - mean) / jnp.sqrt(var + EPS) * g + b

    def lin(a, w, b):
        return jnp.einsum('bnd,df->bnf', a, w, precision=hp) + b[0]

    x = tgt
    for l in range(N_LAYER):
        qkv = lin(x, params["sa_wqkv"][l], params["sa_bqkv"][l])
        a = attn(qkv[..., :D_MODEL], qkv[..., D_MODEL:2 * D_MODEL],
                 qkv[..., 2 * D_MODEL:], tgt_mask)
        a = lin(a, params["sa_wo"][l], params["sa_bo"][l])
        x = ln(x + a, params["ln_g"][l, 0], params["ln_b"][l, 0])

        q = lin(x, params["ca_wq"][l], params["ca_bq"][l])
        kv = lin(enc, params["ca_wkv"][l], params["ca_bkv"][l])
        a = attn(q, kv[..., :D_MODEL], kv[..., D_MODEL:], src_tgt_mask)
        a = lin(a, params["ca_wo"][l], params["ca_bo"][l])
        x = ln(x + a, params["ln_g"][l, 1], params["ln_b"][l, 1])

        h = jnp.maximum(lin(x, params["w1"][l], params["b1"][l]), 0.0)
        h = lin(h, params["w2"][l], params["b2"][l])
        x = ln(x + h, params["ln_g"][l, 2], params["ln_b"][l, 2])
    return x


if __name__ == "__main__":
    key = jax.random.PRNGKey(0)
    k_tgt, k_enc, k_params = jax.random.split(key, 3)

    B, T, S = 2, 8, 8
    tgt = jax.random.normal(k_tgt, (B, T, D_MODEL), jnp.float32)
    encoder_out = jax.random.normal(k_enc, (B, S, D_MODEL), jnp.float32)

    # causal additive mask for self-attn; no masking for cross-attn
    causal = jnp.tril(jnp.ones((T, T), jnp.float32))
    tgt_mask = jnp.broadcast_to(jnp.where(causal > 0, 0.0, NEG_INF)[None],
                                (B, T, T)).astype(jnp.float32)
    src_tgt_mask = jnp.zeros((B, T, S), jnp.float32)

    params = init_layer_params(k_params)

    out = decoder(tgt, encoder_out, tgt_mask, src_tgt_mask, params)
    jax.block_until_ready(out)
    assert out.shape == (B, T, D_MODEL)

    ref = _reference(tgt, encoder_out, tgt_mask, src_tgt_mask, params)
    max_err = float(jnp.max(jnp.abs(out - ref)))
    assert max_err < 5e-2, f"max abs error vs reference: {max_err}"
    print("KERNEL_OK")
</pallas_src>

<mosaic_0001>
module attributes {stable_mosaic.version = 11 : i64} {
  func.func @_decoder_kernel(%arg0: i32, %arg1: memref<32x32xf32, #tpu.memory_space<vmem>>, %arg2: memref<32x16xf32, #tpu.memory_space<vmem>>, %arg3: memref<2x32x320xf32, #tpu.memory_space<vmem>>, %arg4: memref<2x64x32xf32, #tpu.memory_space<vmem>>, %arg5: memref<2x8x352xf32, #tpu.memory_space<vmem>>, %arg6: memref<16x32xf32, #tpu.memory_space<vmem>>) attributes {dimension_semantics = [#tpu.dimension_semantics<arbitrary>], iteration_bounds = array<i64: 1>, scalar_prefetch = 0 : i64, scratch_operands = 0 : i64, tpu.core_type = #tpu.core_type<tc>, window_params = [{pipeline_mode = #tpu.pipeline_mode<synchronous>, transform_indices = @transform_0, window_bounds = array<i64: 32, 32>}, {pipeline_mode = #tpu.pipeline_mode<synchronous>, transform_indices = @transform_1, window_bounds = array<i64: 32, 16>}, {pipeline_mode = #tpu.pipeline_mode<synchronous>, transform_indices = @transform_2, window_bounds = array<i64: 2, 32, 320>}, {pipeline_mode = #tpu.pipeline_mode<synchronous>, transform_indices = @transform_3, window_bounds = array<i64: 2, 64, 32>}, {pipeline_mode = #tpu.pipeline_mode<synchronous>, transform_indices = @transform_4, window_bounds = array<i64: 2, 8, 352>}, {pipeline_mode = #tpu.pipeline_mode<synchronous>, transform_indices = @transform_5, window_bounds = array<i64: 16, 32>}]} {
    %c0 = arith.constant 0 : index
    %c0_0 = arith.constant 0 : index
    %0 = vector.load %arg1[%c0, %c0_0] : memref<32x32xf32, #tpu.memory_space<vmem>>, vector<32x32xf32>
    %1 = vector.extract_strided_slice %0 {offsets = [0, 0], sizes = [16, 32], strides = [1, 1]} : vector<32x32xf32> to vector<16x32xf32>
    %2 = vector.extract_strided_slice %0 {offsets = [16, 0], sizes = [16, 32], strides = [1, 1]} : vector<32x32xf32> to vector<16x32xf32>
    %c0_1 = arith.constant 0 : index
    %c0_2 = arith.constant 0 : index
    %3 = vector.load %arg2[%c0_1, %c0_2] : memref<32x16xf32, #tpu.memory_space<vmem>>, vector<32x16xf32>
    %4 = vector.extract_strided_slice %3 {offsets = [0, 0], sizes = [16, 16], strides = [1, 1]} : vector<32x16xf32> to vector<16x16xf32>
    %5 = vector.extract_strided_slice %3 {offsets = [16, 0], sizes = [16, 16], strides = [1, 1]} : vector<32x16xf32> to vector<16x16xf32>
    %c0_3 = arith.constant 0 : index
    %c0_4 = arith.constant 0 : index
    %c0_5 = arith.constant 0 : index
    %6 = vector.load %arg3[%c0_3, %c0_4, %c0_5] : memref<2x32x320xf32, #tpu.memory_space<vmem>>, vector<1x32x320xf32>
    %7 = vector.shape_cast %6 : vector<1x32x320xf32> to vector<32x320xf32>
    %c0_6 = arith.constant 0 : index
    %c0_7 = arith.constant 0 : index
    %c0_8 = arith.constant 0 : index
    %8 = vector.load %arg4[%c0_6, %c0_7, %c0_8] : memref<2x64x32xf32, #tpu.memory_space<vmem>>, vector<1x64x32xf32>
    %9 = vector.shape_cast %8 : vector<1x64x32xf32> to vector<64x32xf32>
    %c0_9 = arith.constant 0 : index
    %c0_10 = arith.constant 0 : index
    %c0_11 = arith.constant 0 : index
    %10 = vector.load %arg5[%c0_9, %c0_10, %c0_11] : memref<2x8x352xf32, #tpu.memory_space<vmem>>, vector<1x8x352xf32>
    %11 = vector.shape_cast %10 : vector<1x8x352xf32> to vector<8x352xf32>
    %12 = vector.extract_strided_slice %11 {offsets = [0, 0], sizes = [1, 352], strides = [1, 1]} : vector<8x352xf32> to vector<1x352xf32>
    %13 = vector.extract_strided_slice %11 {offsets = [1, 0], sizes = [3, 32], strides = [1, 1]} : vector<8x352xf32> to vector<3x32xf32>
    %14 = vector.extract_strided_slice %11 {offsets = [4, 0], sizes = [3, 32], strides = [1, 1]} : vector<8x352xf32> to vector<3x32xf32>
    %15 = vector.extract_strided_slice %7 {offsets = [0, 0], sizes = [32, 96], strides = [1, 1]} : vector<32x320xf32> to vector<32x96xf32>
    %cst = arith.constant dense<0.000000e+00> : vector<16x96xf32>
    %16 = tpu.matmul %1, %15, %cst {dimension_numbers = #tpu.dot_dimension_numbers<[1], [0], [0], [1], [0, 0, 1, 1], [], []>} : vector<16x32xf32>, vector<32x96xf32>, vector<16x96xf32> -> vector<16x96xf32>
    %17 = vector.extract_strided_slice %12 {offsets = [0, 0], sizes = [1, 96], strides = [1, 1]} : vector<1x352xf32> to vector<1x96xf32>
    %18 = vector.broadcast %17 : vector<1x96xf32> to vector<16x96xf32>
    %19 = arith.addf %16, %18 : vector<16x96xf32>
    %20 = vector.extract_strided_slice %19 {offsets = [0, 0], sizes = [16, 32], strides = [1, 1]} : vector<16x96xf32> to vector<16x32xf32>
    %21 = vector.extract_strided_slice %19 {offsets = [0, 32], sizes = [16, 32], strides = [1, 1]} : vector<16x96xf32> to vector<16x32xf32>
    %22 = vector.extract_strided_slice %19 {offsets = [0, 64], sizes = [16, 32], strides = [1, 1]} : vector<16x96xf32> to vector<16x32xf32>
    %23 = vector.extract_strided_slice %20 {offsets = [0, 0], sizes = [16, 8], strides = [1, 1]} : vector<16x32xf32> to vector<16x8xf32>
    %24 = vector.extract_strided_slice %20 {offsets = [0, 8], sizes = [16, 8], strides = [1, 1]} : vector<16x32xf32> to vector<16x8xf32>
    %25 = vector.extract_strided_slice %20 {offsets = [0, 16], sizes = [16, 8], strides = [1, 1]} : vector<16x32xf32> to vector<16x8xf32>
    %26 = vector.extract_strided_slice %20 {offsets = [0, 24], sizes = [16, 8], strides = [1, 1]} : vector<16x32xf32> to vector<16x8xf32>
    %27 = vector.shape_cast %23 : vector<16x8xf32> to vector<1x16x8xf32>
    %28 = vector.shape_cast %24 : vector<16x8xf32> to vector<1x16x8xf32>
    %29 = vector.shape_cast %25 : vector<16x8xf32> to vector<1x16x8xf32>
    %30 = vector.shape_cast %26 : vector<16x8xf32> to vector<1x16x8xf32>
    %31 = tpu.concatenate %27, %28, %29, %30 in 0 : vector<1x16x8xf32>, vector<1x16x8xf32>, vector<1x16x8xf32>, vector<1x16x8xf32> -> vector<4x16x8xf32>
    %32 = vector.extract_strided_slice %21 {offsets = [0, 0], sizes = [16, 8], strides = [1, 1]} : vector<16x32xf32> to vector<16x8xf32>
    %33 = vector.extract_strided_slice %21 {offsets = [0, 8], sizes = [16, 8], strides = [1, 1]} : vector<16x32xf32> to vector<16x8xf32>
    %34 = vector.extract_strided_slice %21 {offsets = [0, 16], sizes = [16, 8], strides = [1, 1]} : vector<16x32xf32> to vector<16x8xf32>
    %35 = vector.extract_strided_slice %21 {offsets = [0, 24], sizes = [16, 8], strides = [1, 1]} : vector<16x32xf32> to vector<16x8xf32>
    %36 = vector.shape_cast %32 : vector<16x8xf32> to vector<1x16x8xf32>
    %37 = vector.shape_cast %33 : vector<16x8xf32> to vector<1x16x8xf32>
    %38 = vector.shape_cast %34 : vector<16x8xf32> to vector<1x16x8xf32>
    %39 = vector.shape_cast %35 : vector<16x8xf32> to vector<1x16x8xf32>
    %40 = tpu.concatenate %36, %37, %38, %39 in 0 : vector<1x16x8xf32>, vector<1x16x8xf32>, vector<1x16x8xf32>, vector<1x16x8xf32> -> vector<4x16x8xf32>
    %41 = vector.extract_strided_slice %22 {offsets = [0, 0], sizes = [16, 8], strides = [1, 1]} : vector<16x32xf32> to vector<16x8xf32>
    %42 = vector.extract_strided_slice %22 {offsets = [0, 8], sizes = [16, 8], strides = [1, 1]} : vector<16x32xf32> to vector<16x8xf32>
    %43 = vector.extract_strided_slice %22 {offsets = [0, 16], sizes = [16, 8], strides = [1, 1]} : vector<16x32xf32> to vector<16x8xf32>
    %44 = vector.extract_strided_slice %22 {offsets = [0, 24], sizes = [16, 8], strides = [1, 1]} : vector<16x32xf32> to vector<16x8xf32>
    %45 = vector.shape_cast %41 : vector<16x8xf32> to vector<1x16x8xf32>
    %46 = vector.shape_cast %42 : vector<16x8xf32> to vector<1x16x8xf32>
    %47 = vector.shape_cast %43 : vector<16x8xf32> to vector<1x16x8xf32>
    %48 = vector.shape_cast %44 : vector<16x8xf32> to vector<1x16x8xf32>
    %49 = tpu.concatenate %45, %46, %47, %48 in 0 : vector<1x16x8xf32>, vector<1x16x8xf32>, vector<1x16x8xf32>, vector<1x16x8xf32> -> vector<4x16x8xf32>
    %cst_12 = arith.constant dense<0.000000e+00> : vector<4x16x16xf32>
    %50 = tpu.matmul %31, %40, %cst_12 {dimension_numbers = #tpu.dot_dimension_numbers<[2], [2], [1], [1], [0, 0, 0, 1, 1, 1], [0], [0]>} : vector<4x16x8xf32>, vector<4x16x8xf32>, vector<4x16x16xf32> -> vector<4x16x16xf32>
    %51 = vector.shape_cast %4 : vector<16x16xf32> to vector<1x16x16xf32>
    %52 = vector.broadcast %51 : vector<1x16x16xf32> to vector<4x16x16xf32>
    %53 = arith.addf %50, %52 : vector<4x16x16xf32>
    %cst_13 = arith.constant dense<0xFF800000> : vector<4x16xf32>
    %54 = vector.multi_reduction <maximumf>, %53, %cst_13 [2] : vector<4x16x16xf32> to vector<4x16xf32>
    %55 = vector.shape_cast %54 : vector<4x16xf32> to vector<4x16x1xf32>
    %56 = vector.broadcast %55 : vector<4x16x1xf32> to vector<4x16x16xf32>
    %57 = arith.subf %53, %56 : vector<4x16x16xf32>
    %58 = math.exp %57 : vector<4x16x16xf32>
    %cst_14 = arith.constant dense<0.000000e+00> : vector<4x16xf32>
    %59 = vector.multi_reduction <add>, %58, %cst_14 [2] : vector<4x16x16xf32> to vector<4x16xf32>
    %60 = vector.shape_cast %59 : vector<4x16xf32> to vector<4x16x1xf32>
    %61 = vector.broadcast %60 : vector<4x16x1xf32> to vector<4x16x16xf32>
    %62 = arith.divf %58, %61 : vector<4x16x16xf32>
    %cst_15 = arith.constant dense<0.000000e+00> : vector<4x16x8xf32>
    %63 = tpu.matmul %62, %49, %cst_15 {dimension_numbers = #tpu.dot_dimension_numbers<[2], [1], [1], [2], [0, 0, 0, 1, 1, 2], [0], [0]>} : vector<4x16x16xf32>, vector<4x16x8xf32>, vector<4x16x8xf32> -> vector<4x16x8xf32>
    %64 = vector.extract_strided_slice %63 {offsets = [0, 0, 0], sizes = [1, 16, 8], strides = [1, 1, 1]} : vector<4x16x8xf32> to vector<1x16x8xf32>
    %65 = vector.shape_cast %64 : vector<1x16x8xf32> to vector<16x8xf32>
    %66 = vector.extract_strided_slice %63 {offsets = [1, 0, 0], sizes = [1, 16, 8], strides = [1, 1, 1]} : vector<4x16x8xf32> to vector<1x16x8xf32>
    %67 = vector.shape_cast %66 : vector<1x16x8xf32> to vector<16x8xf32>
    %68 = vector.extract_strided_slice %63 {offsets = [2, 0, 0], sizes = [1, 16, 8], strides = [1, 1, 1]} : vector<4x16x8xf32> to vector<1x16x8xf32>
    %69 = vector.shape_cast %68 : vector<1x16x8xf32> to vector<16x8xf32>
    %70 = vector.extract_strided_slice %63 {offsets = [3, 0, 0], sizes = [1, 16, 8], strides = [1, 1, 1]} : vector<4x16x8xf32> to vector<1x16x8xf32>
    %71 = vector.shape_cast %70 : vector<1x16x8xf32> to vector<16x8xf32>
    %72 = tpu.concatenate %65, %67, %69, %71 in 1 : vector<16x8xf32>, vector<16x8xf32>, vector<16x8xf32>, vector<16x8xf32> -> vector<16x32xf32>
    %73 = vector.extract_strided_slice %7 {offsets = [0, 96], sizes = [32, 32], strides = [1, 1]} : vector<32x320xf32> to vector<32x32xf32>
    %cst_16 = arith.constant dense<0.000000e+00> : vector<16x32xf32>
    %74 = tpu.matmul %72, %73, %cst_16 {dimension_numbers = #tpu.dot_dimension_numbers<[1], [0], [0], [1], [0, 0, 1, 1], [], []>} : vector<16x32xf32>, vector<32x32xf32>, vector<16x32xf32> -> vector<16x32xf32>
    %75 = vector.extract_strided_slice %12 {offsets = [0, 96], sizes = [1, 32], strides = [1, 1]} : vector<1x352xf32> to vector<1x32xf32>
    %76 = vector.broadcast %75 : vector<1x32xf32> to vector<16x32xf32>
    %77 = arith.addf %74, %76 : vector<16x32xf32>
    %78 = arith.addf %1, %77 : vector<16x32xf32>
    %79 = vector.extract_strided_slice %13 {offsets = [0, 0], sizes = [1, 32], strides = [1, 1]} : vector<3x32xf32> to vector<1x32xf32>
    %80 = vector.extract_strided_slice %14 {offsets = [0, 0], sizes = [1, 32], strides = [1, 1]} : vector<3x32xf32> to vector<1x32xf32>
    %81 = arith.mulf %78, %78 : vector<16x32xf32>
    %82 = tpu.concatenate %78, %81 in 0 : vector<16x32xf32>, vector<16x32xf32> -> vector<32x32xf32>
    %cst_17 = arith.constant dense<0.000000e+00> : vector<32xf32>
    %83 = vector.multi_reduction <add>, %82, %cst_17 [1] : vector<32x32xf32> to vector<32xf32>
    %84 = vector.shape_cast %83 : vector<32xf32> to vector<32x1xf32>
    %cst_18 = arith.constant 3.125000e-02 : f32
    %85 = vector.broadcast %cst_18 : f32 to vector<32x1xf32>
    %86 = arith.mulf %84, %85 : vector<32x1xf32>
    %87 = vector.extract_strided_slice %86 {offsets = [0, 0], sizes = [16, 1], strides = [1, 1]} : vector<32x1xf32> to vector<16x1xf32>
    %88 = vector.extract_strided_slice %86 {offsets = [16, 0], sizes = [16, 1], strides = [1, 1]} : vector<32x1xf32> to vector<16x1xf32>
    %89 = arith.mulf %87, %87 : vector<16x1xf32>
    %90 = arith.subf %88, %89 : vector<16x1xf32>
    %91 = vector.broadcast %87 : vector<16x1xf32> to vector<16x32xf32>
    %92 = arith.subf %78, %91 : vector<16x32xf32>
    %cst_19 = arith.constant 9.99999974E-6 : f32
    %93 = vector.broadcast %cst_19 : f32 to vector<16x1xf32>
    %94 = arith.addf %90, %93 : vector<16x1xf32>
    %95 = math.rsqrt %94 : vector<16x1xf32>
    %96 = vector.broadcast %95 : vector<16x1xf32> to vector<16x32xf32>
    %97 = arith.mulf %92, %96 : vector<16x32xf32>
    %98 = vector.broadcast %79 : vector<1x32xf32> to vector<16x32xf32>
    %99 = arith.mulf %97, %98 : vector<16x32xf32>
    %100 = vector.broadcast %80 : vector<1x32xf32> to vector<16x32xf32>
    %101 = arith.addf %99, %100 : vector<16x32xf32>
    %102 = vector.extract_strided_slice %7 {offsets = [0, 128], sizes = [32, 32], strides = [1, 1]} : vector<32x320xf32> to vector<32x32xf32>
    %cst_20 = arith.constant dense<0.000000e+00> : vector<16x32xf32>
    %103 = tpu.matmul %101, %102, %cst_20 {dimension_numbers = #tpu.dot_dimension_numbers<[1], [0], [0], [1], [0, 0, 1, 1], [], []>} : vector<16x32xf32>, vector<32x32xf32>, vector<16x32xf32> -> vector<16x32xf32>
    %104 = vector.extract_strided_slice %12 {offsets = [0, 128], sizes = [1, 32], strides = [1, 1]} : vector<1x352xf32> to vector<1x32xf32>
    %105 = vector.broadcast %104 : vector<1x32xf32> to vector<16x32xf32>
    %106 = arith.addf %103, %105 : vector<16x32xf32>
    %107 = vector.extract_strided_slice %7 {offsets = [0, 160], sizes = [32, 64], strides = [1, 1]} : vector<32x320xf32> to vector<32x64xf32>
    %cst_21 = arith.constant dense<0.000000e+00> : vector<16x64xf32>
    %108 = tpu.matmul %2, %107, %cst_21 {dimension_numbers = #tpu.dot_dimension_numbers<[1], [0], [0], [1], [0, 0, 1, 1], [], []>} : vector<16x32xf32>, vector<32x64xf32>, vector<16x64xf32> -> vector<16x64xf32>
    %109 = vector.extract_strided_slice %12 {offsets = [0, 160], sizes = [1, 64], strides = [1, 1]} : vector<1x352xf32> to vector<1x64xf32>
    %110 = vector.broadcast %109 : vector<1x64xf32> to vector<16x64xf32>
    %111 = arith.addf %108, %110 : vector<16x64xf32>
    %112 = vector.extract_strided_slice %111 {offsets = [0, 0], sizes = [16, 32], strides = [1, 1]} : vector<16x64xf32> to vector<16x32xf32>
    %113 = vector.extract_strided_slice %111 {offsets = [0, 32], sizes = [16, 32], strides = [1, 1]} : vector<16x64xf32> to vector<16x32xf32>
    %114 = vector.extract_strided_slice %106 {offsets = [0, 0], sizes = [16, 8], strides = [1, 1]} : vector<16x32xf32> to vector<16x8xf32>
    %115 = vector.extract_strided_slice %106 {offsets = [0, 8], sizes = [16, 8], strides = [1, 1]} : vector<16x32xf32> to vector<16x8xf32>
    %116 = vector.extract_strided_slice %106 {offsets = [0, 16], sizes = [16, 8], strides = [1, 1]} : vector<16x32xf32> to vector<16x8xf32>
    %117 = vector.extract_strided_slice %106 {offsets = [0, 24], sizes = [16, 8], strides = [1, 1]} : vector<16x32xf32> to vector<16x8xf32>
    %118 = vector.shape_cast %114 : vector<16x8xf32> to vector<1x16x8xf32>
    %119 = vector.shape_cast %115 : vector<16x8xf32> to vector<1x16x8xf32>
    %120 = vector.shape_cast %116 : vector<16x8xf32> to vector<1x16x8xf32>
    %121 = vector.shape_cast %117 : vector<16x8xf32> to vector<1x16x8xf32>
    %122 = tpu.concatenate %118, %119, %120, %121 in 0 : vector<1x16x8xf32>, vector<1x16x8xf32>, vector<1x16x8xf32>, vector<1x16x8xf32> -> vector<4x16x8xf32>
    %123 = vector.extract_strided_slice %112 {offsets = [0, 0], sizes = [16, 8], strides = [1, 1]} : vector<16x32xf32> to vector<16x8xf32>
    %124 = vector.extract_strided_slice %112 {offsets = [0, 8], sizes = [16, 8], strides = [1, 1]} : vector<16x32xf32> to vector<16x8xf32>
    %125 = vector.extract_strided_slice %112 {offsets = [0, 16], sizes = [16, 8], strides = [1, 1]} : vector<16x32xf32> to vector<16x8xf32>
    %126 = vector.extract_strided_slice %112 {offsets = [0, 24], sizes = [16, 8], strides = [1, 1]} : vector<16x32xf32> to vector<16x8xf32>
    %127 = vector.shape_cast %123 : vector<16x8xf32> to vector<1x16x8xf32>
    %128 = vector.shape_cast %124 : vector<16x8xf32> to vector<1x16x8xf32>
    %129 = vector.shape_cast %125 : vector<16x8xf32> to vector<1x16x8xf32>
    %130 = vector.shape_cast %126 : vector<16x8xf32> to vector<1x16x8xf32>
    %131 = tpu.concatenate %127, %128, %129, %130 in 0 : vector<1x16x8xf32>, vector<1x16x8xf32>, vector<1x16x8xf32>, vector<1x16x8xf32> -> vector<4x16x8xf32>
    %132 = vector.extract_strided_slice %113 {offsets = [0, 0], sizes = [16, 8], strides = [1, 1]} : vector<16x32xf32> to vector<16x8xf32>
    %133 = vector.extract_strided_slice %113 {offsets = [0, 8], sizes = [16, 8], strides = [1, 1]} : vector<16x32xf32> to vector<16x8xf32>
    %134 = vector.extract_strided_slice %113 {offsets = [0, 16], sizes = [16, 8], strides = [1, 1]} : vector<16x32xf32> to vector<16x8xf32>
    %135 = vector.extract_strided_slice %113 {offsets = [0, 24], sizes = [16, 8], strides = [1, 1]} : vector<16x32xf32> to vector<16x8xf32>
    %136 = vector.shape_cast %132 : vector<16x8xf32> to vector<1x16x8xf32>
    %137 = vector.shape_cast %133 : vector<16x8xf32> to vector<1x16x8xf32>
    %138 = vector.shape_cast %134 : vector<16x8xf32> to vector<1x16x8xf32>
    %139 = vector.shape_cast %135 : vector<16x8xf32> to vector<1x16x8xf32>
    %140 = tpu.concatenate %136, %137, %138, %139 in 0 : vector<1x16x8xf32>, vector<1x16x8xf32>, vector<1x16x8xf32>, vector<1x16x8xf32> -> vector<4x16x8xf32>
    %cst_22 = arith.constant dense<0.000000e+00> : vector<4x16x16xf32>
    %141 = tpu.matmul %122, %131, %cst_22 {dimension_numbers = #tpu.dot_dimension_numbers<[2], [2], [1], [1], [0, 0, 0, 1, 1, 1], [0], [0]>} : vector<4x16x8xf32>, vector<4x16x8xf32>, vector<4x16x16xf32> -> vector<4x16x16xf32>
    %142 = vector.shape_cast %5 : vector<16x16xf32> to vector<1x16x16xf32>
    %143 = vector.broadcast %142 : vector<1x16x16xf32> to vector<4x16x16xf32>
    %144 = arith.addf %141, %143 : vector<4x16x16xf32>
    %cst_23 = arith.constant dense<0xFF800000> : vector<4x16xf32>
    %145 = vector.multi_reduction <maximumf>, %144, %cst_23 [2] : vector<4x16x16xf32> to vector<4x16xf32>
    %146 = vector.shape_cast %145 : vector<4x16xf32> to vector<4x16x1xf32>
    %147 = vector.broadcast %146 : vector<4x16x1xf32> to vector<4x16x16xf32>
    %148 = arith.subf %144, %147 : vector<4x16x16xf32>
    %149 = math.exp %148 : vector<4x16x16xf32>
    %cst_24 = arith.constant dense<0.000000e+00> : vector<4x16xf32>
    %150 = vector.multi_reduction <add>, %149, %cst_24 [2] : vector<4x16x16xf32> to vector<4x16xf32>
    %151 = vector.shape_cast %150 : vector<4x16xf32> to vector<4x16x1xf32>
    %152 = vector.broadcast %151 : vector<4x16x1xf32> to vector<4x16x16xf32>
    %153 = arith.divf %149, %152 : vector<4x16x16xf32>
    %cst_25 = arith.constant dense<0.000000e+00> : vector<4x16x8xf32>
    %154 = tpu.matmul %153, %140, %cst_25 {dimension_numbers = #tpu.dot_dimension_numbers<[2], [1], [1], [2], [0, 0, 0, 1, 1, 2], [0], [0]>} : vector<4x16x16xf32>, vector<4x16x8xf32>, vector<4x16x8xf32> -> vector<4x16x8xf32>
    %155 = vector.extract_strided_slice %154 {offsets = [0, 0, 0], sizes = [1, 16, 8], strides = [1, 1, 1]} : vector<4x16x8xf32> to vector<1x16x8xf32>
    %156 = vector.shape_cast %155 : vector<1x16x8xf32> to vector<16x8xf32>
    %157 = vector.extract_strided_slice %154 {offsets = [1, 0, 0], sizes = [1, 16, 8], strides = [1, 1, 1]} : vector<4x16x8xf32> to vector<1x16x8xf32>
    %158 = vector.shape_cast %157 : vector<1x16x8xf32> to vector<16x8xf32>
    %159 = vector.extract_strided_slice %154 {offsets = [2, 0, 0], sizes = [1, 16, 8], strides = [1, 1, 1]} : vector<4x16x8xf32> to vector<1x16x8xf32>
    %160 = vector.shape_cast %159 : vector<1x16x8xf32> to vector<16x8xf32>
    %161 = vector.extract_strided_slice %154 {offsets = [3, 0, 0], sizes = [1, 16, 8], strides = [1, 1, 1]} : vector<4x16x8xf32> to vector<1x16x8xf32>
    %162 = vector.shape_cast %161 : vector<1x16x8xf32> to vector<16x8xf32>
    %163 = tpu.concatenate %156, %158, %160, %162 in 1 : vector<16x8xf32>, vector<16x8xf32>, vector<16x8xf32>, vector<16x8xf32> -> vector<16x32xf32>
    %164 = vector.extract_strided_slice %7 {offsets = [0, 224], sizes = [32, 32], strides = [1, 1]} : vector<32x320xf32> to vector<32x32xf32>
    %cst_26 = arith.constant dense<0.000000e+00> : vector<16x32xf32>
    %165 = tpu.matmul %163, %164, %cst_26 {dimension_numbers = #tpu.dot_dimension_numbers<[1], [0], [0], [1], [0, 0, 1, 1], [], []>} : vector<16x32xf32>, vector<32x32xf32>, vector<16x32xf32> -> vector<16x32xf32>
    %166 = vector.extract_strided_slice %12 {offsets = [0, 224], sizes = [1, 32], strides = [1, 1]} : vector<1x352xf32> to vector<1x32xf32>
    %167 = vector.broadcast %166 : vector<1x32xf32> to vector<16x32xf32>
    %168 = arith.addf %165, %167 : vector<16x32xf32>
    %169 = arith.addf %101, %168 : vector<16x32xf32>
    %170 = vector.extract_strided_slice %13 {offsets = [1, 0], sizes = [1, 32], strides = [1, 1]} : vector<3x32xf32> to vector<1x32xf32>
    %171 = vector.extract_strided_slice %14 {offsets = [1, 0], sizes = [1, 32], strides = [1, 1]} : vector<3x32xf32> to vector<1x32xf32>
    %172 = arith.mulf %169, %169 : vector<16x32xf32>
    %173 = tpu.concatenate %169, %172 in 0 : vector<16x32xf32>, vector<16x32xf32> -> vector<32x32xf32>
    %cst_27 = arith.constant dense<0.000000e+00> : vector<32xf32>
    %174 = vector.multi_reduction <add>, %173, %cst_27 [1] : vector<32x32xf32> to vector<32xf32>
    %175 = vector.shape_cast %174 : vector<32xf32> to vector<32x1xf32>
    %cst_28 = arith.constant 3.125000e-02 : f32
    %176 = vector.broadcast %cst_28 : f32 to vector<32x1xf32>
    %177 = arith.mulf %175, %176 : vector<32x1xf32>
    %178 = vector.extract_strided_slice %177 {offsets = [0, 0], sizes = [16, 1], strides = [1, 1]} : vector<32x1xf32> to vector<16x1xf32>
    %179 = vector.extract_strided_slice %177 {offsets = [16, 0], sizes = [16, 1], strides = [1, 1]} : vector<32x1xf32> to vector<16x1xf32>
    %180 = arith.mulf %178, %178 : vector<16x1xf32>
    %181 = arith.subf %179, %180 : vector<16x1xf32>
    %182 = vector.broadcast %178 : vector<16x1xf32> to vector<16x32xf32>
    %183 = arith.subf %169, %182 : vector<16x32xf32>
    %cst_29 = arith.constant 9.99999974E-6 : f32
    %184 = vector.broadcast %cst_29 : f32 to vector<16x1xf32>
    %185 = arith.addf %181, %184 : vector<16x1xf32>
    %186 = math.rsqrt %185 : vector<16x1xf32>
    %187 = vector.broadcast %186 : vector<16x1xf32> to vector<16x32xf32>
    %188 = arith.mulf %183, %187 : vector<16x32xf32>
    %189 = vector.broadcast %170 : vector<1x32xf32> to vector<16x32xf32>
    %190 = arith.mulf %188, %189 : vector<16x32xf32>
    %191 = vector.broadcast %171 : vector<1x32xf32> to vector<16x32xf32>
    %192 = arith.addf %190, %191 : vector<16x32xf32>
    %193 = vector.extract_strided_slice %7 {offsets = [0, 256], sizes = [32, 64], strides = [1, 1]} : vector<32x320xf32> to vector<32x64xf32>
    %cst_30 = arith.constant dense<0.000000e+00> : vector<16x64xf32>
    %194 = tpu.matmul %192, %193, %cst_30 {dimension_numbers = #tpu.dot_dimension_numbers<[1], [0], [0], [1], [0, 0, 1, 1], [], []>} : vector<16x32xf32>, vector<32x64xf32>, vector<16x64xf32> -> vector<16x64xf32>
    %195 = vector.extract_strided_slice %12 {offsets = [0, 256], sizes = [1, 64], strides = [1, 1]} : vector<1x352xf32> to vector<1x64xf32>
    %196 = vector.broadcast %195 : vector<1x64xf32> to vector<16x64xf32>
    %197 = arith.addf %194, %196 : vector<16x64xf32>
    %cst_31 = arith.constant 0.000000e+00 : f32
    %198 = vector.broadcast %cst_31 : f32 to vector<16x64xf32>
    %199 = arith.maximumf %197, %198 : vector<16x64xf32>
    %cst_32 = arith.constant dense<0.000000e+00> : vector<16x32xf32>
    %200 = tpu.matmul %199, %9, %cst_32 {dimension_numbers = #tpu.dot_dimension_numbers<[1], [0], [0], [1], [0, 0, 1, 1], [], []>} : vector<16x64xf32>, vector<64x32xf32>, vector<16x32xf32> -> vector<16x32xf32>
    %201 = vector.extract_strided_slice %12 {offsets = [0, 320], sizes = [1, 32], strides = [1, 1]} : vector<1x352xf32> to vector<1x32xf32>
    %202 = vector.broadcast %201 : vector<1x32xf32> to vector<16x32xf32>
    %203 = arith.addf %200, %202 : vector<16x32xf32>
    %204 = arith.addf %192, %203 : vector<16x32xf32>
    %205 = vector.extract_strided_slice %13 {offsets = [2, 0], sizes = [1, 32], strides = [1, 1]} : vector<3x32xf32> to vector<1x32xf32>
    %206 = vector.extract_strided_slice %14 {offsets = [2, 0], sizes = [1, 32], strides = [1, 1]} : vector<3x32xf32> to vector<1x32xf32>
    %207 = arith.mulf %204, %204 : vector<16x32xf32>
    %208 = tpu.concatenate %204, %207 in 0 : vector<16x32xf32>, vector<16x32xf32> -> vector<32x32xf32>
    %cst_33 = arith.constant dense<0.000000e+00> : vector<32xf32>
    %209 = vector.multi_reduction <add>, %208, %cst_33 [1] : vector<32x32xf32> to vector<32xf32>
    %210 = vector.shape_cast %209 : vector<32xf32> to vector<32x1xf32>
    %cst_34 = arith.constant 3.125000e-02 : f32
    %211 = vector.broadcast %cst_34 : f32 to vector<32x1xf32>
    %212 = arith.mulf %210, %211 : vector<32x1xf32>
    %213 = vector.extract_strided_slice %212 {offsets = [0, 0], sizes = [16, 1], strides = [1, 1]} : vector<32x1xf32> to vector<16x1xf32>
    %214 = vector.extract_strided_slice %212 {offsets = [16, 0], sizes = [16, 1], strides = [1, 1]} : vector<32x1xf32> to vector<16x1xf32>
    %215 = arith.mulf %213, %213 : vector<16x1xf32>
    %216 = arith.subf %214, %215 : vector<16x1xf32>
    %217 = vector.broadcast %213 : vector<16x1xf32> to vector<16x32xf32>
    %218 = arith.subf %204, %217 : vector<16x32xf32>
    %cst_35 = arith.constant 9.99999974E-6 : f32
    %219 = vector.broadcast %cst_35 : f32 to vector<16x1xf32>
    %220 = arith.addf %216, %219 : vector<16x1xf32>
    %221 = math.rsqrt %220 : vector<16x1xf32>
    %222 = vector.broadcast %221 : vector<16x1xf32> to vector<16x32xf32>
    %223 = arith.mulf %218, %222 : vector<16x32xf32>
    %224 = vector.broadcast %205 : vector<1x32xf32> to vector<16x32xf32>
    %225 = arith.mulf %223, %224 : vector<16x32xf32>
    %226 = vector.broadcast %206 : vector<1x32xf32> to vector<16x32xf32>
    %227 = arith.addf %225, %226 : vector<16x32xf32>
    %c1 = arith.constant 1 : index
    %c0_36 = arith.constant 0 : index
    %c0_37 = arith.constant 0 : index
    %228 = vector.load %arg3[%c1, %c0_36, %c0_37] : memref<2x32x320xf32, #tpu.memory_space<vmem>>, vector<1x32x320xf32>
    %229 = vector.shape_cast %228 : vector<1x32x320xf32> to vector<32x320xf32>
    %c1_38 = arith.constant 1 : index
    %c0_39 = arith.constant 0 : index
    %c0_40 = arith.constant 0 : index
    %230 = vector.load %arg4[%c1_38, %c0_39, %c0_40] : memref<2x64x32xf32, #tpu.memory_space<vmem>>, vector<1x64x32xf32>
    %231 = vector.shape_cast %230 : vector<1x64x32xf32> to vector<64x32xf32>
    %c1_41 = arith.constant 1 : index
    %c0_42 = arith.constant 0 : index
    %c0_43 = arith.constant 0 : index
    %232 = vector.load %arg5[%c1_41, %c0_42, %c0_43] : memref<2x8x352xf32, #tpu.memory_space<vmem>>, vector<1x8x352xf32>
    %233 = vector.shape_cast %232 : vector<1x8x352xf32> to vector<8x352xf32>
    %234 = vector.extract_strided_slice %233 {offsets = [0, 0], sizes = [1, 352], strides = [1, 1]} : vector<8x352xf32> to vector<1x352xf32>
    %235 = vector.extract_strided_slice %233 {offsets = [1, 0], sizes = [3, 32], strides = [1, 1]} : vector<8x352xf32> to vector<3x32xf32>
    %236 = vector.extract_strided_slice %233 {offsets = [4, 0], sizes = [3, 32], strides = [1, 1]} : vector<8x352xf32> to vector<3x32xf32>
    %237 = vector.extract_strided_slice %229 {offsets = [0, 0], sizes = [32, 96], strides = [1, 1]} : vector<32x320xf32> to vector<32x96xf32>
    %cst_44 = arith.constant dense<0.000000e+00> : vector<16x96xf32>
    %238 = tpu.matmul %227, %237, %cst_44 {dimension_numbers = #tpu.dot_dimension_numbers<[1], [0], [0], [1], [0, 0, 1, 1], [], []>} : vector<16x32xf32>, vector<32x96xf32>, vector<16x96xf32> -> vector<16x96xf32>
    %239 = vector.extract_strided_slice %234 {offsets = [0, 0], sizes = [1, 96], strides = [1, 1]} : vector<1x352xf32> to vector<1x96xf32>
    %240 = vector.broadcast %239 : vector<1x96xf32> to vector<16x96xf32>
    %241 = arith.addf %238, %240 : vector<16x96xf32>
    %242 = vector.extract_strided_slice %241 {offsets = [0, 0], sizes = [16, 32], strides = [1, 1]} : vector<16x96xf32> to vector<16x32xf32>
    %243 = vector.extract_strided_slice %241 {offsets = [0, 32], sizes = [16, 32], strides = [1, 1]} : vector<16x96xf32> to vector<16x32xf32>
    %244 = vector.extract_strided_slice %241 {offsets = [0, 64], sizes = [16, 32], strides = [1, 1]} : vector<16x96xf32> to vector<16x32xf32>
    %245 = vector.extract_strided_slice %242 {offsets = [0, 0], sizes = [16, 8], strides = [1, 1]} : vector<16x32xf32> to vector<16x8xf32>
    %246 = vector.extract_strided_slice %242 {offsets = [0, 8], sizes = [16, 8], strides = [1, 1]} : vector<16x32xf32> to vector<16x8xf32>
    %247 = vector.extract_strided_slice %242 {offsets = [0, 16], sizes = [16, 8], strides = [1, 1]} : vector<16x32xf32> to vector<16x8xf32>
    %248 = vector.extract_strided_slice %242 {offsets = [0, 24], sizes = [16, 8], strides = [1, 1]} : vector<16x32xf32> to vector<16x8xf32>
    %249 = vector.shape_cast %245 : vector<16x8xf32> to vector<1x16x8xf32>
    %250 = vector.shape_cast %246 : vector<16x8xf32> to vector<1x16x8xf32>
    %251 = vector.shape_cast %247 : vector<16x8xf32> to vector<1x16x8xf32>
    %252 = vector.shape_cast %248 : vector<16x8xf32> to vector<1x16x8xf32>
    %253 = tpu.concatenate %249, %250, %251, %252 in 0 : vector<1x16x8xf32>, vector<1x16x8xf32>, vector<1x16x8xf32>, vector<1x16x8xf32> -> vector<4x16x8xf32>
    %254 = vector.extract_strided_slice %243 {offsets = [0, 0], sizes = [16, 8], strides = [1, 1]} : vector<16x32xf32> to vector<16x8xf32>
    %255 = vector.extract_strided_slice %243 {offsets = [0, 8], sizes = [16, 8], strides = [1, 1]} : vector<16x32xf32> to vector<16x8xf32>
    %256 = vector.extract_strided_slice %243 {offsets = [0, 16], sizes = [16, 8], strides = [1, 1]} : vector<16x32xf32> to vector<16x8xf32>
    %257 = vector.extract_strided_slice %243 {offsets = [0, 24], sizes = [16, 8], strides = [1, 1]} : vector<16x32xf32> to vector<16x8xf32>
    %258 = vector.shape_cast %254 : vector<16x8xf32> to vector<1x16x8xf32>
    %259 = vector.shape_cast %255 : vector<16x8xf32> to vector<1x16x8xf32>
    %260 = vector.shape_cast %256 : vector<16x8xf32> to vector<1x16x8xf32>
    %261 = vector.shape_cast %257 : vector<16x8xf32> to vector<1x16x8xf32>
    %262 = tpu.concatenate %258, %259, %260, %261 in 0 : vector<1x16x8xf32>, vector<1x16x8xf32>, vector<1x16x8xf32>, vector<1x16x8xf32> -> vector<4x16x8xf32>
    %263 = vector.extract_strided_slice %244 {offsets = [0, 0], sizes = [16, 8], strides = [1, 1]} : vector<16x32xf32> to vector<16x8xf32>
    %264 = vector.extract_strided_slice %244 {offsets = [0, 8], sizes = [16, 8], strides = [1, 1]} : vector<16x32xf32> to vector<16x8xf32>
    %265 = vector.extract_strided_slice %244 {offsets = [0, 16], sizes = [16, 8], strides = [1, 1]} : vector<16x32xf32> to vector<16x8xf32>
    %266 = vector.extract_strided_slice %244 {offsets = [0, 24], sizes = [16, 8], strides = [1, 1]} : vector<16x32xf32> to vector<16x8xf32>
    %267 = vector.shape_cast %263 : vector<16x8xf32> to vector<1x16x8xf32>
    %268 = vector.shape_cast %264 : vector<16x8xf32> to vector<1x16x8xf32>
    %269 = vector.shape_cast %265 : vector<16x8xf32> to vector<1x16x8xf32>
    %270 = vector.shape_cast %266 : vector<16x8xf32> to vector<1x16x8xf32>
    %271 = tpu.concatenate %267, %268, %269, %270 in 0 : vector<1x16x8xf32>, vector<1x16x8xf32>, vector<1x16x8xf32>, vector<1x16x8xf32> -> vector<4x16x8xf32>
    %cst_45 = arith.constant dense<0.000000e+00> : vector<4x16x16xf32>
    %272 = tpu.matmul %253, %262, %cst_45 {dimension_numbers = #tpu.dot_dimension_numbers<[2], [2], [1], [1], [0, 0, 0, 1, 1, 1], [0], [0]>} : vector<4x16x8xf32>, vector<4x16x8xf32>, vector<4x16x16xf32> -> vector<4x16x16xf32>
    %273 = vector.shape_cast %4 : vector<16x16xf32> to vector<1x16x16xf32>
    %274 = vector.broadcast %273 : vector<1x16x16xf32> to vector<4x16x16xf32>
    %275 = arith.addf %272, %274 : vector<4x16x16xf32>
    %cst_46 = arith.constant dense<0xFF800000> : vector<4x16xf32>
    %276 = vector.multi_reduction <maximumf>, %275, %cst_46 [2] : vector<4x16x16xf32> to vector<4x16xf32>
    %277 = vector.shape_cast %276 : vector<4x16xf32> to vector<4x16x1xf32>
    %278 = vector.broadcast %277 : vector<4x16x1xf32> to vector<4x16x16xf32>
    %279 = arith.subf %275, %278 : vector<4x16x16xf32>
    %280 = math.exp %279 : vector<4x16x16xf32>
    %cst_47 = arith.constant dense<0.000000e+00> : vector<4x16xf32>
    %281 = vector.multi_reduction <add>, %280, %cst_47 [2] : vector<4x16x16xf32> to vector<4x16xf32>
    %282 = vector.shape_cast %281 : vector<4x16xf32> to vector<4x16x1xf32>
    %283 = vector.broadcast %282 : vector<4x16x1xf32> to vector<4x16x16xf32>
    %284 = arith.divf %280, %283 : vector<4x16x16xf32>
    %cst_48 = arith.constant dense<0.000000e+00> : vector<4x16x8xf32>
    %285 = tpu.matmul %284, %271, %cst_48 {dimension_numbers = #tpu.dot_dimension_numbers<[2], [1], [1], [2], [0, 0, 0, 1, 1, 2], [0], [0]>} : vector<4x16x16xf32>, vector<4x16x8xf32>, vector<4x16x8xf32> -> vector<4x16x8xf32>
    %286 = vector.extract_strided_slice %285 {offsets = [0, 0, 0], sizes = [1, 16, 8], strides = [1, 1, 1]} : vector<4x16x8xf32> to vector<1x16x8xf32>
    %287 = vector.shape_cast %286 : vector<1x16x8xf32> to vector<16x8xf32>
    %288 = vector.extract_strided_slice %285 {offsets = [1, 0, 0], sizes = [1, 16, 8], strides = [1, 1, 1]} : vector<4x16x8xf32> to vector<1x16x8xf32>
    %289 = vector.shape_cast %288 : vector<1x16x8xf32> to vector<16x8xf32>
    %290 = vector.extract_strided_slice %285 {offsets = [2, 0, 0], sizes = [1, 16, 8], strides = [1, 1, 1]} : vector<4x16x8xf32> to vector<1x16x8xf32>
    %291 = vector.shape_cast %290 : vector<1x16x8xf32> to vector<16x8xf32>
    %292 = vector.extract_strided_slice %285 {offsets = [3, 0, 0], sizes = [1, 16, 8], strides = [1, 1, 1]} : vector<4x16x8xf32> to vector<1x16x8xf32>
    %293 = vector.shape_cast %292 : vector<1x16x8xf32> to vector<16x8xf32>
    %294 = tpu.concatenate %287, %289, %291, %293 in 1 : vector<16x8xf32>, vector<16x8xf32>, vector<16x8xf32>, vector<16x8xf32> -> vector<16x32xf32>
    %295 = vector.extract_strided_slice %229 {offsets = [0, 96], sizes = [32, 32], strides = [1, 1]} : vector<32x320xf32> to vector<32x32xf32>
    %cst_49 = arith.constant dense<0.000000e+00> : vector<16x32xf32>
    %296 = tpu.matmul %294, %295, %cst_49 {dimension_numbers = #tpu.dot_dimension_numbers<[1], [0], [0], [1], [0, 0, 1, 1], [], []>} : vector<16x32xf32>, vector<32x32xf32>, vector<16x32xf32> -> vector<16x32xf32>
    %297 = vector.extract_strided_slice %234 {offsets = [0, 96], sizes = [1, 32], strides = [1, 1]} : vector<1x352xf32> to vector<1x32xf32>
    %298 = vector.broadcast %297 : vector<1x32xf32> to vector<16x32xf32>
    %299 = arith.addf %296, %298 : vector<16x32xf32>
    %300 = arith.addf %227, %299 : vector<16x32xf32>
    %301 = vector.extract_strided_slice %235 {offsets = [0, 0], sizes = [1, 32], strides = [1, 1]} : vector<3x32xf32> to vector<1x32xf32>
    %302 = vector.extract_strided_slice %236 {offsets = [0, 0], sizes = [1, 32], strides = [1, 1]} : vector<3x32xf32> to vector<1x32xf32>
    %303 = arith.mulf %300, %300 : vector<16x32xf32>
    %304 = tpu.concatenate %300, %303 in 0 : vector<16x32xf32>, vector<16x32xf32> -> vector<32x32xf32>
    %cst_50 = arith.constant dense<0.000000e+00> : vector<32xf32>
    %305 = vector.multi_reduction <add>, %304, %cst_50 [1] : vector<32x32xf32> to vector<32xf32>
    %306 = vector.shape_cast %305 : vector<32xf32> to vector<32x1xf32>
    %cst_51 = arith.constant 3.125000e-02 : f32
    %307 = vector.broadcast %cst_51 : f32 to vector<32x1xf32>
    %308 = arith.mulf %306, %307 : vector<32x1xf32>
    %309 = vector.extract_strided_slice %308 {offsets = [0, 0], sizes = [16, 1], strides = [1, 1]} : vector<32x1xf32> to vector<16x1xf32>
    %310 = vector.extract_strided_slice %308 {offsets = [16, 0], sizes = [16, 1], strides = [1, 1]} : vector<32x1xf32> to vector<16x1xf32>
    %311 = arith.mulf %309, %309 : vector<16x1xf32>
    %312 = arith.subf %310, %311 : vector<16x1xf32>
    %313 = vector.broadcast %309 : vector<16x1xf32> to vector<16x32xf32>
    %314 = arith.subf %300, %313 : vector<16x32xf32>
    %cst_52 = arith.constant 9.99999974E-6 : f32
    %315 = vector.broadcast %cst_52 : f32 to vector<16x1xf32>
    %316 = arith.addf %312, %315 : vector<16x1xf32>
    %317 = math.rsqrt %316 : vector<16x1xf32>
    %318 = vector.broadcast %317 : vector<16x1xf32> to vector<16x32xf32>
    %319 = arith.mulf %314, %318 : vector<16x32xf32>
    %320 = vector.broadcast %301 : vector<1x32xf32> to vector<16x32xf32>
    %321 = arith.mulf %319, %320 : vector<16x32xf32>
    %322 = vector.broadcast %302 : vector<1x32xf32> to vector<16x32xf32>
    %323 = arith.addf %321, %322 : vector<16x32xf32>
    %324 = vector.extract_strided_slice %229 {offsets = [0, 128], sizes = [32, 32], strides = [1, 1]} : vector<32x320xf32> to vector<32x32xf32>
    %cst_53 = arith.constant dense<0.000000e+00> : vector<16x32xf32>
    %325 = tpu.matmul %323, %324, %cst_53 {dimension_numbers = #tpu.dot_dimension_numbers<[1], [0], [0], [1], [0, 0, 1, 1], [], []>} : vector<16x32xf32>, vector<32x32xf32>, vector<16x32xf32> -> vector<16x32xf32>
    %326 = vector.extract_strided_slice %234 {offsets = [0, 128], sizes = [1, 32], strides = [1, 1]} : vector<1x352xf32> to vector<1x32xf32>
    %327 = vector.broadcast %326 : vector<1x32xf32> to vector<16x32xf32>
    %328 = arith.addf %325, %327 : vector<16x32xf32>
    %329 = vector.extract_strided_slice %229 {offsets = [0, 160], sizes = [32, 64], strides = [1, 1]} : vector<32x320xf32> to vector<32x64xf32>
    %cst_54 = arith.constant dense<0.000000e+00> : vector<16x64xf32>
    %330 = tpu.matmul %2, %329, %cst_54 {dimension_numbers = #tpu.dot_dimension_numbers<[1], [0], [0], [1], [0, 0, 1, 1], [], []>} : vector<16x32xf32>, vector<32x64xf32>, vector<16x64xf32> -> vector<16x64xf32>
    %331 = vector.extract_strided_slice %234 {offsets = [0, 160], sizes = [1, 64], strides = [1, 1]} : vector<1x352xf32> to vector<1x64xf32>
    %332 = vector.broadcast %331 : vector<1x64xf32> to vector<16x64xf32>
    %333 = arith.addf %330, %332 : vector<16x64xf32>
    %334 = vector.extract_strided_slice %333 {offsets = [0, 0], sizes = [16, 32], strides = [1, 1]} : vector<16x64xf32> to vector<16x32xf32>
    %335 = vector.extract_strided_slice %333 {offsets = [0, 32], sizes = [16, 32], strides = [1, 1]} : vector<16x64xf32> to vector<16x32xf32>
    %336 = vector.extract_strided_slice %328 {offsets = [0, 0], sizes = [16, 8], strides = [1, 1]} : vector<16x32xf32> to vector<16x8xf32>
    %337 = vector.extract_strided_slice %328 {offsets = [0, 8], sizes = [16, 8], strides = [1, 1]} : vector<16x32xf32> to vector<16x8xf32>
    %338 = vector.extract_strided_slice %328 {offsets = [0, 16], sizes = [16, 8], strides = [1, 1]} : vector<16x32xf32> to vector<16x8xf32>
    %339 = vector.extract_strided_slice %328 {offsets = [0, 24], sizes = [16, 8], strides = [1, 1]} : vector<16x32xf32> to vector<16x8xf32>
    %340 = vector.shape_cast %336 : vector<16x8xf32> to vector<1x16x8xf32>
    %341 = vector.shape_cast %337 : vector<16x8xf32> to vector<1x16x8xf32>
    %342 = vector.shape_cast %338 : vector<16x8xf32> to vector<1x16x8xf32>
    %343 = vector.shape_cast %339 : vector<16x8xf32> to vector<1x16x8xf32>
    %344 = tpu.concatenate %340, %341, %342, %343 in 0 : vector<1x16x8xf32>, vector<1x16x8xf32>, vector<1x16x8xf32>, vector<1x16x8xf32> -> vector<4x16x8xf32>
    %345 = vector.extract_strided_slice %334 {offsets = [0, 0], sizes = [16, 8], strides = [1, 1]} : vector<16x32xf32> to vector<16x8xf32>
    %346 = vector.extract_strided_slice %334 {offsets = [0, 8], sizes = [16, 8], strides = [1, 1]} : vector<16x32xf32> to vector<16x8xf32>
    %347 = vector.extract_strided_slice %334 {offsets = [0, 16], sizes = [16, 8], strides = [1, 1]} : vector<16x32xf32> to vector<16x8xf32>
    %348 = vector.extract_strided_slice %334 {offsets = [0, 24], sizes = [16, 8], strides = [1, 1]} : vector<16x32xf32> to vector<16x8xf32>
    %349 = vector.shape_cast %345 : vector<16x8xf32> to vector<1x16x8xf32>
    %350 = vector.shape_cast %346 : vector<16x8xf32> to vector<1x16x8xf32>
    %351 = vector.shape_cast %347 : vector<16x8xf32> to vector<1x16x8xf32>
    %352 = vector.shape_cast %348 : vector<16x8xf32> to vector<1x16x8xf32>
    %353 = tpu.concatenate %349, %350, %351, %352 in 0 : vector<1x16x8xf32>, vector<1x16x8xf32>, vector<1x16x8xf32>, vector<1x16x8xf32> -> vector<4x16x8xf32>
    %354 = vector.extract_strided_slice %335 {offsets = [0, 0], sizes = [16, 8], strides = [1, 1]} : vector<16x32xf32> to vector<16x8xf32>
    %355 = vector.extract_strided_slice %335 {offsets = [0, 8], sizes = [16, 8], strides = [1, 1]} : vector<16x32xf32> to vector<16x8xf32>
    %356 = vector.extract_strided_slice %335 {offsets = [0, 16], sizes = [16, 8], strides = [1, 1]} : vector<16x32xf32> to vector<16x8xf32>
    %357 = vector.extract_strided_slice %335 {offsets = [0, 24], sizes = [16, 8], strides = [1, 1]} : vector<16x32xf32> to vector<16x8xf32>
    %358 = vector.shape_cast %354 : vector<16x8xf32> to vector<1x16x8xf32>
    %359 = vector.shape_cast %355 : vector<16x8xf32> to vector<1x16x8xf32>
    %360 = vector.shape_cast %356 : vector<16x8xf32> to vector<1x16x8xf32>
    %361 = vector.shape_cast %357 : vector<16x8xf32> to vector<1x16x8xf32>
    %362 = tpu.concatenate %358, %359, %360, %361 in 0 : vector<1x16x8xf32>, vector<1x16x8xf32>, vector<1x16x8xf32>, vector<1x16x8xf32> -> vector<4x16x8xf32>
    %cst_55 = arith.constant dense<0.000000e+00> : vector<4x16x16xf32>
    %363 = tpu.matmul %344, %353, %cst_55 {dimension_numbers = #tpu.dot_dimension_numbers<[2], [2], [1], [1], [0, 0, 0, 1, 1, 1], [0], [0]>} : vector<4x16x8xf32>, vector<4x16x8xf32>, vector<4x16x16xf32> -> vector<4x16x16xf32>
    %364 = vector.shape_cast %5 : vector<16x16xf32> to vector<1x16x16xf32>
    %365 = vector.broadcast %364 : vector<1x16x16xf32> to vector<4x16x16xf32>
    %366 = arith.addf %363, %365 : vector<4x16x16xf32>
    %cst_56 = arith.constant dense<0xFF800000> : vector<4x16xf32>
    %367 = vector.multi_reduction <maximumf>, %366, %cst_56 [2] : vector<4x16x16xf32> to vector<4x16xf32>
    %368 = vector.shape_cast %367 : vector<4x16xf32> to vector<4x16x1xf32>
    %369 = vector.broadcast %368 : vector<4x16x1xf32> to vector<4x16x16xf32>
    %370 = arith.subf %366, %369 : vector<4x16x16xf32>
    %371 = math.exp %370 : vector<4x16x16xf32>
    %cst_57 = arith.constant dense<0.000000e+00> : vector<4x16xf32>
    %372 = vector.multi_reduction <add>, %371, %cst_57 [2] : vector<4x16x16xf32> to vector<4x16xf32>
    %373 = vector.shape_cast %372 : vector<4x16xf32> to vector<4x16x1xf32>
    %374 = vector.broadcast %373 : vector<4x16x1xf32> to vector<4x16x16xf32>
    %375 = arith.divf %371, %374 : vector<4x16x16xf32>
    %cst_58 = arith.constant dense<0.000000e+00> : vector<4x16x8xf32>
    %376 = tpu.matmul %375, %362, %cst_58 {dimension_numbers = #tpu.dot_dimension_numbers<[2], [1], [1], [2], [0, 0, 0, 1, 1, 2], [0], [0]>} : vector<4x16x16xf32>, vector<4x16x8xf32>, vector<4x16x8xf32> -> vector<4x16x8xf32>
    %377 = vector.extract_strided_slice %376 {offsets = [0, 0, 0], sizes = [1, 16, 8], strides = [1, 1, 1]} : vector<4x16x8xf32> to vector<1x16x8xf32>
    %378 = vector.shape_cast %377 : vector<1x16x8xf32> to vector<16x8xf32>
    %379 = vector.extract_strided_slice %376 {offsets = [1, 0, 0], sizes = [1, 16, 8], strides = [1, 1, 1]} : vector<4x16x8xf32> to vector<1x16x8xf32>
    %380 = vector.shape_cast %379 : vector<1x16x8xf32> to vector<16x8xf32>
    %381 = vector.extract_strided_slice %376 {offsets = [2, 0, 0], sizes = [1, 16, 8], strides = [1, 1, 1]} : vector<4x16x8xf32> to vector<1x16x8xf32>
    %382 = vector.shape_cast %381 : vector<1x16x8xf32> to vector<16x8xf32>
    %383 = vector.extract_strided_slice %376 {offsets = [3, 0, 0], sizes = [1, 16, 8], strides = [1, 1, 1]} : vector<4x16x8xf32> to vector<1x16x8xf32>
    %384 = vector.shape_cast %383 : vector<1x16x8xf32> to vector<16x8xf32>
    %385 = tpu.concatenate %378, %380, %382, %384 in 1 : vector<16x8xf32>, vector<16x8xf32>, vector<16x8xf32>, vector<16x8xf32> -> vector<16x32xf32>
    %386 = vector.extract_strided_slice %229 {offsets = [0, 224], sizes = [32, 32], strides = [1, 1]} : vector<32x320xf32> to vector<32x32xf32>
    %cst_59 = arith.constant dense<0.000000e+00> : vector<16x32xf32>
    %387 = tpu.matmul %385, %386, %cst_59 {dimension_numbers = #tpu.dot_dimension_numbers<[1], [0], [0], [1], [0, 0, 1, 1], [], []>} : vector<16x32xf32>, vector<32x32xf32>, vector<16x32xf32> -> vector<16x32xf32>
    %388 = vector.extract_strided_slice %234 {offsets = [0, 224], sizes = [1, 32], strides = [1, 1]} : vector<1x352xf32> to vector<1x32xf32>
    %389 = vector.broadcast %388 : vector<1x32xf32> to vector<16x32xf32>
    %390 = arith.addf %387, %389 : vector<16x32xf32>
    %391 = arith.addf %323, %390 : vector<16x32xf32>
    %392 = vector.extract_strided_slice %235 {offsets = [1, 0], sizes = [1, 32], strides = [1, 1]} : vector<3x32xf32> to vector<1x32xf32>
    %393 = vector.extract_strided_slice %236 {offsets = [1, 0], sizes = [1, 32], strides = [1, 1]} : vector<3x32xf32> to vector<1x32xf32>
    %394 = arith.mulf %391, %391 : vector<16x32xf32>
    %395 = tpu.concatenate %391, %394 in 0 : vector<16x32xf32>, vector<16x32xf32> -> vector<32x32xf32>
    %cst_60 = arith.constant dense<0.000000e+00> : vector<32xf32>
    %396 = vector.multi_reduction <add>, %395, %cst_60 [1] : vector<32x32xf32> to vector<32xf32>
    %397 = vector.shape_cast %396 : vector<32xf32> to vector<32x1xf32>
    %cst_61 = arith.constant 3.125000e-02 : f32
    %398 = vector.broadcast %cst_61 : f32 to vector<32x1xf32>
    %399 = arith.mulf %397, %398 : vector<32x1xf32>
    %400 = vector.extract_strided_slice %399 {offsets = [0, 0], sizes = [16, 1], strides = [1, 1]} : vector<32x1xf32> to vector<16x1xf32>
    %401 = vector.extract_strided_slice %399 {offsets = [16, 0], sizes = [16, 1], strides = [1, 1]} : vector<32x1xf32> to vector<16x1xf32>
    %402 = arith.mulf %400, %400 : vector<16x1xf32>
    %403 = arith.subf %401, %402 : vector<16x1xf32>
    %404 = vector.broadcast %400 : vector<16x1xf32> to vector<16x32xf32>
    %405 = arith.subf %391, %404 : vector<16x32xf32>
    %cst_62 = arith.constant 9.99999974E-6 : f32
    %406 = vector.broadcast %cst_62 : f32 to vector<16x1xf32>
    %407 = arith.addf %403, %406 : vector<16x1xf32>
    %408 = math.rsqrt %407 : vector<16x1xf32>
    %409 = vector.broadcast %408 : vector<16x1xf32> to vector<16x32xf32>
    %410 = arith.mulf %405, %409 : vector<16x32xf32>
    %411 = vector.broadcast %392 : vector<1x32xf32> to vector<16x32xf32>
    %412 = arith.mulf %410, %411 : vector<16x32xf32>
    %413 = vector.broadcast %393 : vector<1x32xf32> to vector<16x32xf32>
    %414 = arith.addf %412, %413 : vector<16x32xf32>
    %415 = vector.extract_strided_slice %229 {offsets = [0, 256], sizes = [32, 64], strides = [1, 1]} : vector<32x320xf32> to vector<32x64xf32>
    %cst_63 = arith.constant dense<0.000000e+00> : vector<16x64xf32>
    %416 = tpu.matmul %414, %415, %cst_63 {dimension_numbers = #tpu.dot_dimension_numbers<[1], [0], [0], [1], [0, 0, 1, 1], [], []>} : vector<16x32xf32>, vector<32x64xf32>, vector<16x64xf32> -> vector<16x64xf32>
    %417 = vector.extract_strided_slice %234 {offsets = [0, 256], sizes = [1, 64], strides = [1, 1]} : vector<1x352xf32> to vector<1x64xf32>
    %418 = vector.broadcast %417 : vector<1x64xf32> to vector<16x64xf32>
    %419 = arith.addf %416, %418 : vector<16x64xf32>
    %cst_64 = arith.constant 0.000000e+00 : f32
    %420 = vector.broadcast %cst_64 : f32 to vector<16x64xf32>
    %421 = arith.maximumf %419, %420 : vector<16x64xf32>
    %cst_65 = arith.constant dense<0.000000e+00> : vector<16x32xf32>
    %422 = tpu.matmul %421, %231, %cst_65 {dimension_numbers = #tpu.dot_dimension_numbers<[1], [0], [0], [1], [0, 0, 1, 1], [], []>} : vector<16x64xf32>, vector<64x32xf32>, vector<16x32xf32> -> vector<16x32xf32>
    %423 = vector.extract_strided_slice %234 {offsets = [0, 320], sizes = [1, 32], strides = [1, 1]} : vector<1x352xf32> to vector<1x32xf32>
    %424 = vector.broadcast %423 : vector<1x32xf32> to vector<16x32xf32>
    %425 = arith.addf %422, %424 : vector<16x32xf32>
    %426 = arith.addf %414, %425 : vector<16x32xf32>
    %427 = vector.extract_strided_slice %235 {offsets = [2, 0], sizes = [1, 32], strides = [1, 1]} : vector<3x32xf32> to vector<1x32xf32>
    %428 = vector.extract_strided_slice %236 {offsets = [2, 0], sizes = [1, 32], strides = [1, 1]} : vector<3x32xf32> to vector<1x32xf32>
    %429 = arith.mulf %426, %426 : vector<16x32xf32>
    %430 = tpu.concatenate %426, %429 in 0 : vector<16x32xf32>, vector<16x32xf32> -> vector<32x32xf32>
    %cst_66 = arith.constant dense<0.000000e+00> : vector<32xf32>
    %431 = vector.multi_reduction <add>, %430, %cst_66 [1] : vector<32x32xf32> to vector<32xf32>
    %432 = vector.shape_cast %431 : vector<32xf32> to vector<32x1xf32>
    %cst_67 = arith.constant 3.125000e-02 : f32
    %433 = vector.broadcast %cst_67 : f32 to vector<32x1xf32>
    %434 = arith.mulf %432, %433 : vector<32x1xf32>
    %435 = vector.extract_strided_slice %434 {offsets = [0, 0], sizes = [16, 1], strides = [1, 1]} : vector<32x1xf32> to vector<16x1xf32>
    %436 = vector.extract_strided_slice %434 {offsets = [16, 0], sizes = [16, 1], strides = [1, 1]} : vector<32x1xf32> to vector<16x1xf32>
    %437 = arith.mulf %435, %435 : vector<16x1xf32>
    %438 = arith.subf %436, %437 : vector<16x1xf32>
    %439 = vector.broadcast %435 : vector<16x1xf32> to vector<16x32xf32>
    %440 = arith.subf %426, %439 : vector<16x32xf32>
    %cst_68 = arith.constant 9.99999974E-6 : f32
    %441 = vector.broadcast %cst_68 : f32 to vector<16x1xf32>
    %442 = arith.addf %438, %441 : vector<16x1xf32>
    %443 = math.rsqrt %442 : vector<16x1xf32>
    %444 = vector.broadcast %443 : vector<16x1xf32> to vector<16x32xf32>
    %445 = arith.mulf %440, %444 : vector<16x32xf32>
    %446 = vector.broadcast %427 : vector<1x32xf32> to vector<16x32xf32>
    %447 = arith.mulf %445, %446 : vector<16x32xf32>
    %448 = vector.broadcast %428 : vector<1x32xf32> to vector<16x32xf32>
    %449 = arith.addf %447, %448 : vector<16x32xf32>
    %c0_69 = arith.constant 0 : index
    %c0_70 = arith.constant 0 : index
    %450 = vector.load %arg6[%c0_69, %c0_70] : memref<16x32xf32, #tpu.memory_space<vmem>>, vector<16x32xf32>
    tpu.vector_store %arg6[%c0_69, %c0_70], %449 {strides = array<i32>} : memref<16x32xf32, #tpu.memory_space<vmem>>, vector<16x32xf32>,
    return
  }
  func.func @transform_0(%arg0: i32) -> (i32, i32) {
    %c0_i32 = arith.constant 0 : i32
    %c0_i32_0 = arith.constant 0 : i32
    %c0_i32_1 = arith.constant 0 : i32
    return %c0_i32, %c0_i32_0 : i32, i32
  }
  func.func @transform_1(%arg0: i32) -> (i32, i32) {
    %c0_i32 = arith.constant 0 : i32
    %c0_i32_0 = arith.constant 0 : i32
    %c0_i32_1 = arith.constant 0 : i32
    return %c0_i32, %c0_i32_0 : i32, i32
  }
  func.func @transform_2(%arg0: i32) -> (i32, i32, i32) {
    %c0_i32 = arith.constant 0 : i32
    %c0_i32_0 = arith.constant 0 : i32
    %c0_i32_1 = arith.constant 0 : i32
    %c0_i32_2 = arith.constant 0 : i32
    return %c0_i32, %c0_i32_0, %c0_i32_1 : i32, i32, i32
  }
  func.func @transform_3(%arg0: i32) -> (i32, i32, i32) {
    %c0_i32 = arith.constant 0 : i32
    %c0_i32_0 = arith.constant 0 : i32
    %c0_i32_1 = arith.constant 0 : i32
    %c0_i32_2 = arith.constant 0 : i32
    return %c0_i32, %c0_i32_0, %c0_i32_1 : i32, i32, i32
  }
  func.func @transform_4(%arg0: i32) -> (i32, i32, i32) {
    %c0_i32 = arith.constant 0 : i32
    %c0_i32_0 = arith.constant 0 : i32
    %c0_i32_1 = arith.constant 0 : i32
    %c0_i32_2 = arith.constant 0 : i32
    return %c0_i32, %c0_i32_0, %c0_i32_1 : i32, i32, i32
  }
  func.func @transform_5(%arg0: i32) -> (i32, i32) {
    %c0_i32 = arith.constant 0 : i32
    %c0_i32_0 = arith.constant 0 : i32
    %c0_i32_1 = arith.constant 0 : i32
    return %c0_i32, %c0_i32_0 : i32, i32
  }
}

</mosaic_0001>

<llo_original>
// kernel: decoder.1
$region0: #{decoder.1}
  #allocation0 [shape = 'u32[]', space=smem, size = 0x4, offset = 0x4, fixed_abs, tag = 'smem constant byte address 0x4 - core index']
  #allocation1 [shape = 'u32[144,128]{1,0:T(1,128)}', space=vmem, size = 0x12000, scoped, tag = 'internal scratch']
  %s0 = inlined_call_operand.vmem [shape: f32[32,32], index: 0, kind: input, shape index: {}]
  %s1 = inlined_call_operand.vmem [shape: f32[32,16], index: 1, kind: input, shape index: {}]
  %s2 = inlined_call_operand.vmem [shape: f32[2,32,320], index: 2, kind: input, shape index: {}]
  %s3 = inlined_call_operand.vmem [shape: f32[2,64,32], index: 3, kind: input, shape index: {}]
  %s4 = inlined_call_operand.vmem [shape: f32[2,8,352], index: 4, kind: input, shape index: {}]
  %s5 = inlined_call_operand.hbm [shape: f32[16,32], index: 5, kind: output, shape index: {}]
  %s6 = sld [smem:[#allocation0]]
  $region30: #{decoder.1} parent=0
    _
  %s8 = ssub.s32 1, %s6
  %s9 = scalar_select 0, %s8, %s6
  $region1: #{decoder.1} parent=0
    #allocation2 [shape = 'u8[8192]{0}', space=vmem, size = 0x2000, scoped, tag = 'output window, operand 0, single buffered']
    #allocation3 [shape = 's32[1]{0}', space=sflag, size = 0x4, scoped, tag = 'scoped memory for decoder.1']
    %10 = vsyncpa [#allocation3], 0
    // Predicated region
    $region2: #{decoder.1} parent=1 // pred_check
      _
    $region3: #{decoder.1} parent=1 // pred_check_branch
      %12 = sbr.rel (0) target = $region5
    $region4: #{decoder.1} parent=1 // pred_region
      _
    $region5: #{decoder.1} parent=1 // pred_fallthru
      _
    // Predicated region
    $region6: #{decoder.1} parent=1 // pred_check
      _
    $region7: #{decoder.1} parent=1 // pred_check_branch
      %14 = sbr.rel (0) target = $region9
    $region8: #{decoder.1} parent=1 // pred_region
      _
    $region9: #{decoder.1} parent=1 // pred_fallthru
      _
    // Predicated region
    $region10: #{decoder.1} parent=1 // pred_check
      _
    $region11: #{decoder.1} parent=1 // pred_check_branch
      %16 = sbr.rel (0) target = $region13
    $region12: #{decoder.1} parent=1 // pred_region
      _
    $region13: #{decoder.1} parent=1 // pred_fallthru
      _
    // Predicated region
    $region14: #{decoder.1} parent=1 // pred_check
      _
    $region15: #{decoder.1} parent=1 // pred_check_branch
      %18 = sbr.rel (0) target = $region17
    $region16: #{decoder.1} parent=1 // pred_region
      _
    $region17: #{decoder.1} parent=1 // pred_fallthru
      _
    // Predicated region
    $region18: #{decoder.1} parent=1 // pred_check
      _
    $region19: #{decoder.1} parent=1 // pred_check_branch
      %20 = sbr.rel (0) target = $region21
    $region20: #{decoder.1} parent=1 // pred_region
      _
    $region21: #{decoder.1} parent=1 // pred_fallthru
      _
    %v21 = vld [vmem:[%s0] sm:$0xff]
    %v22 = vld [vmem:[%s0 + $0x8] sm:$0xff]
    %v23 = vld [vmem:[%s0 + $0x10] sm:$0xff]
    %v24 = vld [vmem:[%s0 + $0x18] sm:$0xff]
    %v25 = vld [vmem:[%s1] sm:$0xff]
    %v26 = vld [vmem:[%s1 + $0x8] sm:$0xff]
    %v27 = vld [vmem:[%s1 + $0x10] sm:$0xff]
    %v28 = vld [vmem:[%s1 + $0x18] sm:$0xff]
    %v29 = vld [vmem:[%s2] sm:$0xff]
    %v30 = vld [vmem:[%s2 + $0x8] sm:$0xff]
    %v31 = vld [vmem:[%s2 + $0x10] sm:$0xff]
    %v32 = vld [vmem:[%s2 + $0x18] sm:$0xff]
    %v33 = vld [vmem:[%s2 + $0x20] sm:$0xff]
    %v34 = vld [vmem:[%s2 + $0x28] sm:$0xff]
    %v35 = vld [vmem:[%s2 + $0x30] sm:$0xff]
    %v36 = vld [vmem:[%s2 + $0x38] sm:$0xff]
    %v37 = vld [vmem:[%s2 + $0x40] sm:$0xff]
    %v38 = vld [vmem:[%s2 + $0x48] sm:$0xff]
    %v39 = vld [vmem:[%s2 + $0x50] sm:$0xff]
    %v40 = vld [vmem:[%s2 + $0x58] sm:$0xff]
    %v41 = vld [vmem:[%s3] sm:$0xff]
    %v42 = vld [vmem:[%s3 + $0x8] sm:$0xff]
    %v43 = vld [vmem:[%s3 + $0x10] sm:$0xff]
    %v44 = vld [vmem:[%s3 + $0x18] sm:$0xff]
    %v45 = vld [vmem:[%s3 + $0x20] sm:$0xff]
    %v46 = vld [vmem:[%s3 + $0x28] sm:$0xff]
    %v47 = vld [vmem:[%s3 + $0x30] sm:$0xff]
    %v48 = vld [vmem:[%s3 + $0x38] sm:$0xff]
    %v49 = vld [vmem:[%s4] sm:$0xff]
    %v50 = vld [vmem:[%s4 + $0x8] sm:$0xff]
    %v51 = vld [vmem:[%s4 + $0x10] sm:$0xff]
    %v52 = vlaneseq
    %v53 = vshrl.u32 %v52, 7
    %v54 = vsub.s32 0, %v53
    %v55 = vrot.slane %v49, %v54
    %vm56 = vcmask 261120
    %v58 = vsel %vm56, %v21, 0
    %v61 = vsel %vm56, %v22, 0
    %63 = vmatprep.subr.mxu0 0.0
    %64 = vmatpush1.msra.mxu0 0.0
    %65 = vmatprep.subr.mxu0 0.0
    %66 = vmatpush1.msra.mxu0 0.0
    %67 = vmatprep.subr.mxu0 0.0
    %68 = vmatpush1.msra.mxu0 0.0
    %69 = vmatprep.subr.mxu0 0.0
    %70 = vmatpush1.msra.mxu0 0.0
    %71 = vmatprep.subr.mxu0 0.0
    %72 = vmatpush1.msra.mxu0 0.0
    %73 = vmatprep.subr.mxu0 0.0
    %74 = vmatpush1.msra.mxu0 0.0
    %75 = vmatprep.subr.mxu0 0.0
    %76 = vmatpush1.msra.mxu0 0.0
    %77 = vmatprep.subr.mxu0 0.0
    %78 = vmatpush1.msra.mxu0 0.0
    %79 = vmatprep.subr.mxu0 0.0
    %80 = vmatpush1.msra.mxu0 0.0
    %81 = vmatprep.subr.mxu0 0.0
    %82 = vmatpush1.msra.mxu0 0.0
    %83 = vmatprep.subr.mxu0 0.0
    %84 = vmatpush1.msra.mxu0 0.0
    %85 = vmatprep.subr.mxu0 0.0
    %86 = vmatpush1.msra.mxu0 0.0
    %87 = vmatprep.subr.mxu0 0.0
    %88 = vmatpush1.msra.mxu0 %v38
    %89 = vmatprep.subr.mxu0 0.0
    %90 = vmatpush1.msra.mxu0 %v35
    %91 = vmatprep.subr.mxu0 0.0
    %92 = vmatpush1.msra.mxu0 %v32
    %93 = vmatprep.subr.mxu0 0.0
    %94 = vmatpush1.msra.mxu0 %v29
    %95 = vmatprep.subr.mxu0 0.0
    %96 = vmatpush2.msra.mxu0 0.0
    %97 = vmatprep.subr.mxu0 0.0
    %98 = vmatpush2.msra.mxu0 0.0
    %99 = vmatprep.subr.mxu0 0.0
    %100 = vmatpush2.msra.mxu0 0.0
    %101 = vmatprep.subr.mxu0 0.0
    %102 = vmatpush2.msra.mxu0 0.0
    %103 = vmatprep.subr.mxu0 0.0
    %104 = vmatpush2.msra.mxu0 0.0
    %105 = vmatprep.subr.mxu0 0.0
    %106 = vmatpush2.msra.mxu0 0.0
    %107 = vmatprep.subr.mxu0 0.0
    %108 = vmatpush2.msra.mxu0 0.0
    %109 = vmatprep.subr.mxu0 0.0
    %110 = vmatpush2.msra.mxu0 0.0
    %111 = vmatprep.subr.mxu0 0.0
    %112 = vmatpush2.msra.mxu0 0.0
    %113 = vmatprep.subr.mxu0 0.0
    %114 = vmatpush2.msra.mxu0 0.0
    %115 = vmatprep.subr.mxu0 0.0
    %116 = vmatpush2.msra.mxu0 0.0
    %117 = vmatprep.subr.mxu0 0.0
    %118 = vmatpush2.msra.mxu0 0.0
    %119 = vmatprep.subr.mxu0 0.0
    %120 = vmatpush2.msra.mxu0 0.0
    %121 = vmatprep.subr.mxu0 0.0
    %122 = vmatpush2.msra.mxu0 0.0
    %123 = vmatprep.subr.mxu0 0.0
    %124 = vmatpush2.msra.mxu0 0.0
    %125 = vmatprep.subr.mxu0 0.0
    %126 = vmatpush2.msra.mxu0 0.0
    %127 = vmatprep.mubr.f32.mxu0 0.0
    %128 = vmatmul.mubr.f32.gmra.mxu0 %v58
    %v129 = vpop.f32.mrf.mxu0
    %v130 = vadd.f32 %v55, %v129
    %v131 = vpop.f32.mrf.mxu0
    %132 = vmatprep.mubr.f32.mxu0 0.0
    %133 = vmatmul.mubr.f32.gmra.mxu0 %v61
    %v134 = vpop.f32.mrf.mxu0
    %v135 = vadd.f32 %v55, %v134
    %v136 = vpop.f32.mrf.mxu0
    %137 = vdwg.mxu0
    %140 = vrot.lane.b32.xlu0 %v130, 120
    %v141 = vpop.permute.xlu0 %140
    %142 = vrot.lane.b32.xlu0 %v135, 120
    %v143 = vpop.permute.xlu0 %142
    %144 = vrot.lane.b32.xlu0 %v130, 112
    %v145 = vpop.permute.xlu0 %144
    %146 = vrot.lane.b32.xlu0 %v135, 112
    %v147 = vpop.permute.xlu0 %146
    %148 = vrot.lane.b32.xlu0 %v130, 104
    %v149 = vpop.permute.xlu0 %148
    %150 = vrot.lane.b32.xlu0 %v135, 104
    %v151 = vpop.permute.xlu0 %150
    %152 = vrot.lane.b32.xlu0 %v130, 96
    %v153 = vpop.permute.xlu0 %152
    %154 = vrot.lane.b32.xlu0 %v135, 96
    %v155 = vpop.permute.xlu0 %154
    %vm156 = vcmask 64512
    %v157 = vsel %vm156, %v130, 0
    %v159 = vsel %vm156, %v135, 0
    %v161 = vsel %vm156, %v153, 0
    %v163 = vsel %vm156, %v155, 0
    %165 = vmatprep.subr.mxu0 0.0
    %166 = vmatpush1.xpose.msra.mxu0 0.0
    %167 = vmatprep.subr.mxu0 0.0
    %168 = vmatpush1.xpose.msra.mxu0 0.0
    %169 = vmatprep.subr.mxu0 0.0
    %170 = vmatpush1.xpose.msra.mxu0 0.0
    %171 = vmatprep.subr.mxu0 0.0
    %172 = vmatpush1.xpose.msra.mxu0 0.0
    %173 = vmatprep.subr.mxu0 0.0
    %174 = vmatpush1.xpose.msra.mxu0 0.0
    %175 = vmatprep.subr.mxu0 0.0
    %176 = vmatpush1.xpose.msra.mxu0 0.0
    %177 = vmatprep.subr.mxu0 0.0
    %178 = vmatpush1.xpose.msra.mxu0 0.0
    %179 = vmatprep.subr.mxu0 0.0
    %180 = vmatpush1.xpose.msra.mxu0 0.0
    %181 = vmatprep.subr.mxu0 0.0
    %182 = vmatpush1.xpose.msra.mxu0 0.0
    %183 = vmatprep.subr.mxu0 0.0
    %184 = vmatpush1.xpose.msra.mxu0 0.0
    %185 = vmatprep.subr.mxu0 0.0
    %186 = vmatpush1.xpose.msra.mxu0 0.0
    %187 = vmatprep.subr.mxu0 0.0
    %188 = vmatpush1.xpose.msra.mxu0 0.0
    %189 = vmatprep.subr.mxu0 0.0
    %190 = vmatpush1.xpose.msra.mxu0 0.0
    %191 = vmatprep.subr.mxu0 0.0
    %192 = vmatpush1.xpose.msra.mxu0 0.0
    %193 = vmatprep.subr.mxu0 0.0
    %194 = vmatpush1.xpose.msra.mxu0 %v163
    %195 = vmatprep.subr.mxu0 0.0
    %196 = vmatpush1.xpose.msra.mxu0 %v161
    %197 = vmatprep.subr.mxu0 0.0
    %198 = vmatpush2.xpose.msra.mxu0 0.0
    %199 = vmatprep.subr.mxu0 0.0
    %200 = vmatpush2.xpose.msra.mxu0 0.0
    %201 = vmatprep.subr.mxu0 0.0
    %202 = vmatpush2.xpose.msra.mxu0 0.0
    %203 = vmatprep.subr.mxu0 0.0
    %204 = vmatpush2.xpose.msra.mxu0 0.0
    %205 = vmatprep.subr.mxu0 0.0
    %206 = vmatpush2.xpose.msra.mxu0 0.0
    %207 = vmatprep.subr.mxu0 0.0
    %208 = vmatpush2.xpose.msra.mxu0 0.0
    %209 = vmatprep.subr.mxu0 0.0
    %210 = vmatpush2.xpose.msra.mxu0 0.0
    %211 = vmatprep.subr.mxu0 0.0
    %212 = vmatpush2.xpose.msra.mxu0 0.0
    %213 = vmatprep.subr.mxu0 0.0
    %214 = vmatpush2.xpose.msra.mxu0 0.0
    %215 = vmatprep.subr.mxu0 0.0
    %216 = vmatpush2.xpose.msra.mxu0 0.0
    %217 = vmatprep.subr.mxu0 0.0
    %218 = vmatpush2.xpose.msra.mxu0 0.0
    %219 = vmatprep.subr.mxu0 0.0
    %220 = vmatpush2.xpose.msra.mxu0 0.0
    %221 = vmatprep.subr.mxu0 0.0
    %222 = vmatpush2.xpose.msra.mxu0 0.0
    %223 = vmatprep.subr.mxu0 0.0
    %224 = vmatpush2.xpose.msra.mxu0 0.0
    %225 = vmatprep.subr.mxu0 0.0
    %226 = vmatpush2.xpose.msra.mxu0 0.0
    %227 = vmatprep.subr.mxu0 0.0
    %228 = vmatpush2.xpose.msra.mxu0 0.0
    %229 = vmatprep.mubr.f32.mxu0 0.0
    %230 = vmatmul.mubr.f32.gmra.mxu0 %v157
    %v231 = vpop.f32.mrf.mxu0
    %v232 = vadd.f32 %v25, %v231
    %v233 = vpop.f32.mrf.mxu0
    %234 = vmatprep.mubr.f32.mxu0 0.0
    %235 = vmatmul.mubr.f32.gmra.mxu0 %v159
    %v236 = vpop.f32.mrf.mxu0
    %v237 = vadd.f32 %v26, %v236
    %v238 = vpop.f32.mrf.mxu0
    %239 = vdwg.mxu0
    %240 = vrot.lane.b32.xlu0 %v141, 96
    %v241 = vpop.permute.xlu0 %240
    %242 = vrot.lane.b32.xlu0 %v143, 96
    %v243 = vpop.permute.xlu0 %242
    %v244 = vsel %vm156, %v141, 0
    %v246 = vsel %vm156, %v143, 0
    %v248 = vsel %vm156, %v241, 0
    %v250 = vsel %vm156, %v243, 0
    %252 = vmatprep.subr.mxu0 0.0
    %253 = vmatpush1.xpose.msra.mxu0 0.0
    %254 = vmatprep.subr.mxu0 0.0
    %255 = vmatpush1.xpose.msra.mxu0 0.0
    %256 = vmatprep.subr.mxu0 0.0
    %257 = vmatpush1.xpose.msra.mxu0 0.0
    %258 = vmatprep.subr.mxu0 0.0
    %259 = vmatpush1.xpose.msra.mxu0 0.0
    %260 = vmatprep.subr.mxu0 0.0
    %261 = vmatpush1.xpose.msra.mxu0 0.0
    %262 = vmatprep.subr.mxu0 0.0
    %263 = vmatpush1.xpose.msra.mxu0 0.0
    %264 = vmatprep.subr.mxu0 0.0
    %265 = vmatpush1.xpose.msra.mxu0 0.0
    %266 = vmatprep.subr.mxu0 0.0
    %267 = vmatpush1.xpose.msra.mxu0 0.0
    %268 = vmatprep.subr.mxu0 0.0
    %269 = vmatpush1.xpose.msra.mxu0 0.0
    %270 = vmatprep.subr.mxu0 0.0
    %271 = vmatpush1.xpose.msra.mxu0 0.0
    %272 = vmatprep.subr.mxu0 0.0
    %273 = vmatpush1.xpose.msra.mxu0 0.0
    %274 = vmatprep.subr.mxu0 0.0
    %275 = vmatpush1.xpose.msra.mxu0 0.0
    %276 = vmatprep.subr.mxu0 0.0
    %277 = vmatpush1.xpose.msra.mxu0 0.0
    %278 = vmatprep.subr.mxu0 0.0
    %279 = vmatpush1.xpose.msra.mxu0 0.0
    %280 = vmatprep.subr.mxu0 0.0
    %281 = vmatpush1.xpose.msra.mxu0 %v250
    %282 = vmatprep.subr.mxu0 0.0
    %283 = vmatpush1.xpose.msra.mxu0 %v248
    %284 = vmatprep.subr.mxu0 0.0
    %285 = vmatpush2.xpose.msra.mxu0 0.0
    %286 = vmatprep.subr.mxu0 0.0
    %287 = vmatpush2.xpose.msra.mxu0 0.0
    %288 = vmatprep.subr.mxu0 0.0
    %289 = vmatpush2.xpose.msra.mxu0 0.0
    %290 = vmatprep.subr.mxu0 0.0
    %291 = vmatpush2.xpose.msra.mxu0 0.0
    %292 = vmatprep.subr.mxu0 0.0
    %293 = vmatpush2.xpose.msra.mxu0 0.0
    %294 = vmatprep.subr.mxu0 0.0
    %295 = vmatpush2.xpose.msra.mxu0 0.0
    %296 = vmatprep.subr.mxu0 0.0
    %297 = vmatpush2.xpose.msra.mxu0 0.0
    %298 = vmatprep.subr.mxu0 0.0
    %299 = vmatpush2.xpose.msra.mxu0 0.0
    %300 = vmatprep.subr.mxu0 0.0
    %301 = vmatpush2.xpose.msra.mxu0 0.0
    %302 = vmatprep.subr.mxu0 0.0
    %303 = vmatpush2.xpose.msra.mxu0 0.0
    %304 = vmatprep.subr.mxu0 0.0
    %305 = vmatpush2.xpose.msra.mxu0 0.0
    %306 = vmatprep.subr.mxu0 0.0
    %307 = vmatpush2.xpose.msra.mxu0 0.0
    %308 = vmatprep.subr.mxu0 0.0
    %309 = vmatpush2.xpose.msra.mxu0 0.0
    %310 = vmatprep.subr.mxu0 0.0
    %311 = vmatpush2.xpose.msra.mxu0 0.0
    %312 = vmatprep.subr.mxu0 0.0
    %313 = vmatpush2.xpose.msra.mxu0 0.0
    %314 = vmatprep.subr.mxu0 0.0
    %315 = vmatpush2.xpose.msra.mxu0 0.0
    %316 = vmatprep.mubr.f32.mxu0 0.0
    %317 = vmatmul.mubr.f32.gmra.mxu0 %v244
    %v318 = vpop.f32.mrf.mxu0
    %v319 = vadd.f32 %v25, %v318
    %v320 = vpop.f32.mrf.mxu0
    %321 = vmatprep.mubr.f32.mxu0 0.0
    %322 = vmatmul.mubr.f32.gmra.mxu0 %v246
    %v323 = vpop.f32.mrf.mxu0
    %v324 = vadd.f32 %v26, %v323
    %v325 = vpop.f32.mrf.mxu0
    %326 = vdwg.mxu0
    %327 = vrot.lane.b32.xlu0 %v145, 96
    %v328 = vpop.permute.xlu0 %327
    %329 = vrot.lane.b32.xlu0 %v147, 96
    %v330 = vpop.permute.xlu0 %329
    %v331 = vsel %vm156, %v145, 0
    %v333 = vsel %vm156, %v147, 0
    %v335 = vsel %vm156, %v328, 0
    %v337 = vsel %vm156, %v330, 0
    %339 = vmatprep.subr.mxu0 0.0
    %340 = vmatpush1.xpose.msra.mxu0 0.0
    %341 = vmatprep.subr.mxu0 0.0
    %342 = vmatpush1.xpose.msra.mxu0 0.0
    %343 = vmatprep.subr.mxu0 0.0
    %344 = vmatpush1.xpose.msra.mxu0 0.0
    %345 = vmatprep.subr.mxu0 0.0
    %346 = vmatpush1.xpose.msra.mxu0 0.0
    %347 = vmatprep.subr.mxu0 0.0
    %348 = vmatpush1.xpose.msra.mxu0 0.0
    %349 = vmatprep.subr.mxu0 0.0
    %350 = vmatpush1.xpose.msra.mxu0 0.0
    %351 = vmatprep.subr.mxu0 0.0
    %352 = vmatpush1.xpose.msra.mxu0 0.0
    %353 = vmatprep.subr.mxu0 0.0
    %354 = vmatpush1.xpose.msra.mxu0 0.0
    %355 = vmatprep.subr.mxu0 0.0
    %356 = vmatpush1.xpose.msra.mxu0 0.0
    %357 = vmatprep.subr.mxu0 0.0
    %358 = vmatpush1.xpose.msra.mxu0 0.0
    %359 = vmatprep.subr.mxu0 0.0
    %360 = vmatpush1.xpose.msra.mxu0 0.0
    %361 = vmatprep.subr.mxu0 0.0
    %362 = vmatpush1.xpose.msra.mxu0 0.0
    %363 = vmatprep.subr.mxu0 0.0
    %364 = vmatpush1.xpose.msra.mxu0 0.0
    %365 = vmatprep.subr.mxu0 0.0
    %366 = vmatpush1.xpose.msra.mxu0 0.0
    %367 = vmatprep.subr.mxu0 0.0
    %368 = vmatpush1.xpose.msra.mxu0 %v337
    %369 = vmatprep.subr.mxu0 0.0
    %370 = vmatpush1.xpose.msra.mxu0 %v335
    %371 = vmatprep.subr.mxu0 0.0
    %372 = vmatpush2.xpose.msra.mxu0 0.0
    %373 = vmatprep.subr.mxu0 0.0
    %374 = vmatpush2.xpose.msra.mxu0 0.0
    %375 = vmatprep.subr.mxu0 0.0
    %376 = vmatpush2.xpose.msra.mxu0 0.0
    %377 = vmatprep.subr.mxu0 0.0
    %378 = vmatpush2.xpose.msra.mxu0 0.0
    %379 = vmatprep.subr.mxu0 0.0
    %380 = vmatpush2.xpose.msra.mxu0 0.0
    %381 = vmatprep.subr.mxu0 0.0
    %382 = vmatpush2.xpose.msra.mxu0 0.0
    %383 = vmatprep.subr.mxu0 0.0
    %384 = vmatpush2.xpose.msra.mxu0 0.0
    %385 = vmatprep.subr.mxu0 0.0
    %386 = vmatpush2.xpose.msra.mxu0 0.0
    %387 = vmatprep.subr.mxu0 0.0
    %388 = vmatpush2.xpose.msra.mxu0 0.0
    %389 = vmatprep.subr.mxu0 0.0
    %390 = vmatpush2.xpose.msra.mxu0 0.0
    %391 = vmatprep.subr.mxu0 0.0
    %392 = vmatpush2.xpose.msra.mxu0 0.0
    %393 = vmatprep.subr.mxu0 0.0
    %394 = vmatpush2.xpose.msra.mxu0 0.0
    %395 = vmatprep.subr.mxu0 0.0
    %396 = vmatpush2.xpose.msra.mxu0 0.0
    %397 = vmatprep.subr.mxu0 0.0
    %398 = vmatpush2.xpose.msra.mxu0 0.0
    %399 = vmatprep.subr.mxu0 0.0
    %400 = vmatpush2.xpose.msra.mxu0 0.0
    %401 = vmatprep.subr.mxu0 0.0
    %402 = vmatpush2.xpose.msra.mxu0 0.0
    %403 = vmatprep.mubr.f32.mxu0 0.0
    %404 = vmatmul.mubr.f32.gmra.mxu0 %v331
    %v405 = vpop.f32.mrf.mxu0
    %v406 = vadd.f32 %v25, %v405
    %v407 = vpop.f32.mrf.mxu0
    %408 = vmatprep.mubr.f32.mxu0 0.0
    %409 = vmatmul.mubr.f32.gmra.mxu0 %v333
    %v410 = vpop.f32.mrf.mxu0
    %v411 = vadd.f32 %v26, %v410
    %v412 = vpop.f32.mrf.mxu0
    %413 = vdwg.mxu0
    %414 = vrot.lane.b32.xlu0 %v149, 96
    %v415 = vpop.permute.xlu0 %414
    %416 = vrot.lane.b32.xlu0 %v151, 96
    %v417 = vpop.permute.xlu0 %416
    %v418 = vsel %vm156, %v149, 0
    %v420 = vsel %vm156, %v151, 0
    %v422 = vsel %vm156, %v415, 0
    %v424 = vsel %vm156, %v417, 0
    %426 = vmatprep.subr.mxu0 0.0
    %427 = vmatpush1.xpose.msra.mxu0 0.0
    %428 = vmatprep.subr.mxu0 0.0
    %429 = vmatpush1.xpose.msra.mxu0 0.0
    %430 = vmatprep.subr.mxu0 0.0
    %431 = vmatpush1.xpose.msra.mxu0 0.0
    %432 = vmatprep.subr.mxu0 0.0
    %433 = vmatpush1.xpose.msra.mxu0 0.0
    %434 = vmatprep.subr.mxu0 0.0
    %435 = vmatpush1.xpose.msra.mxu0 0.0
    %436 = vmatprep.subr.mxu0 0.0
    %437 = vmatpush1.xpose.msra.mxu0 0.0
    %438 = vmatprep.subr.mxu0 0.0
    %439 = vmatpush1.xpose.msra.mxu0 0.0
    %440 = vmatprep.subr.mxu0 0.0
    %441 = vmatpush1.xpose.msra.mxu0 0.0
    %442 = vmatprep.subr.mxu0 0.0
    %443 = vmatpush1.xpose.msra.mxu0 0.0
    %444 = vmatprep.subr.mxu0 0.0
    %445 = vmatpush1.xpose.msra.mxu0 0.0
    %446 = vmatprep.subr.mxu0 0.0
    %447 = vmatpush1.xpose.msra.mxu0 0.0
    %448 = vmatprep.subr.mxu0 0.0
    %449 = vmatpush1.xpose.msra.mxu0 0.0
    %450 = vmatprep.subr.mxu0 0.0
    %451 = vmatpush1.xpose.msra.mxu0 0.0
    %452 = vmatprep.subr.mxu0 0.0
    %453 = vmatpush1.xpose.msra.mxu0 0.0
    %454 = vmatprep.subr.mxu0 0.0
    %455 = vmatpush1.xpose.msra.mxu0 %v424
    %456 = vmatprep.subr.mxu0 0.0
    %457 = vmatpush1.xpose.msra.mxu0 %v422
    %458 = vmatprep.subr.mxu0 0.0
    %459 = vmatpush2.xpose.msra.mxu0 0.0
    %460 = vmatprep.subr.mxu0 0.0
    %461 = vmatpush2.xpose.msra.mxu0 0.0
    %462 = vmatprep.subr.mxu0 0.0
    %463 = vmatpush2.xpose.msra.mxu0 0.0
    %464 = vmatprep.subr.mxu0 0.0
    %465 = vmatpush2.xpose.msra.mxu0 0.0
    %466 = vmatprep.subr.mxu0 0.0
    %467 = vmatpush2.xpose.msra.mxu0 0.0
    %468 = vmatprep.subr.mxu0 0.0
    %469 = vmatpush2.xpose.msra.mxu0 0.0
    %470 = vmatprep.subr.mxu0 0.0
    %471 = vmatpush2.xpose.msra.mxu0 0.0
    %472 = vmatprep.subr.mxu0 0.0
    %473 = vmatpush2.xpose.msra.mxu0 0.0
    %474 = vmatprep.subr.mxu0 0.0
    %475 = vmatpush2.xpose.msra.mxu0 0.0
    %476 = vmatprep.subr.mxu0 0.0
    %477 = vmatpush2.xpose.msra.mxu0 0.0
    %478 = vmatprep.subr.mxu0 0.0
    %479 = vmatpush2.xpose.msra.mxu0 0.0
    %480 = vmatprep.subr.mxu0 0.0
    %481 = vmatpush2.xpose.msra.mxu0 0.0
    %482 = vmatprep.subr.mxu0 0.0
    %483 = vmatpush2.xpose.msra.mxu0 0.0
    %484 = vmatprep.subr.mxu0 0.0
    %485 = vmatpush2.xpose.msra.mxu0 0.0
    %486 = vmatprep.subr.mxu0 0.0
    %487 = vmatpush2.xpose.msra.mxu0 0.0
    %488 = vmatprep.subr.mxu0 0.0
    %489 = vmatpush2.xpose.msra.mxu0 0.0
    %490 = vmatprep.mubr.f32.mxu0 0.0
    %491 = vmatmul.mubr.f32.gmra.mxu0 %v418
    %v492 = vpop.f32.mrf.mxu0
    %v493 = vadd.f32 %v25, %v492
    %v494 = vpop.f32.mrf.mxu0
    %495 = vmatprep.mubr.f32.mxu0 0.0
    %496 = vmatmul.mubr.f32.gmra.mxu0 %v420
    %v497 = vpop.f32.mrf.mxu0
    %v498 = vadd.f32 %v26, %v497
    %v499 = vpop.f32.mrf.mxu0
    %500 = vdwg.mxu0
    %vm501 = vcmask 130048
    %v502 = vsel %vm501, %v232, -inf
    %503 = vmax.xlane.f32.xlu0 %v502
    %v504 = vpop.xlane.xlu0 %503
    %v505 = vsel %vm501, %v237, -inf
    %506 = vmax.xlane.f32.xlu0 %v505
    %v507 = vpop.xlane.xlu0 %506
    %v508 = vsel %vm501, %v319, -inf
    %509 = vmax.xlane.f32.xlu0 %v508
    %v510 = vpop.xlane.xlu0 %509
    %v511 = vsel %vm501, %v324, -inf
    %512 = vmax.xlane.f32.xlu0 %v511
    %v513 = vpop.xlane.xlu0 %512
    %v514 = vsel %vm501, %v406, -inf
    %515 = vmax.xlane.f32.xlu0 %v514
    %v516 = vpop.xlane.xlu0 %515
    %v517 = vsel %vm501, %v411, -inf
    %518 = vmax.xlane.f32.xlu0 %v517
    %v519 = vpop.xlane.xlu0 %518
    %v520 = vsel %vm501, %v493, -inf
    %521 = vmax.xlane.f32.xlu0 %v520
    %v522 = vpop.xlane.xlu0 %521
    %v523 = vsel %vm501, %v498, -inf
    %524 = vmax.xlane.f32.xlu0 %v523
    %v525 = vpop.xlane.xlu0 %524
    %v526 = vsub.f32 %v232, %v504
    %v527 = vsub.f32 %v237, %v507
    %v528 = vsub.f32 %v319, %v510
    %v529 = vsub.f32 %v324, %v513
    %v530 = vsub.f32 %v406, %v516
    %v531 = vsub.f32 %v411, %v519
    %v532 = vsub.f32 %v493, %v522
    %v533 = vsub.f32 %v498, %v525
    %v534 = vmul.f32 %v526, 1.442695
    %v535 = vpow.pop %v534
    %v536 = vmul.f32 %v527, 1.442695
    %v537 = vpow.pop %v536
    %v538 = vmul.f32 %v528, 1.442695
    %v539 = vpow.pop %v538
    %v540 = vmul.f32 %v529, 1.442695
    %v541 = vpow.pop %v540
    %v542 = vmul.f32 %v530, 1.442695
    %v543 = vpow.pop %v542
    %v544 = vmul.f32 %v531, 1.442695
    %v545 = vpow.pop %v544
    %v546 = vmul.f32 %v532, 1.442695
    %v547 = vpow.pop %v546
    %v548 = vmul.f32 %v533, 1.442695
    %v549 = vpow.pop %v548
    %v550 = vsel %vm501, %v535, 0.0
    %551 = vadd.xlane.f32.xlu0 %v550
    %v552 = vpop.xlane.xlu0 %551
    %v553 = vsel %vm501, %v537, 0.0
    %554 = vadd.xlane.f32.xlu0 %v553
    %v555 = vpop.xlane.xlu0 %554
    %v556 = vsel %vm501, %v539, 0.0
    %557 = vadd.xlane.f32.xlu0 %v556
    %v558 = vpop.xlane.xlu0 %557
    %v559 = vsel %vm501, %v541, 0.0
    %560 = vadd.xlane.f32.xlu0 %v559
    %v561 = vpop.xlane.xlu0 %560
    %v562 = vsel %vm501, %v543, 0.0
    %563 = vadd.xlane.f32.xlu0 %v562
    %v564 = vpop.xlane.xlu0 %563
    %v565 = vsel %vm501, %v545, 0.0
    %566 = vadd.xlane.f32.xlu0 %v565
    %v567 = vpop.xlane.xlu0 %566
    %v568 = vsel %vm501, %v547, 0.0
    %569 = vadd.xlane.f32.xlu0 %v568
    %v570 = vpop.xlane.xlu0 %569
    %v571 = vsel %vm501, %v549, 0.0
    %572 = vadd.xlane.f32.xlu0 %v571
    %v573 = vpop.xlane.xlu0 %572
    %v574 = vrcp.pop %v552
    %v575 = vmul.f32 %v535, %v574
    %v576 = vrcp.pop %v555
    %v577 = vmul.f32 %v537, %v576
    %v578 = vrcp.pop %v558
    %v579 = vmul.f32 %v539, %v578
    %v580 = vrcp.pop %v561
    %v581 = vmul.f32 %v541, %v580
    %v582 = vrcp.pop %v564
    %v583 = vmul.f32 %v543, %v582
    %v584 = vrcp.pop %v567
    %v585 = vmul.f32 %v545, %v584
    %v586 = vrcp.pop %v570
    %v587 = vmul.f32 %v547, %v586
    %v588 = vrcp.pop %v573
    %v589 = vmul.f32 %v549, %v588
    %590 = vrot.lane.b32.xlu0 %v130, 64
    %v591 = vpop.permute.xlu0 %590
    %592 = vrot.lane.b32.xlu0 %v135, 64
    %v593 = vpop.permute.xlu0 %592
    %v597 = vsel %vm501, %v575, 0
    %v600 = vsel %vm501, %v577, 0
    %602 = vmatprep.subr.mxu0 0.0
    %603 = vmatpush1.msra.mxu0 0.0
    %604 = vmatprep.subr.mxu0 0.0
    %605 = vmatpush1.msra.mxu0 0.0
    %606 = vmatprep.subr.mxu0 0.0
    %607 = vmatpush1.msra.mxu0 0.0
    %608 = vmatprep.subr.mxu0 0.0
    %609 = vmatpush1.msra.mxu0 0.0
    %610 = vmatprep.subr.mxu0 0.0
    %611 = vmatpush1.msra.mxu0 0.0
    %612 = vmatprep.subr.mxu0 0.0
    %613 = vmatpush1.msra.mxu0 0.0
    %614 = vmatprep.subr.mxu0 0.0
    %615 = vmatpush1.msra.mxu0 0.0
    %616 = vmatprep.subr.mxu0 0.0
    %617 = vmatpush1.msra.mxu0 0.0
    %618 = vmatprep.subr.mxu0 0.0
    %619 = vmatpush1.msra.mxu0 0.0
    %620 = vmatprep.subr.mxu0 0.0
    %621 = vmatpush1.msra.mxu0 0.0
    %622 = vmatprep.subr.mxu0 0.0
    %623 = vmatpush1.msra.mxu0 0.0
    %624 = vmatprep.subr.mxu0 0.0
    %625 = vmatpush1.msra.mxu0 0.0
    %626 = vmatprep.subr.mxu0 0.0
    %627 = vmatpush1.msra.mxu0 0.0
    %628 = vmatprep.subr.mxu0 0.0
    %629 = vmatpush1.msra.mxu0 0.0
    %630 = vmatprep.subr.mxu0 0.0
    %631 = vmatpush1.msra.mxu0 %v593
    %632 = vmatprep.subr.mxu0 0.0
    %633 = vmatpush1.msra.mxu0 %v591
    %634 = vmatprep.subr.mxu0 0.0
    %635 = vmatpush2.msra.mxu0 0.0
    %636 = vmatprep.subr.mxu0 0.0
    %637 = vmatpush2.msra.mxu0 0.0
    %638 = vmatprep.subr.mxu0 0.0
    %639 = vmatpush2.msra.mxu0 0.0
    %640 = vmatprep.subr.mxu0 0.0
    %641 = vmatpush2.msra.mxu0 0.0
    %642 = vmatprep.subr.mxu0 0.0
    %643 = vmatpush2.msra.mxu0 0.0
    %644 = vmatprep.subr.mxu0 0.0
    %645 = vmatpush2.msra.mxu0 0.0
    %646 = vmatprep.subr.mxu0 0.0
    %647 = vmatpush2.msra.mxu0 0.0
    %648 = vmatprep.subr.mxu0 0.0
    %649 = vmatpush2.msra.mxu0 0.0
    %650 = vmatprep.subr.mxu0 0.0
    %651 = vmatpush2.msra.mxu0 0.0
    %652 = vmatprep.subr.mxu0 0.0
    %653 = vmatpush2.msra.mxu0 0.0
    %654 = vmatprep.subr.mxu0 0.0
    %655 = vmatpush2.msra.mxu0 0.0
    %656 = vmatprep.subr.mxu0 0.0
    %657 = vmatpush2.msra.mxu0 0.0
    %658 = vmatprep.subr.mxu0 0.0
    %659 = vmatpush2.msra.mxu0 0.0
    %660 = vmatprep.subr.mxu0 0.0
    %661 = vmatpush2.msra.mxu0 0.0
    %662 = vmatprep.subr.mxu0 0.0
    %663 = vmatpush2.msra.mxu0 0.0
    %664 = vmatprep.subr.mxu0 0.0
    %665 = vmatpush2.msra.mxu0 0.0
    %666 = vmatprep.mubr.f32.mxu0 0.0
    %667 = vmatmul.mubr.f32.gmra.mxu0 %v597
    %v668 = vpop.f32.mrf.mxu0
    %v669 = vadd.f32 0.0, %v668
    %v670 = vpop.f32.mrf.mxu0
    %671 = vmatprep.mubr.f32.mxu0 0.0
    %672 = vmatmul.mubr.f32.gmra.mxu0 %v600
    %v673 = vpop.f32.mrf.mxu0
    %v674 = vadd.f32 0.0, %v673
    %v675 = vpop.f32.mrf.mxu0
    %676 = vdwg.mxu0
    %677 = vrot.lane.b32.xlu0 %v141, 64
    %v678 = vpop.permute.xlu0 %677
    %679 = vrot.lane.b32.xlu0 %v143, 64
    %v680 = vpop.permute.xlu0 %679
    %v684 = vsel %vm501, %v579, 0
    %v687 = vsel %vm501, %v581, 0
    %689 = vmatprep.subr.mxu0 0.0
    %690 = vmatpush1.msra.mxu0 0.0
    %691 = vmatprep.subr.mxu0 0.0
    %692 = vmatpush1.msra.mxu0 0.0
    %693 = vmatprep.subr.mxu0 0.0
    %694 = vmatpush1.msra.mxu0 0.0
    %695 = vmatprep.subr.mxu0 0.0
    %696 = vmatpush1.msra.mxu0 0.0
    %697 = vmatprep.subr.mxu0 0.0
    %698 = vmatpush1.msra.mxu0 0.0
    %699 = vmatprep.subr.mxu0 0.0
    %700 = vmatpush1.msra.mxu0 0.0
    %701 = vmatprep.subr.mxu0 0.0
    %702 = vmatpush1.msra.mxu0 0.0
    %703 = vmatprep.subr.mxu0 0.0
    %704 = vmatpush1.msra.mxu0 0.0
    %705 = vmatprep.subr.mxu0 0.0
    %706 = vmatpush1.msra.mxu0 0.0
    %707 = vmatprep.subr.mxu0 0.0
    %708 = vmatpush1.msra.mxu0 0.0
    %709 = vmatprep.subr.mxu0 0.0
    %710 = vmatpush1.msra.mxu0 0.0
    %711 = vmatprep.subr.mxu0 0.0
    %712 = vmatpush1.msra.mxu0 0.0
    %713 = vmatprep.subr.mxu0 0.0
    %714 = vmatpush1.msra.mxu0 0.0
    %715 = vmatprep.subr.mxu0 0.0
    %716 = vmatpush1.msra.mxu0 0.0
    %717 = vmatprep.subr.mxu0 0.0
    %718 = vmatpush1.msra.mxu0 %v680
    %719 = vmatprep.subr.mxu0 0.0
    %720 = vmatpush1.msra.mxu0 %v678
    %721 = vmatprep.subr.mxu0 0.0
    %722 = vmatpush2.msra.mxu0 0.0
    %723 = vmatprep.subr.mxu0 0.0
    %724 = vmatpush2.msra.mxu0 0.0
    %725 = vmatprep.subr.mxu0 0.0
    %726 = vmatpush2.msra.mxu0 0.0
    %727 = vmatprep.subr.mxu0 0.0
    %728 = vmatpush2.msra.mxu0 0.0
    %729 = vmatprep.subr.mxu0 0.0
    %730 = vmatpush2.msra.mxu0 0.0
    %731 = vmatprep.subr.mxu0 0.0
    %732 = vmatpush2.msra.mxu0 0.0
    %733 = vmatprep.subr.mxu0 0.0
    %734 = vmatpush2.msra.mxu0 0.0
    %735 = vmatprep.subr.mxu0 0.0
    %736 = vmatpush2.msra.mxu0 0.0
    %737 = vmatprep.subr.mxu0 0.0
    %738 = vmatpush2.msra.mxu0 0.0
    %739 = vmatprep.subr.mxu0 0.0
    %740 = vmatpush2.msra.mxu0 0.0
    %741 = vmatprep.subr.mxu0 0.0
    %742 = vmatpush2.msra.mxu0 0.0
    %743 = vmatprep.subr.mxu0 0.0
    %744 = vmatpush2.msra.mxu0 0.0
    %745 = vmatprep.subr.mxu0 0.0
    %746 = vmatpush2.msra.mxu0 0.0
    %747 = vmatprep.subr.mxu0 0.0
    %748 = vmatpush2.msra.mxu0 0.0
    %749 = vmatprep.subr.mxu0 0.0
    %750 = vmatpush2.msra.mxu0 0.0
    %751 = vmatprep.subr.mxu0 0.0
    %752 = vmatpush2.msra.mxu0 0.0
    %753 = vmatprep.mubr.f32.mxu0 0.0
    %754 = vmatmul.mubr.f32.gmra.mxu0 %v684
    %v755 = vpop.f32.mrf.mxu0
    %v756 = vadd.f32 0.0, %v755
    %v757 = vpop.f32.mrf.mxu0
    %758 = vmatprep.mubr.f32.mxu0 0.0
    %759 = vmatmul.mubr.f32.gmra.mxu0 %v687
    %v760 = vpop.f32.mrf.mxu0
    %v761 = vadd.f32 0.0, %v760
    %v762 = vpop.f32.mrf.mxu0
    %763 = vdwg.mxu0
    %764 = vrot.lane.b32.xlu0 %v145, 64
    %v765 = vpop.permute.xlu0 %764
    %766 = vrot.lane.b32.xlu0 %v147, 64
    %v767 = vpop.permute.xlu0 %766
    %v771 = vsel %vm501, %v583, 0
    %v774 = vsel %vm501, %v585, 0
    %776 = vmatprep.subr.mxu0 0.0
    %777 = vmatpush1.msra.mxu0 0.0
    %778 = vmatprep.subr.mxu0 0.0
    %779 = vmatpush1.msra.mxu0 0.0
    %780 = vmatprep.subr.mxu0 0.0
    %781 = vmatpush1.msra.mxu0 0.0
    %782 = vmatprep.subr.mxu0 0.0
    %783 = vmatpush1.msra.mxu0 0.0
    %784 = vmatprep.subr.mxu0 0.0
    %785 = vmatpush1.msra.mxu0 0.0
    %786 = vmatprep.subr.mxu0 0.0
    %787 = vmatpush1.msra.mxu0 0.0
    %788 = vmatprep.subr.mxu0 0.0
    %789 = vmatpush1.msra.mxu0 0.0
    %790 = vmatprep.subr.mxu0 0.0
    %791 = vmatpush1.msra.mxu0 0.0
    %792 = vmatprep.subr.mxu0 0.0
    %793 = vmatpush1.msra.mxu0 0.0
    %794 = vmatprep.subr.mxu0 0.0
    %795 = vmatpush1.msra.mxu0 0.0
    %796 = vmatprep.subr.mxu0 0.0
    %797 = vmatpush1.msra.mxu0 0.0
    %798 = vmatprep.subr.mxu0 0.0
    %799 = vmatpush1.msra.mxu0 0.0
    %800 = vmatprep.subr.mxu0 0.0
    %801 = vmatpush1.msra.mxu0 0.0
    %802 = vmatprep.subr.mxu0 0.0
    %803 = vmatpush1.msra.mxu0 0.0
    %804 = vmatprep.subr.mxu0 0.0
    %805 = vmatpush1.msra.mxu0 %v767
    %806 = vmatprep.subr.mxu0 0.0
    %807 = vmatpush1.msra.mxu0 %v765
    %808 = vmatprep.subr.mxu0 0.0
    %809 = vmatpush2.msra.mxu0 0.0
    %810 = vmatprep.subr.mxu0 0.0
    %811 = vmatpush2.msra.mxu0 0.0
    %812 = vmatprep.subr.mxu0 0.0
    %813 = vmatpush2.msra.mxu0 0.0
    %814 = vmatprep.subr.mxu0 0.0
    %815 = vmatpush2.msra.mxu0 0.0
    %816 = vmatprep.subr.mxu0 0.0
    %817 = vmatpush2.msra.mxu0 0.0
    %818 = vmatprep.subr.mxu0 0.0
    %819 = vmatpush2.msra.mxu0 0.0
    %820 = vmatprep.subr.mxu0 0.0
    %821 = vmatpush2.msra.mxu0 0.0
    %822 = vmatprep.subr.mxu0 0.0
    %823 = vmatpush2.msra.mxu0 0.0
    %824 = vmatprep.subr.mxu0 0.0
    %825 = vmatpush2.msra.mxu0 0.0
    %826 = vmatprep.subr.mxu0 0.0
    %827 = vmatpush2.msra.mxu0 0.0
    %828 = vmatprep.subr.mxu0 0.0
    %829 = vmatpush2.msra.mxu0 0.0
    %830 = vmatprep.subr.mxu0 0.0
    %831 = vmatpush2.msra.mxu0 0.0
    %832 = vmatprep.subr.mxu0 0.0
    %833 = vmatpush2.msra.mxu0 0.0
    %834 = vmatprep.subr.mxu0 0.0
    %835 = vmatpush2.msra.mxu0 0.0
    %836 = vmatprep.subr.mxu0 0.0
    %837 = vmatpush2.msra.mxu0 0.0
    %838 = vmatprep.subr.mxu0 0.0
    %839 = vmatpush2.msra.mxu0 0.0
    %840 = vmatprep.mubr.f32.mxu0 0.0
    %841 = vmatmul.mubr.f32.gmra.mxu0 %v771
    %v842 = vpop.f32.mrf.mxu0
    %v843 = vadd.f32 0.0, %v842
    %v844 = vpop.f32.mrf.mxu0
    %845 = vmatprep.mubr.f32.mxu0 0.0
    %846 = vmatmul.mubr.f32.gmra.mxu0 %v774
    %v847 = vpop.f32.mrf.mxu0
    %v848 = vadd.f32 0.0, %v847
    %v849 = vpop.f32.mrf.mxu0
    %850 = vdwg.mxu0
    %851 = vrot.lane.b32.xlu0 %v149, 64
    %v852 = vpop.permute.xlu0 %851
    %853 = vrot.lane.b32.xlu0 %v151, 64
    %v854 = vpop.permute.xlu0 %853
    %v858 = vsel %vm501, %v587, 0
    %v861 = vsel %vm501, %v589, 0
    %863 = vmatprep.subr.mxu0 0.0
    %864 = vmatpush1.msra.mxu0 0.0
    %865 = vmatprep.subr.mxu0 0.0
    %866 = vmatpush1.msra.mxu0 0.0
    %867 = vmatprep.subr.mxu0 0.0
    %868 = vmatpush1.msra.mxu0 0.0
    %869 = vmatprep.subr.mxu0 0.0
    %870 = vmatpush1.msra.mxu0 0.0
    %871 = vmatprep.subr.mxu0 0.0
    %872 = vmatpush1.msra.mxu0 0.0
    %873 = vmatprep.subr.mxu0 0.0
    %874 = vmatpush1.msra.mxu0 0.0
    %875 = vmatprep.subr.mxu0 0.0
    %876 = vmatpush1.msra.mxu0 0.0
    %877 = vmatprep.subr.mxu0 0.0
    %878 = vmatpush1.msra.mxu0 0.0
    %879 = vmatprep.subr.mxu0 0.0
    %880 = vmatpush1.msra.mxu0 0.0
    %881 = vmatprep.subr.mxu0 0.0
    %882 = vmatpush1.msra.mxu0 0.0
    %883 = vmatprep.subr.mxu0 0.0
    %884 = vmatpush1.msra.mxu0 0.0
    %885 = vmatprep.subr.mxu0 0.0
    %886 = vmatpush1.msra.mxu0 0.0
    %887 = vmatprep.subr.mxu0 0.0
    %888 = vmatpush1.msra.mxu0 0.0
    %889 = vmatprep.subr.mxu0 0.0
    %890 = vmatpush1.msra.mxu0 0.0
    %891 = vmatprep.subr.mxu0 0.0
    %892 = vmatpush1.msra.mxu0 %v854
    %893 = vmatprep.subr.mxu0 0.0
    %894 = vmatpush1.msra.mxu0 %v852
    %895 = vmatprep.subr.mxu0 0.0
    %896 = vmatpush2.msra.mxu0 0.0
    %897 = vmatprep.subr.mxu0 0.0
    %898 = vmatpush2.msra.mxu0 0.0
    %899 = vmatprep.subr.mxu0 0.0
    %900 = vmatpush2.msra.mxu0 0.0
    %901 = vmatprep.subr.mxu0 0.0
    %902 = vmatpush2.msra.mxu0 0.0
    %903 = vmatprep.subr.mxu0 0.0
    %904 = vmatpush2.msra.mxu0 0.0
    %905 = vmatprep.subr.mxu0 0.0
    %906 = vmatpush2.msra.mxu0 0.0
    %907 = vmatprep.subr.mxu0 0.0
    %908 = vmatpush2.msra.mxu0 0.0
    %909 = vmatprep.subr.mxu0 0.0
    %910 = vmatpush2.msra.mxu0 0.0
    %911 = vmatprep.subr.mxu0 0.0
    %912 = vmatpush2.msra.mxu0 0.0
    %913 = vmatprep.subr.mxu0 0.0
    %914 = vmatpush2.msra.mxu0 0.0
    %915 = vmatprep.subr.mxu0 0.0
    %916 = vmatpush2.msra.mxu0 0.0
    %917 = vmatprep.subr.mxu0 0.0
    %918 = vmatpush2.msra.mxu0 0.0
    %919 = vmatprep.subr.mxu0 0.0
    %920 = vmatpush2.msra.mxu0 0.0
    %921 = vmatprep.subr.mxu0 0.0
    %922 = vmatpush2.msra.mxu0 0.0
    %923 = vmatprep.subr.mxu0 0.0
    %924 = vmatpush2.msra.mxu0 0.0
    %925 = vmatprep.subr.mxu0 0.0
    %926 = vmatpush2.msra.mxu0 0.0
    %927 = vmatprep.mubr.f32.mxu0 0.0
    %928 = vmatmul.mubr.f32.gmra.mxu0 %v858
    %v929 = vpop.f32.mrf.mxu0
    %v930 = vadd.f32 0.0, %v929
    %v931 = vpop.f32.mrf.mxu0
    %932 = vmatprep.mubr.f32.mxu0 0.0
    %933 = vmatmul.mubr.f32.gmra.mxu0 %v861
    %v934 = vpop.f32.mrf.mxu0
    %v935 = vadd.f32 0.0, %v934
    %v936 = vpop.f32.mrf.mxu0
    %937 = vdwg.mxu0
    %940 = vrot.lane.b32.xlu0 %v756, 8
    %v941 = vpop.permute.xlu0 %940
    %942 = vrot.lane.b32.xlu0 %v761, 8
    %v943 = vpop.permute.xlu0 %942
    %948 = vrot.lane.b32.xlu0 %v843, 16
    %v949 = vpop.permute.xlu0 %948
    %950 = vrot.lane.b32.xlu0 %v848, 16
    %v951 = vpop.permute.xlu0 %950
    %956 = vrot.lane.b32.xlu0 %v930, 24
    %v957 = vpop.permute.xlu0 %956
    %958 = vrot.lane.b32.xlu0 %v935, 24
    %v959 = vpop.permute.xlu0 %958
    %v962 = vsel %vm156, %v669, %v941
    %v963 = vsel %vm156, %v674, %v943
    %v964 = vsel %vm501, %v962, %v949
    %v965 = vsel %vm501, %v963, %v951
    %vm966 = vcmask 195584
    %v967 = vsel %vm966, %v964, %v957
    %v968 = vsel %vm966, %v965, %v959
    %973 = vrot.lane.b32.xlu0 %v29, 32
    %v974 = vpop.permute.xlu0 %973
    %975 = vrot.lane.b32.xlu0 %v32, 32
    %v976 = vpop.permute.xlu0 %975
    %977 = vrot.lane.b32.xlu0 %v35, 32
    %v978 = vpop.permute.xlu0 %977
    %979 = vrot.lane.b32.xlu0 %v38, 32
    %v980 = vpop.permute.xlu0 %979
    %986 = vrot.lane.b32.xlu0 %v55, 32
    %v987 = vpop.permute.xlu0 %986
    %v990 = vsel %vm56, %v967, 0
    %v993 = vsel %vm56, %v968, 0
    %995 = vmatprep.subr.mxu0 0.0
    %996 = vmatpush1.msra.mxu0 0.0
    %997 = vmatprep.subr.mxu0 0.0
    %998 = vmatpush1.msra.mxu0 0.0
    %999 = vmatprep.subr.mxu0 0.0
    %1000 = vmatpush1.msra.mxu0 0.0
    %1001 = vmatprep.subr.mxu0 0.0
    %1002 = vmatpush1.msra.mxu0 0.0
    %1003 = vmatprep.subr.mxu0 0.0
    %1004 = vmatpush1.msra.mxu0 0.0
    %1005 = vmatprep.subr.mxu0 0.0
    %1006 = vmatpush1.msra.mxu0 0.0
    %1007 = vmatprep.subr.mxu0 0.0
    %1008 = vmatpush1.msra.mxu0 0.0
    %1009 = vmatprep.subr.mxu0 0.0
    %1010 = vmatpush1.msra.mxu0 0.0
    %1011 = vmatprep.subr.mxu0 0.0
    %1012 = vmatpush1.msra.mxu0 0.0
    %1013 = vmatprep.subr.mxu0 0.0
    %1014 = vmatpush1.msra.mxu0 0.0
    %1015 = vmatprep.subr.mxu0 0.0
    %1016 = vmatpush1.msra.mxu0 0.0
    %1017 = vmatprep.subr.mxu0 0.0
    %1018 = vmatpush1.msra.mxu0 0.0
    %1019 = vmatprep.subr.mxu0 0.0
    %1020 = vmatpush1.msra.mxu0 %v980
    %1021 = vmatprep.subr.mxu0 0.0
    %1022 = vmatpush1.msra.mxu0 %v978
    %1023 = vmatprep.subr.mxu0 0.0
    %1024 = vmatpush1.msra.mxu0 %v976
    %1025 = vmatprep.subr.mxu0 0.0
    %1026 = vmatpush1.msra.mxu0 %v974
    %1027 = vmatprep.subr.mxu0 0.0
    %1028 = vmatpush2.msra.mxu0 0.0
    %1029 = vmatprep.subr.mxu0 0.0
    %1030 = vmatpush2.msra.mxu0 0.0
    %1031 = vmatprep.subr.mxu0 0.0
    %1032 = vmatpush2.msra.mxu0 0.0
    %1033 = vmatprep.subr.mxu0 0.0
    %1034 = vmatpush2.msra.mxu0 0.0
    %1035 = vmatprep.subr.mxu0 0.0
    %1036 = vmatpush2.msra.mxu0 0.0
    %1037 = vmatprep.subr.mxu0 0.0
    %1038 = vmatpush2.msra.mxu0 0.0
    %1039 = vmatprep.subr.mxu0 0.0
    %1040 = vmatpush2.msra.mxu0 0.0
    %1041 = vmatprep.subr.mxu0 0.0
    %1042 = vmatpush2.msra.mxu0 0.0
    %1043 = vmatprep.subr.mxu0 0.0
    %1044 = vmatpush2.msra.mxu0 0.0
    %1045 = vmatprep.subr.mxu0 0.0
    %1046 = vmatpush2.msra.mxu0 0.0
    %1047 = vmatprep.subr.mxu0 0.0
    %1048 = vmatpush2.msra.mxu0 0.0
    %1049 = vmatprep.subr.mxu0 0.0
    %1050 = vmatpush2.msra.mxu0 0.0
    %1051 = vmatprep.subr.mxu0 0.0
    %1052 = vmatpush2.msra.mxu0 0.0
    %1053 = vmatprep.subr.mxu0 0.0
    %1054 = vmatpush2.msra.mxu0 0.0
    %1055 = vmatprep.subr.mxu0 0.0
    %1056 = vmatpush2.msra.mxu0 0.0
    %1057 = vmatprep.subr.mxu0 0.0
    %1058 = vmatpush2.msra.mxu0 0.0
    %1059 = vmatprep.mubr.f32.mxu0 0.0
    %1060 = vmatmul.mubr.f32.gmra.mxu0 %v990
    %v1061 = vpop.f32.mrf.mxu0
    %v1062 = vadd.f32 %v987, %v1061
    %v1063 = vpop.f32.mrf.mxu0
    %1064 = vmatprep.mubr.f32.mxu0 0.0
    %1065 = vmatmul.mubr.f32.gmra.mxu0 %v993
    %v1066 = vpop.f32.mrf.mxu0
    %v1067 = vadd.f32 %v987, %v1066
    %v1068 = vpop.f32.mrf.mxu0
    %1069 = vdwg.mxu0
    %v1070 = vadd.f32 %v21, %v1062
    %v1071 = vadd.f32 %v22, %v1067
    %v1072 = vmul.f32 %v1070, %v1070
    %v1073 = vmul.f32 %v1071, %v1071
    %v1074 = vsel %vm56, %v1070, 0.0
    %1075 = vadd.xlane.f32.xlu0 %v1074
    %v1076 = vpop.xlane.xlu0 %1075
    %v1077 = vsel %vm56, %v1071, 0.0
    %1078 = vadd.xlane.f32.xlu0 %v1077
    %v1079 = vpop.xlane.xlu0 %1078
    %v1080 = vsel %vm56, %v1072, 0.0
    %1081 = vadd.xlane.f32.xlu0 %v1080
    %v1082 = vpop.xlane.xlu0 %1081
    %v1083 = vsel %vm56, %v1073, 0.0
    %1084 = vadd.xlane.f32.xlu0 %v1083
    %v1085 = vpop.xlane.xlu0 %1084
    %v1086 = vmul.f32 %v1076, 0.03125
    %v1087 = vmul.f32 %v1079, 0.03125
    %v1088 = vmul.f32 %v1082, 0.03125
    %v1089 = vmul.f32 %v1085, 0.03125
    %v1090 = vmul.f32 %v1086, %v1086
    %v1091 = vmul.f32 %v1087, %v1087
    %v1092 = vsub.f32 %v1088, %v1090
    %v1093 = vsub.f32 %v1089, %v1091
    %v1094 = vsub.f32 %v1070, %v1086
    %v1095 = vsub.f32 %v1071, %v1087
    %v1096 = vadd.f32 %v1092, 1e-05
    %v1097 = vadd.f32 %v1093, 1e-05
    %v1098 = vrsqrt.pop %v1096
    %v1099 = vrsqrt.pop %v1097
    %v1100 = vmul.f32 %v1094, %v1098
    %v1101 = vmul.f32 %v1095, %v1099
    %v1102 = vlaneseq
    %v1103 = vshrl.u32 %v1102, 7
    %v1104 = vsub.s32 1, %v1103
    %v1105 = vrot.slane %v49, %v1104
    %v1106 = vmul.f32 %v1100, %v1105
    %v1107 = vmul.f32 %v1101, %v1105
    %v1108 = vlaneseq
    %v1109 = vshrl.u32 %v1108, 7
    %v1110 = vsub.s32 4, %v1109
    %v1111 = vrot.slane %v49, %v1110
    %v1112 = vadd.f32 %v1106, %v1111
    %v1113 = vadd.f32 %v1107, %v1111
    %v1114 = vlaneseq
    %v1115 = vshrl.u32 %v1114, 7
    %v1116 = vsub.s32 0, %v1115
    %v1117 = vrot.slane %v50, %v1116
    %v1119 = vsel %vm56, %v1112, 0
    %v1122 = vsel %vm56, %v1113, 0
    %1124 = vmatprep.subr.mxu0 0.0
    %1125 = vmatpush1.msra.mxu0 0.0
    %1126 = vmatprep.subr.mxu0 0.0
    %1127 = vmatpush1.msra.mxu0 0.0
    %1128 = vmatprep.subr.mxu0 0.0
    %1129 = vmatpush1.msra.mxu0 0.0
    %1130 = vmatprep.subr.mxu0 0.0
    %1131 = vmatpush1.msra.mxu0 0.0
    %1132 = vmatprep.subr.mxu0 0.0
    %1133 = vmatpush1.msra.mxu0 0.0
    %1134 = vmatprep.subr.mxu0 0.0
    %1135 = vmatpush1.msra.mxu0 0.0
    %1136 = vmatprep.subr.mxu0 0.0
    %1137 = vmatpush1.msra.mxu0 0.0
    %1138 = vmatprep.subr.mxu0 0.0
    %1139 = vmatpush1.msra.mxu0 0.0
    %1140 = vmatprep.subr.mxu0 0.0
    %1141 = vmatpush1.msra.mxu0 0.0
    %1142 = vmatprep.subr.mxu0 0.0
    %1143 = vmatpush1.msra.mxu0 0.0
    %1144 = vmatprep.subr.mxu0 0.0
    %1145 = vmatpush1.msra.mxu0 0.0
    %1146 = vmatprep.subr.mxu0 0.0
    %1147 = vmatpush1.msra.mxu0 0.0
    %1148 = vmatprep.subr.mxu0 0.0
    %1149 = vmatpush1.msra.mxu0 %v39
    %1150 = vmatprep.subr.mxu0 0.0
    %1151 = vmatpush1.msra.mxu0 %v36
    %1152 = vmatprep.subr.mxu0 0.0
    %1153 = vmatpush1.msra.mxu0 %v33
    %1154 = vmatprep.subr.mxu0 0.0
    %1155 = vmatpush1.msra.mxu0 %v30
    %1156 = vmatprep.subr.mxu0 0.0
    %1157 = vmatpush2.msra.mxu0 0.0
    %1158 = vmatprep.subr.mxu0 0.0
    %1159 = vmatpush2.msra.mxu0 0.0
    %1160 = vmatprep.subr.mxu0 0.0
    %1161 = vmatpush2.msra.mxu0 0.0
    %1162 = vmatprep.subr.mxu0 0.0
    %1163 = vmatpush2.msra.mxu0 0.0
    %1164 = vmatprep.subr.mxu0 0.0
    %1165 = vmatpush2.msra.mxu0 0.0
    %1166 = vmatprep.subr.mxu0 0.0
    %1167 = vmatpush2.msra.mxu0 0.0
    %1168 = vmatprep.subr.mxu0 0.0
    %1169 = vmatpush2.msra.mxu0 0.0
    %1170 = vmatprep.subr.mxu0 0.0
    %1171 = vmatpush2.msra.mxu0 0.0
    %1172 = vmatprep.subr.mxu0 0.0
    %1173 = vmatpush2.msra.mxu0 0.0
    %1174 = vmatprep.subr.mxu0 0.0
    %1175 = vmatpush2.msra.mxu0 0.0
    %1176 = vmatprep.subr.mxu0 0.0
    %1177 = vmatpush2.msra.mxu0 0.0
    %1178 = vmatprep.subr.mxu0 0.0
    %1179 = vmatpush2.msra.mxu0 0.0
    %1180 = vmatprep.subr.mxu0 0.0
    %1181 = vmatpush2.msra.mxu0 0.0
    %1182 = vmatprep.subr.mxu0 0.0
    %1183 = vmatpush2.msra.mxu0 0.0
    %1184 = vmatprep.subr.mxu0 0.0
    %1185 = vmatpush2.msra.mxu0 0.0
    %1186 = vmatprep.subr.mxu0 0.0
    %1187 = vmatpush2.msra.mxu0 0.0
    %1188 = vmatprep.mubr.f32.mxu0 0.0
    %1189 = vmatmul.mubr.f32.gmra.mxu0 %v1119
    %v1190 = vpop.f32.mrf.mxu0
    %v1191 = vadd.f32 %v1117, %v1190
    %v1192 = vpop.f32.mrf.mxu0
    %1193 = vmatprep.mubr.f32.mxu0 0.0
    %1194 = vmatmul.mubr.f32.gmra.mxu0 %v1122
    %v1195 = vpop.f32.mrf.mxu0
    %v1196 = vadd.f32 %v1117, %v1195
    %v1197 = vpop.f32.mrf.mxu0
    %1198 = vdwg.mxu0
    %1203 = vrot.lane.b32.xlu0 %v30, 96
    %v1204 = vpop.permute.xlu0 %1203
    %1205 = vrot.lane.b32.xlu0 %v33, 96
    %v1206 = vpop.permute.xlu0 %1205
    %1207 = vrot.lane.b32.xlu0 %v36, 96
    %v1208 = vpop.permute.xlu0 %1207
    %1209 = vrot.lane.b32.xlu0 %v39, 96
    %v1210 = vpop.permute.xlu0 %1209
    %1216 = vrot.lane.b32.xlu0 %v1117, 96
    %v1217 = vpop.permute.xlu0 %1216
    %v1220 = vsel %vm56, %v23, 0
    %v1223 = vsel %vm56, %v24, 0
    %1225 = vmatprep.subr.mxu0 0.0
    %1226 = vmatpush1.msra.mxu0 0.0
    %1227 = vmatprep.subr.mxu0 0.0
    %1228 = vmatpush1.msra.mxu0 0.0
    %1229 = vmatprep.subr.mxu0 0.0
    %1230 = vmatpush1.msra.mxu0 0.0
    %1231 = vmatprep.subr.mxu0 0.0
    %1232 = vmatpush1.msra.mxu0 0.0
    %1233 = vmatprep.subr.mxu0 0.0
    %1234 = vmatpush1.msra.mxu0 0.0
    %1235 = vmatprep.subr.mxu0 0.0
    %1236 = vmatpush1.msra.mxu0 0.0
    %1237 = vmatprep.subr.mxu0 0.0
    %1238 = vmatpush1.msra.mxu0 0.0
    %1239 = vmatprep.subr.mxu0 0.0
    %1240 = vmatpush1.msra.mxu0 0.0
    %1241 = vmatprep.subr.mxu0 0.0
    %1242 = vmatpush1.msra.mxu0 0.0
    %1243 = vmatprep.subr.mxu0 0.0
    %1244 = vmatpush1.msra.mxu0 0.0
    %1245 = vmatprep.subr.mxu0 0.0
    %1246 = vmatpush1.msra.mxu0 0.0
    %1247 = vmatprep.subr.mxu0 0.0
    %1248 = vmatpush1.msra.mxu0 0.0
    %1249 = vmatprep.subr.mxu0 0.0
    %1250 = vmatpush1.msra.mxu0 %v1210
    %1251 = vmatprep.subr.mxu0 0.0
    %1252 = vmatpush1.msra.mxu0 %v1208
    %1253 = vmatprep.subr.mxu0 0.0
    %1254 = vmatpush1.msra.mxu0 %v1206
    %1255 = vmatprep.subr.mxu0 0.0
    %1256 = vmatpush1.msra.mxu0 %v1204
    %1257 = vmatprep.subr.mxu0 0.0
    %1258 = vmatpush2.msra.mxu0 0.0
    %1259 = vmatprep.subr.mxu0 0.0
    %1260 = vmatpush2.msra.mxu0 0.0
    %1261 = vmatprep.subr.mxu0 0.0
    %1262 = vmatpush2.msra.mxu0 0.0
    %1263 = vmatprep.subr.mxu0 0.0
    %1264 = vmatpush2.msra.mxu0 0.0
    %1265 = vmatprep.subr.mxu0 0.0
    %1266 = vmatpush2.msra.mxu0 0.0
    %1267 = vmatprep.subr.mxu0 0.0
    %1268 = vmatpush2.msra.mxu0 0.0
    %1269 = vmatprep.subr.mxu0 0.0
    %1270 = vmatpush2.msra.mxu0 0.0
    %1271 = vmatprep.subr.mxu0 0.0
    %1272 = vmatpush2.msra.mxu0 0.0
    %1273 = vmatprep.subr.mxu0 0.0
    %1274 = vmatpush2.msra.mxu0 0.0
    %1275 = vmatprep.subr.mxu0 0.0
    %1276 = vmatpush2.msra.mxu0 0.0
    %1277 = vmatprep.subr.mxu0 0.0
    %1278 = vmatpush2.msra.mxu0 0.0
    %1279 = vmatprep.subr.mxu0 0.0
    %1280 = vmatpush2.msra.mxu0 0.0
    %1281 = vmatprep.subr.mxu0 0.0
    %1282 = vmatpush2.msra.mxu0 0.0
    %1283 = vmatprep.subr.mxu0 0.0
    %1284 = vmatpush2.msra.mxu0 0.0
    %1285 = vmatprep.subr.mxu0 0.0
    %1286 = vmatpush2.msra.mxu0 0.0
    %1287 = vmatprep.subr.mxu0 0.0
    %1288 = vmatpush2.msra.mxu0 0.0
    %1289 = vmatprep.mubr.f32.mxu0 0.0
    %1290 = vmatmul.mubr.f32.gmra.mxu0 %v1220
    %v1291 = vpop.f32.mrf.mxu0
    %v1292 = vadd.f32 %v1217, %v1291
    %v1293 = vpop.f32.mrf.mxu0
    %1294 = vmatprep.mubr.f32.mxu0 0.0
    %1295 = vmatmul.mubr.f32.gmra.mxu0 %v1223
    %v1296 = vpop.f32.mrf.mxu0
    %v1297 = vadd.f32 %v1217, %v1296
    %v1298 = vpop.f32.mrf.mxu0
    %1299 = vdwg.mxu0
    %1302 = vrot.lane.b32.xlu0 %v1191, 120
    %v1303 = vpop.permute.xlu0 %1302
    %1304 = vrot.lane.b32.xlu0 %v1196, 120
    %v1305 = vpop.permute.xlu0 %1304
    %1306 = vrot.lane.b32.xlu0 %v1191, 112
    %v1307 = vpop.permute.xlu0 %1306
    %1308 = vrot.lane.b32.xlu0 %v1196, 112
    %v1309 = vpop.permute.xlu0 %1308
    %1310 = vrot.lane.b32.xlu0 %v1191, 104
    %v1311 = vpop.permute.xlu0 %1310
    %1312 = vrot.lane.b32.xlu0 %v1196, 104
    %v1313 = vpop.permute.xlu0 %1312
    %1316 = vrot.lane.b32.xlu0 %v1292, 120
    %v1317 = vpop.permute.xlu0 %1316
    %1318 = vrot.lane.b32.xlu0 %v1297, 120
    %v1319 = vpop.permute.xlu0 %1318
    %1320 = vrot.lane.b32.xlu0 %v1292, 112
    %v1321 = vpop.permute.xlu0 %1320
    %1322 = vrot.lane.b32.xlu0 %v1297, 112
    %v1323 = vpop.permute.xlu0 %1322
    %1324 = vrot.lane.b32.xlu0 %v1292, 104
    %v1325 = vpop.permute.xlu0 %1324
    %1326 = vrot.lane.b32.xlu0 %v1297, 104
    %v1327 = vpop.permute.xlu0 %1326
    %v1328 = vsel %vm156, %v1191, 0
    %v1330 = vsel %vm156, %v1196, 0
    %v1332 = vsel %vm156, %v1292, 0
    %v1334 = vsel %vm156, %v1297, 0
    %1336 = vmatprep.subr.mxu0 0.0
    %1337 = vmatpush1.xpose.msra.mxu0 0.0
    %1338 = vmatprep.subr.mxu0 0.0
    %1339 = vmatpush1.xpose.msra.mxu0 0.0
    %1340 = vmatprep.subr.mxu0 0.0
    %1341 = vmatpush1.xpose.msra.mxu0 0.0
    %1342 = vmatprep.subr.mxu0 0.0
    %1343 = vmatpush1.xpose.msra.mxu0 0.0
    %1344 = vmatprep.subr.mxu0 0.0
    %1345 = vmatpush1.xpose.msra.mxu0 0.0
    %1346 = vmatprep.subr.mxu0 0.0
    %1347 = vmatpush1.xpose.msra.mxu0 0.0
    %1348 = vmatprep.subr.mxu0 0.0
    %1349 = vmatpush1.xpose.msra.mxu0 0.0
    %1350 = vmatprep.subr.mxu0 0.0
    %1351 = vmatpush1.xpose.msra.mxu0 0.0
    %1352 = vmatprep.subr.mxu0 0.0
    %1353 = vmatpush1.xpose.msra.mxu0 0.0
    %1354 = vmatprep.subr.mxu0 0.0
    %1355 = vmatpush1.xpose.msra.mxu0 0.0
    %1356 = vmatprep.subr.mxu0 0.0
    %1357 = vmatpush1.xpose.msra.mxu0 0.0
    %1358 = vmatprep.subr.mxu0 0.0
    %1359 = vmatpush1.xpose.msra.mxu0 0.0
    %1360 = vmatprep.subr.mxu0 0.0
    %1361 = vmatpush1.xpose.msra.mxu0 0.0
    %1362 = vmatprep.subr.mxu0 0.0
    %1363 = vmatpush1.xpose.msra.mxu0 0.0
    %1364 = vmatprep.subr.mxu0 0.0
    %1365 = vmatpush1.xpose.msra.mxu0 %v1334
    %1366 = vmatprep.subr.mxu0 0.0
    %1367 = vmatpush1.xpose.msra.mxu0 %v1332
    %1368 = vmatprep.subr.mxu0 0.0
    %1369 = vmatpush2.xpose.msra.mxu0 0.0
    %1370 = vmatprep.subr.mxu0 0.0
    %1371 = vmatpush2.xpose.msra.mxu0 0.0
    %1372 = vmatprep.subr.mxu0 0.0
    %1373 = vmatpush2.xpose.msra.mxu0 0.0
    %1374 = vmatprep.subr.mxu0 0.0
    %1375 = vmatpush2.xpose.msra.mxu0 0.0
    %1376 = vmatprep.subr.mxu0 0.0
    %1377 = vmatpush2.xpose.msra.mxu0 0.0
    %1378 = vmatprep.subr.mxu0 0.0
    %1379 = vmatpush2.xpose.msra.mxu0 0.0
    %1380 = vmatprep.subr.mxu0 0.0
    %1381 = vmatpush2.xpose.msra.mxu0 0.0
    %1382 = vmatprep.subr.mxu0 0.0
    %1383 = vmatpush2.xpose.msra.mxu0 0.0
    %1384 = vmatprep.subr.mxu0 0.0
    %1385 = vmatpush2.xpose.msra.mxu0 0.0
    %1386 = vmatprep.subr.mxu0 0.0
    %1387 = vmatpush2.xpose.msra.mxu0 0.0
    %1388 = vmatprep.subr.mxu0 0.0
    %1389 = vmatpush2.xpose.msra.mxu0 0.0
    %1390 = vmatprep.subr.mxu0 0.0
    %1391 = vmatpush2.xpose.msra.mxu0 0.0
    %1392 = vmatprep.subr.mxu0 0.0
    %1393 = vmatpush2.xpose.msra.mxu0 0.0
    %1394 = vmatprep.subr.mxu0 0.0
    %1395 = vmatpush2.xpose.msra.mxu0 0.0
    %1396 = vmatprep.subr.mxu0 0.0
    %1397 = vmatpush2.xpose.msra.mxu0 0.0
    %1398 = vmatprep.subr.mxu0 0.0
    %1399 = vmatpush2.xpose.msra.mxu0 0.0
    %1400 = vmatprep.mubr.f32.mxu0 0.0
    %1401 = vmatmul.mubr.f32.gmra.mxu0 %v1328
    %v1402 = vpop.f32.mrf.mxu0
    %v1403 = vadd.f32 %v27, %v1402
    %v1404 = vpop.f32.mrf.mxu0
    %1405 = vmatprep.mubr.f32.mxu0 0.0
    %1406 = vmatmul.mubr.f32.gmra.mxu0 %v1330
    %v1407 = vpop.f32.mrf.mxu0
    %v1408 = vadd.f32 %v28, %v1407
    %v1409 = vpop.f32.mrf.mxu0
    %1410 = vdwg.mxu0
    %v1411 = vsel %vm156, %v1303, 0
    %v1413 = vsel %vm156, %v1305, 0
    %v1415 = vsel %vm156, %v1317, 0
    %v1417 = vsel %vm156, %v1319, 0
    %1419 = vmatprep.subr.mxu0 0.0
    %1420 = vmatpush1.xpose.msra.mxu0 0.0
    %1421 = vmatprep.subr.mxu0 0.0
    %1422 = vmatpush1.xpose.msra.mxu0 0.0
    %1423 = vmatprep.subr.mxu0 0.0
    %1424 = vmatpush1.xpose.msra.mxu0 0.0
    %1425 = vmatprep.subr.mxu0 0.0
    %1426 = vmatpush1.xpose.msra.mxu0 0.0
    %1427 = vmatprep.subr.mxu0 0.0
    %1428 = vmatpush1.xpose.msra.mxu0 0.0
    %1429 = vmatprep.subr.mxu0 0.0
    %1430 = vmatpush1.xpose.msra.mxu0 0.0
    %1431 = vmatprep.subr.mxu0 0.0
    %1432 = vmatpush1.xpose.msra.mxu0 0.0
    %1433 = vmatprep.subr.mxu0 0.0
    %1434 = vmatpush1.xpose.msra.mxu0 0.0
    %1435 = vmatprep.subr.mxu0 0.0
    %1436 = vmatpush1.xpose.msra.mxu0 0.0
    %1437 = vmatprep.subr.mxu0 0.0
    %1438 = vmatpush1.xpose.msra.mxu0 0.0
    %1439 = vmatprep.subr.mxu0 0.0
    %1440 = vmatpush1.xpose.msra.mxu0 0.0
    %1441 = vmatprep.subr.mxu0 0.0
    %1442 = vmatpush1.xpose.msra.mxu0 0.0
    %1443 = vmatprep.subr.mxu0 0.0
    %1444 = vmatpush1.xpose.msra.mxu0 0.0
    %1445 = vmatprep.subr.mxu0 0.0
    %1446 = vmatpush1.xpose.msra.mxu0 0.0
    %1447 = vmatprep.subr.mxu0 0.0
    %1448 = vmatpush1.xpose.msra.mxu0 %v1417
    %1449 = vmatprep.subr.mxu0 0.0
    %1450 = vmatpush1.xpose.msra.mxu0 %v1415
    %1451 = vmatprep.subr.mxu0 0.0
    %1452 = vmatpush2.xpose.msra.mxu0 0.0
    %1453 = vmatprep.subr.mxu0 0.0
    %1454 = vmatpush2.xpose.msra.mxu0 0.0
    %1455 = vmatprep.subr.mxu0 0.0
    %1456 = vmatpush2.xpose.msra.mxu0 0.0
    %1457 = vmatprep.subr.mxu0 0.0
    %1458 = vmatpush2.xpose.msra.mxu0 0.0
    %1459 = vmatprep.subr.mxu0 0.0
    %1460 = vmatpush2.xpose.msra.mxu0 0.0
    %1461 = vmatprep.subr.mxu0 0.0
    %1462 = vmatpush2.xpose.msra.mxu0 0.0
    %1463 = vmatprep.subr.mxu0 0.0
    %1464 = vmatpush2.xpose.msra.mxu0 0.0
    %1465 = vmatprep.subr.mxu0 0.0
    %1466 = vmatpush2.xpose.msra.mxu0 0.0
    %1467 = vmatprep.subr.mxu0 0.0
    %1468 = vmatpush2.xpose.msra.mxu0 0.0
    %1469 = vmatprep.subr.mxu0 0.0
    %1470 = vmatpush2.xpose.msra.mxu0 0.0
    %1471 = vmatprep.subr.mxu0 0.0
    %1472 = vmatpush2.xpose.msra.mxu0 0.0
    %1473 = vmatprep.subr.mxu0 0.0
    %1474 = vmatpush2.xpose.msra.mxu0 0.0
    %1475 = vmatprep.subr.mxu0 0.0
    %1476 = vmatpush2.xpose.msra.mxu0 0.0
    %1477 = vmatprep.subr.mxu0 0.0
    %1478 = vmatpush2.xpose.msra.mxu0 0.0
    %1479 = vmatprep.subr.mxu0 0.0
    %1480 = vmatpush2.xpose.msra.mxu0 0.0
    %1481 = vmatprep.subr.mxu0 0.0
    %1482 = vmatpush2.xpose.msra.mxu0 0.0
    %1483 = vmatprep.mubr.f32.mxu0 0.0
    %1484 = vmatmul.mubr.f32.gmra.mxu0 %v1411
    %v1485 = vpop.f32.mrf.mxu0
    %v1486 = vadd.f32 %v27, %v1485
    %v1487 = vpop.f32.mrf.mxu0
    %1488 = vmatprep.mubr.f32.mxu0 0.0
    %1489 = vmatmul.mubr.f32.gmra.mxu0 %v1413
    %v1490 = vpop.f32.mrf.mxu0
    %v1491 = vadd.f32 %v28, %v1490
    %v1492 = vpop.f32.mrf.mxu0
    %1493 = vdwg.mxu0
    %v1494 = vsel %vm156, %v1307, 0
    %v1496 = vsel %vm156, %v1309, 0
    %v1498 = vsel %vm156, %v1321, 0
    %v1500 = vsel %vm156, %v1323, 0
    %1502 = vmatprep.subr.mxu0 0.0
    %1503 = vmatpush1.xpose.msra.mxu0 0.0
    %1504 = vmatprep.subr.mxu0 0.0
    %1505 = vmatpush1.xpose.msra.mxu0 0.0
    %1506 = vmatprep.subr.mxu0 0.0
    %1507 = vmatpush1.xpose.msra.mxu0 0.0
    %1508 = vmatprep.subr.mxu0 0.0
    %1509 = vmatpush1.xpose.msra.mxu0 0.0
    %1510 = vmatprep.subr.mxu0 0.0
    %1511 = vmatpush1.xpose.msra.mxu0 0.0
    %1512 = vmatprep.subr.mxu0 0.0
    %1513 = vmatpush1.xpose.msra.mxu0 0.0
    %1514 = vmatprep.subr.mxu0 0.0
    %1515 = vmatpush1.xpose.msra.mxu0 0.0
    %1516 = vmatprep.subr.mxu0 0.0
    %1517 = vmatpush1.xpose.msra.mxu0 0.0
    %1518 = vmatprep.subr.mxu0 0.0
    %1519 = vmatpush1.xpose.msra.mxu0 0.0
    %1520 = vmatprep.subr.mxu0 0.0
    %1521 = vmatpush1.xpose.msra.mxu0 0.0
    %1522 = vmatprep.subr.mxu0 0.0
    %1523 = vmatpush1.xpose.msra.mxu0 0.0
    %1524 = vmatprep.subr.mxu0 0.0
    %1525 = vmatpush1.xpose.msra.mxu0 0.0
    %1526 = vmatprep.subr.mxu0 0.0
    %1527 = vmatpush1.xpose.msra.mxu0 0.0
    %1528 = vmatprep.subr.mxu0 0.0
    %1529 = vmatpush1.xpose.msra.mxu0 0.0
    %1530 = vmatprep.subr.mxu0 0.0
    %1531 = vmatpush1.xpose.msra.mxu0 %v1500
    %1532 = vmatprep.subr.mxu0 0.0
    %1533 = vmatpush1.xpose.msra.mxu0 %v1498
    %1534 = vmatprep.subr.mxu0 0.0
    %1535 = vmatpush2.xpose.msra.mxu0 0.0
    %1536 = vmatprep.subr.mxu0 0.0
    %1537 = vmatpush2.xpose.msra.mxu0 0.0
    %1538 = vmatprep.subr.mxu0 0.0
    %1539 = vmatpush2.xpose.msra.mxu0 0.0
    %1540 = vmatprep.subr.mxu0 0.0
    %1541 = vmatpush2.xpose.msra.mxu0 0.0
    %1542 = vmatprep.subr.mxu0 0.0
    %1543 = vmatpush2.xpose.msra.mxu0 0.0
    %1544 = vmatprep.subr.mxu0 0.0
    %1545 = vmatpush2.xpose.msra.mxu0 0.0
    %1546 = vmatprep.subr.mxu0 0.0
    %1547 = vmatpush2.xpose.msra.mxu0 0.0
    %1548 = vmatprep.subr.mxu0 0.0
    %1549 = vmatpush2.xpose.msra.mxu0 0.0
    %1550 = vmatprep.subr.mxu0 0.0
    %1551 = vmatpush2.xpose.msra.mxu0 0.0
    %1552 = vmatprep.subr.mxu0 0.0
    %1553 = vmatpush2.xpose.msra.mxu0 0.0
    %1554 = vmatprep.subr.mxu0 0.0
    %1555 = vmatpush2.xpose.msra.mxu0 0.0
    %1556 = vmatprep.subr.mxu0 0.0
    %1557 = vmatpush2.xpose.msra.mxu0 0.0
    %1558 = vmatprep.subr.mxu0 0.0
    %1559 = vmatpush2.xpose.msra.mxu0 0.0
    %1560 = vmatprep.subr.mxu0 0.0
    %1561 = vmatpush2.xpose.msra.mxu0 0.0
    %1562 = vmatprep.subr.mxu0 0.0
    %1563 = vmatpush2.xpose.msra.mxu0 0.0
    %1564 = vmatprep.subr.mxu0 0.0
    %1565 = vmatpush2.xpose.msra.mxu0 0.0
    %1566 = vmatprep.mubr.f32.mxu0 0.0
    %1567 = vmatmul.mubr.f32.gmra.mxu0 %v1494
    %v1568 = vpop.f32.mrf.mxu0
    %v1569 = vadd.f32 %v27, %v1568
    %v1570 = vpop.f32.mrf.mxu0
    %1571 = vmatprep.mubr.f32.mxu0 0.0
    %1572 = vmatmul.mubr.f32.gmra.mxu0 %v1496
    %v1573 = vpop.f32.mrf.mxu0
    %v1574 = vadd.f32 %v28, %v1573
    %v1575 = vpop.f32.mrf.mxu0
    %1576 = vdwg.mxu0
    %v1577 = vsel %vm156, %v1311, 0
    %v1579 = vsel %vm156, %v1313, 0
    %v1581 = vsel %vm156, %v1325, 0
    %v1583 = vsel %vm156, %v1327, 0
    %1585 = vmatprep.subr.mxu0 0.0
    %1586 = vmatpush1.xpose.msra.mxu0 0.0
    %1587 = vmatprep.subr.mxu0 0.0
    %1588 = vmatpush1.xpose.msra.mxu0 0.0
    %1589 = vmatprep.subr.mxu0 0.0
    %1590 = vmatpush1.xpose.msra.mxu0 0.0
    %1591 = vmatprep.subr.mxu0 0.0
    %1592 = vmatpush1.xpose.msra.mxu0 0.0
    %1593 = vmatprep.subr.mxu0 0.0
    %1594 = vmatpush1.xpose.msra.mxu0 0.0
    %1595 = vmatprep.subr.mxu0 0.0
    %1596 = vmatpush1.xpose.msra.mxu0 0.0
    %1597 = vmatprep.subr.mxu0 0.0
    %1598 = vmatpush1.xpose.msra.mxu0 0.0
    %1599 = vmatprep.subr.mxu0 0.0
    %1600 = vmatpush1.xpose.msra.mxu0 0.0
    %1601 = vmatprep.subr.mxu0 0.0
    %1602 = vmatpush1.xpose.msra.mxu0 0.0
    %1603 = vmatprep.subr.mxu0 0.0
    %1604 = vmatpush1.xpose.msra.mxu0 0.0
    %1605 = vmatprep.subr.mxu0 0.0
    %1606 = vmatpush1.xpose.msra.mxu0 0.0
    %1607 = vmatprep.subr.mxu0 0.0
    %1608 = vmatpush1.xpose.msra.mxu0 0.0
    %1609 = vmatprep.subr.mxu0 0.0
    %1610 = vmatpush1.xpose.msra.mxu0 0.0
    %1611 = vmatprep.subr.mxu0 0.0
    %1612 = vmatpush1.xpose.msra.mxu0 0.0
    %1613 = vmatprep.subr.mxu0 0.0
    %1614 = vmatpush1.xpose.msra.mxu0 %v1583
    %1615 = vmatprep.subr.mxu0 0.0
    %1616 = vmatpush1.xpose.msra.mxu0 %v1581
    %1617 = vmatprep.subr.mxu0 0.0
    %1618 = vmatpush2.xpose.msra.mxu0 0.0
    %1619 = vmatprep.subr.mxu0 0.0
    %1620 = vmatpush2.xpose.msra.mxu0 0.0
    %1621 = vmatprep.subr.mxu0 0.0
    %1622 = vmatpush2.xpose.msra.mxu0 0.0
    %1623 = vmatprep.subr.mxu0 0.0
    %1624 = vmatpush2.xpose.msra.mxu0 0.0
    %1625 = vmatprep.subr.mxu0 0.0
    %1626 = vmatpush2.xpose.msra.mxu0 0.0
    %1627 = vmatprep.subr.mxu0 0.0
    %1628 = vmatpush2.xpose.msra.mxu0 0.0
    %1629 = vmatprep.subr.mxu0 0.0
    %1630 = vmatpush2.xpose.msra.mxu0 0.0
    %1631 = vmatprep.subr.mxu0 0.0
    %1632 = vmatpush2.xpose.msra.mxu0 0.0
    %1633 = vmatprep.subr.mxu0 0.0
    %1634 = vmatpush2.xpose.msra.mxu0 0.0
    %1635 = vmatprep.subr.mxu0 0.0
    %1636 = vmatpush2.xpose.msra.mxu0 0.0
    %1637 = vmatprep.subr.mxu0 0.0
    %1638 = vmatpush2.xpose.msra.mxu0 0.0
    %1639 = vmatprep.subr.mxu0 0.0
    %1640 = vmatpush2.xpose.msra.mxu0 0.0
    %1641 = vmatprep.subr.mxu0 0.0
    %1642 = vmatpush2.xpose.msra.mxu0 0.0
    %1643 = vmatprep.subr.mxu0 0.0
    %1644 = vmatpush2.xpose.msra.mxu0 0.0
    %1645 = vmatprep.subr.mxu0 0.0
    %1646 = vmatpush2.xpose.msra.mxu0 0.0
    %1647 = vmatprep.subr.mxu0 0.0
    %1648 = vmatpush2.xpose.msra.mxu0 0.0
    %1649 = vmatprep.mubr.f32.mxu0 0.0
    %1650 = vmatmul.mubr.f32.gmra.mxu0 %v1577
    %v1651 = vpop.f32.mrf.mxu0
    %v1652 = vadd.f32 %v27, %v1651
    %v1653 = vpop.f32.mrf.mxu0
    %1654 = vmatprep.mubr.f32.mxu0 0.0
    %1655 = vmatmul.mubr.f32.gmra.mxu0 %v1579
    %v1656 = vpop.f32.mrf.mxu0
    %v1657 = vadd.f32 %v28, %v1656
    %v1658 = vpop.f32.mrf.mxu0
    %1659 = vdwg.mxu0
    %v1660 = vsel %vm501, %v1403, -inf
    %1661 = vmax.xlane.f32.xlu0 %v1660
    %v1662 = vpop.xlane.xlu0 %1661
    %v1663 = vsel %vm501, %v1408, -inf
    %1664 = vmax.xlane.f32.xlu0 %v1663
    %v1665 = vpop.xlane.xlu0 %1664
    %v1666 = vsel %vm501, %v1486, -inf
    %1667 = vmax.xlane.f32.xlu0 %v1666
    %v1668 = vpop.xlane.xlu0 %1667
    %v1669 = vsel %vm501, %v1491, -inf
    %1670 = vmax.xlane.f32.xlu0 %v1669
    %v1671 = vpop.xlane.xlu0 %1670
    %v1672 = vsel %vm501, %v1569, -inf
    %1673 = vmax.xlane.f32.xlu0 %v1672
    %v1674 = vpop.xlane.xlu0 %1673
    %v1675 = vsel %vm501, %v1574, -inf
    %1676 = vmax.xlane.f32.xlu0 %v1675
    %v1677 = vpop.xlane.xlu0 %1676
    %v1678 = vsel %vm501, %v1652, -inf
    %1679 = vmax.xlane.f32.xlu0 %v1678
    %v1680 = vpop.xlane.xlu0 %1679
    %v1681 = vsel %vm501, %v1657, -inf
    %1682 = vmax.xlane.f32.xlu0 %v1681
    %v1683 = vpop.xlane.xlu0 %1682
    %v1684 = vsub.f32 %v1403, %v1662
    %v1685 = vsub.f32 %v1408, %v1665
    %v1686 = vsub.f32 %v1486, %v1668
    %v1687 = vsub.f32 %v1491, %v1671
    %v1688 = vsub.f32 %v1569, %v1674
    %v1689 = vsub.f32 %v1574, %v1677
    %v1690 = vsub.f32 %v1652, %v1680
    %v1691 = vsub.f32 %v1657, %v1683
    %v1692 = vmul.f32 %v1684, 1.442695
    %v1693 = vpow.pop %v1692
    %v1694 = vmul.f32 %v1685, 1.442695
    %v1695 = vpow.pop %v1694
    %v1696 = vmul.f32 %v1686, 1.442695
    %v1697 = vpow.pop %v1696
    %v1698 = vmul.f32 %v1687, 1.442695
    %v1699 = vpow.pop %v1698
    %v1700 = vmul.f32 %v1688, 1.442695
    %v1701 = vpow.pop %v1700
    %v1702 = vmul.f32 %v1689, 1.442695
    %v1703 = vpow.pop %v1702
    %v1704 = vmul.f32 %v1690, 1.442695
    %v1705 = vpow.pop %v1704
    %v1706 = vmul.f32 %v1691, 1.442695
    %v1707 = vpow.pop %v1706
    %v1708 = vsel %vm501, %v1693, 0.0
    %1709 = vadd.xlane.f32.xlu0 %v1708
    %v1710 = vpop.xlane.xlu0 %1709
    %v1711 = vsel %vm501, %v1695, 0.0
    %1712 = vadd.xlane.f32.xlu0 %v1711
    %v1713 = vpop.xlane.xlu0 %1712
    %v1714 = vsel %vm501, %v1697, 0.0
    %1715 = vadd.xlane.f32.xlu0 %v1714
    %v1716 = vpop.xlane.xlu0 %1715
    %v1717 = vsel %vm501, %v1699, 0.0
    %1718 = vadd.xlane.f32.xlu0 %v1717
    %v1719 = vpop.xlane.xlu0 %1718
    %v1720 = vsel %vm501, %v1701, 0.0
    %1721 = vadd.xlane.f32.xlu0 %v1720
    %v1722 = vpop.xlane.xlu0 %1721
    %v1723 = vsel %vm501, %v1703, 0.0
    %1724 = vadd.xlane.f32.xlu0 %v1723
    %v1725 = vpop.xlane.xlu0 %1724
    %v1726 = vsel %vm501, %v1705, 0.0
    %1727 = vadd.xlane.f32.xlu0 %v1726
    %v1728 = vpop.xlane.xlu0 %1727
    %v1729 = vsel %vm501, %v1707, 0.0
    %1730 = vadd.xlane.f32.xlu0 %v1729
    %v1731 = vpop.xlane.xlu0 %1730
    %v1732 = vrcp.pop %v1710
    %v1733 = vmul.f32 %v1693, %v1732
    %v1734 = vrcp.pop %v1713
    %v1735 = vmul.f32 %v1695, %v1734
    %v1736 = vrcp.pop %v1716
    %v1737 = vmul.f32 %v1697, %v1736
    %v1738 = vrcp.pop %v1719
    %v1739 = vmul.f32 %v1699, %v1738
    %v1740 = vrcp.pop %v1722
    %v1741 = vmul.f32 %v1701, %v1740
    %v1742 = vrcp.pop %v1725
    %v1743 = vmul.f32 %v1703, %v1742
    %v1744 = vrcp.pop %v1728
    %v1745 = vmul.f32 %v1705, %v1744
    %v1746 = vrcp.pop %v1731
    %v1747 = vmul.f32 %v1707, %v1746
    %1748 = vrot.lane.b32.xlu0 %v1292, 96
    %v1749 = vpop.permute.xlu0 %1748
    %1750 = vrot.lane.b32.xlu0 %v1297, 96
    %v1751 = vpop.permute.xlu0 %1750
    %v1755 = vsel %vm501, %v1733, 0
    %v1758 = vsel %vm501, %v1735, 0
    %1760 = vmatprep.subr.mxu0 0.0
    %1761 = vmatpush1.msra.mxu0 0.0
    %1762 = vmatprep.subr.mxu0 0.0
    %1763 = vmatpush1.msra.mxu0 0.0
    %1764 = vmatprep.subr.mxu0 0.0
    %1765 = vmatpush1.msra.mxu0 0.0
    %1766 = vmatprep.subr.mxu0 0.0
    %1767 = vmatpush1.msra.mxu0 0.0
    %1768 = vmatprep.subr.mxu0 0.0
    %1769 = vmatpush1.msra.mxu0 0.0
    %1770 = vmatprep.subr.mxu0 0.0
    %1771 = vmatpush1.msra.mxu0 0.0
    %1772 = vmatprep.subr.mxu0 0.0
    %1773 = vmatpush1.msra.mxu0 0.0
    %1774 = vmatprep.subr.mxu0 0.0
    %1775 = vmatpush1.msra.mxu0 0.0
    %1776 = vmatprep.subr.mxu0 0.0
    %1777 = vmatpush1.msra.mxu0 0.0
    %1778 = vmatprep.subr.mxu0 0.0
    %1779 = vmatpush1.msra.mxu0 0.0
    %1780 = vmatprep.subr.mxu0 0.0
    %1781 = vmatpush1.msra.mxu0 0.0
    %1782 = vmatprep.subr.mxu0 0.0
    %1783 = vmatpush1.msra.mxu0 0.0
    %1784 = vmatprep.subr.mxu0 0.0
    %1785 = vmatpush1.msra.mxu0 0.0
    %1786 = vmatprep.subr.mxu0 0.0
    %1787 = vmatpush1.msra.mxu0 0.0
    %1788 = vmatprep.subr.mxu0 0.0
    %1789 = vmatpush1.msra.mxu0 %v1751
    %1790 = vmatprep.subr.mxu0 0.0
    %1791 = vmatpush1.msra.mxu0 %v1749
    %1792 = vmatprep.subr.mxu0 0.0
    %1793 = vmatpush2.msra.mxu0 0.0
    %1794 = vmatprep.subr.mxu0 0.0
    %1795 = vmatpush2.msra.mxu0 0.0
    %1796 = vmatprep.subr.mxu0 0.0
    %1797 = vmatpush2.msra.mxu0 0.0
    %1798 = vmatprep.subr.mxu0 0.0
    %1799 = vmatpush2.msra.mxu0 0.0
    %1800 = vmatprep.subr.mxu0 0.0
    %1801 = vmatpush2.msra.mxu0 0.0
    %1802 = vmatprep.subr.mxu0 0.0
    %1803 = vmatpush2.msra.mxu0 0.0
    %1804 = vmatprep.subr.mxu0 0.0
    %1805 = vmatpush2.msra.mxu0 0.0
    %1806 = vmatprep.subr.mxu0 0.0
    %1807 = vmatpush2.msra.mxu0 0.0
    %1808 = vmatprep.subr.mxu0 0.0
    %1809 = vmatpush2.msra.mxu0 0.0
    %1810 = vmatprep.subr.mxu0 0.0
    %1811 = vmatpush2.msra.mxu0 0.0
    %1812 = vmatprep.subr.mxu0 0.0
    %1813 = vmatpush2.msra.mxu0 0.0
    %1814 = vmatprep.subr.mxu0 0.0
    %1815 = vmatpush2.msra.mxu0 0.0
    %1816 = vmatprep.subr.mxu0 0.0
    %1817 = vmatpush2.msra.mxu0 0.0
    %1818 = vmatprep.subr.mxu0 0.0
    %1819 = vmatpush2.msra.mxu0 0.0
    %1820 = vmatprep.subr.mxu0 0.0
    %1821 = vmatpush2.msra.mxu0 0.0
    %1822 = vmatprep.subr.mxu0 0.0
    %1823 = vmatpush2.msra.mxu0 0.0
    %1824 = vmatprep.mubr.f32.mxu0 0.0
    %1825 = vmatmul.mubr.f32.gmra.mxu0 %v1755
    %v1826 = vpop.f32.mrf.mxu0
    %v1827 = vadd.f32 0.0, %v1826
    %v1828 = vpop.f32.mrf.mxu0
    %1829 = vmatprep.mubr.f32.mxu0 0.0
    %1830 = vmatmul.mubr.f32.gmra.mxu0 %v1758
    %v1831 = vpop.f32.mrf.mxu0
    %v1832 = vadd.f32 0.0, %v1831
    %v1833 = vpop.f32.mrf.mxu0
    %1834 = vdwg.mxu0
    %1835 = vrot.lane.b32.xlu0 %v1317, 96
    %v1836 = vpop.permute.xlu0 %1835
    %1837 = vrot.lane.b32.xlu0 %v1319, 96
    %v1838 = vpop.permute.xlu0 %1837
    %v1842 = vsel %vm501, %v1737, 0
    %v1845 = vsel %vm501, %v1739, 0
    %1847 = vmatprep.subr.mxu0 0.0
    %1848 = vmatpush1.msra.mxu0 0.0
    %1849 = vmatprep.subr.mxu0 0.0
    %1850 = vmatpush1.msra.mxu0 0.0
    %1851 = vmatprep.subr.mxu0 0.0
    %1852 = vmatpush1.msra.mxu0 0.0
    %1853 = vmatprep.subr.mxu0 0.0
    %1854 = vmatpush1.msra.mxu0 0.0
    %1855 = vmatprep.subr.mxu0 0.0
    %1856 = vmatpush1.msra.mxu0 0.0
    %1857 = vmatprep.subr.mxu0 0.0
    %1858 = vmatpush1.msra.mxu0 0.0
    %1859 = vmatprep.subr.mxu0 0.0
    %1860 = vmatpush1.msra.mxu0 0.0
    %1861 = vmatprep.subr.mxu0 0.0
    %1862 = vmatpush1.msra.mxu0 0.0
    %1863 = vmatprep.subr.mxu0 0.0
    %1864 = vmatpush1.msra.mxu0 0.0
    %1865 = vmatprep.subr.mxu0 0.0
    %1866 = vmatpush1.msra.mxu0 0.0
    %1867 = vmatprep.subr.mxu0 0.0
    %1868 = vmatpush1.msra.mxu0 0.0
    %1869 = vmatprep.subr.mxu0 0.0
    %1870 = vmatpush1.msra.mxu0 0.0
    %1871 = vmatprep.subr.mxu0 0.0
    %1872 = vmatpush1.msra.mxu0 0.0
    %1873 = vmatprep.subr.mxu0 0.0
    %1874 = vmatpush1.msra.mxu0 0.0
    %1875 = vmatprep.subr.mxu0 0.0
    %1876 = vmatpush1.msra.mxu0 %v1838
    %1877 = vmatprep.subr.mxu0 0.0
    %1878 = vmatpush1.msra.mxu0 %v1836
    %1879 = vmatprep.subr.mxu0 0.0
    %1880 = vmatpush2.msra.mxu0 0.0
    %1881 = vmatprep.subr.mxu0 0.0
    %1882 = vmatpush2.msra.mxu0 0.0
    %1883 = vmatprep.subr.mxu0 0.0
    %1884 = vmatpush2.msra.mxu0 0.0
    %1885 = vmatprep.subr.mxu0 0.0
    %1886 = vmatpush2.msra.mxu0 0.0
    %1887 = vmatprep.subr.mxu0 0.0
    %1888 = vmatpush2.msra.mxu0 0.0
    %1889 = vmatprep.subr.mxu0 0.0
    %1890 = vmatpush2.msra.mxu0 0.0
    %1891 = vmatprep.subr.mxu0 0.0
    %1892 = vmatpush2.msra.mxu0 0.0
    %1893 = vmatprep.subr.mxu0 0.0
    %1894 = vmatpush2.msra.mxu0 0.0
    %1895 = vmatprep.subr.mxu0 0.0
    %1896 = vmatpush2.msra.mxu0 0.0
    %1897 = vmatprep.subr.mxu0 0.0
    %1898 = vmatpush2.msra.mxu0 0.0
    %1899 = vmatprep.subr.mxu0 0.0
    %1900 = vmatpush2.msra.mxu0 0.0
    %1901 = vmatprep.subr.mxu0 0.0
    %1902 = vmatpush2.msra.mxu0 0.0
    %1903 = vmatprep.subr.mxu0 0.0
    %1904 = vmatpush2.msra.mxu0 0.0
    %1905 = vmatprep.subr.mxu0 0.0
    %1906 = vmatpush2.msra.mxu0 0.0
    %1907 = vmatprep.subr.mxu0 0.0
    %1908 = vmatpush2.msra.mxu0 0.0
    %1909 = vmatprep.subr.mxu0 0.0
    %1910 = vmatpush2.msra.mxu0 0.0
    %1911 = vmatprep.mubr.f32.mxu0 0.0
    %1912 = vmatmul.mubr.f32.gmra.mxu0 %v1842
    %v1913 = vpop.f32.mrf.mxu0
    %v1914 = vadd.f32 0.0, %v1913
    %v1915 = vpop.f32.mrf.mxu0
    %1916 = vmatprep.mubr.f32.mxu0 0.0
    %1917 = vmatmul.mubr.f32.gmra.mxu0 %v1845
    %v1918 = vpop.f32.mrf.mxu0
    %v1919 = vadd.f32 0.0, %v1918
    %v1920 = vpop.f32.mrf.mxu0
    %1921 = vdwg.mxu0
    %1922 = vrot.lane.b32.xlu0 %v1321, 96
    %v1923 = vpop.permute.xlu0 %1922
    %1924 = vrot.lane.b32.xlu0 %v1323, 96
    %v1925 = vpop.permute.xlu0 %1924
    %v1929 = vsel %vm501, %v1741, 0
    %v1932 = vsel %vm501, %v1743, 0
    %1934 = vmatprep.subr.mxu0 0.0
    %1935 = vmatpush1.msra.mxu0 0.0
    %1936 = vmatprep.subr.mxu0 0.0
    %1937 = vmatpush1.msra.mxu0 0.0
    %1938 = vmatprep.subr.mxu0 0.0
    %1939 = vmatpush1.msra.mxu0 0.0
    %1940 = vmatprep.subr.mxu0 0.0
    %1941 = vmatpush1.msra.mxu0 0.0
    %1942 = vmatprep.subr.mxu0 0.0
    %1943 = vmatpush1.msra.mxu0 0.0
    %1944 = vmatprep.subr.mxu0 0.0
    %1945 = vmatpush1.msra.mxu0 0.0
    %1946 = vmatprep.subr.mxu0 0.0
    %1947 = vmatpush1.msra.mxu0 0.0
    %1948 = vmatprep.subr.mxu0 0.0
    %1949 = vmatpush1.msra.mxu0 0.0
    %1950 = vmatprep.subr.mxu0 0.0
    %1951 = vmatpush1.msra.mxu0 0.0
    %1952 = vmatprep.subr.mxu0 0.0
    %1953 = vmatpush1.msra.mxu0 0.0
    %1954 = vmatprep.subr.mxu0 0.0
    %1955 = vmatpush1.msra.mxu0 0.0
    %1956 = vmatprep.subr.mxu0 0.0
    %1957 = vmatpush1.msra.mxu0 0.0
    %1958 = vmatprep.subr.mxu0 0.0
    %1959 = vmatpush1.msra.mxu0 0.0
    %1960 = vmatprep.subr.mxu0 0.0
    %1961 = vmatpush1.msra.mxu0 0.0
    %1962 = vmatprep.subr.mxu0 0.0
    %1963 = vmatpush1.msra.mxu0 %v1925
    %1964 = vmatprep.subr.mxu0 0.0
    %1965 = vmatpush1.msra.mxu0 %v1923
    %1966 = vmatprep.subr.mxu0 0.0
    %1967 = vmatpush2.msra.mxu0 0.0
    %1968 = vmatprep.subr.mxu0 0.0
    %1969 = vmatpush2.msra.mxu0 0.0
    %1970 = vmatprep.subr.mxu0 0.0
    %1971 = vmatpush2.msra.mxu0 0.0
    %1972 = vmatprep.subr.mxu0 0.0
    %1973 = vmatpush2.msra.mxu0 0.0
    %1974 = vmatprep.subr.mxu0 0.0
    %1975 = vmatpush2.msra.mxu0 0.0
    %1976 = vmatprep.subr.mxu0 0.0
    %1977 = vmatpush2.msra.mxu0 0.0
    %1978 = vmatprep.subr.mxu0 0.0
    %1979 = vmatpush2.msra.mxu0 0.0
    %1980 = vmatprep.subr.mxu0 0.0
    %1981 = vmatpush2.msra.mxu0 0.0
    %1982 = vmatprep.subr.mxu0 0.0
    %1983 = vmatpush2.msra.mxu0 0.0
    %1984 = vmatprep.subr.mxu0 0.0
    %1985 = vmatpush2.msra.mxu0 0.0
    %1986 = vmatprep.subr.mxu0 0.0
    %1987 = vmatpush2.msra.mxu0 0.0
    %1988 = vmatprep.subr.mxu0 0.0
    %1989 = vmatpush2.msra.mxu0 0.0
    %1990 = vmatprep.subr.mxu0 0.0
    %1991 = vmatpush2.msra.mxu0 0.0
    %1992 = vmatprep.subr.mxu0 0.0
    %1993 = vmatpush2.msra.mxu0 0.0
    %1994 = vmatprep.subr.mxu0 0.0
    %1995 = vmatpush2.msra.mxu0 0.0
    %1996 = vmatprep.subr.mxu0 0.0
    %1997 = vmatpush2.msra.mxu0 0.0
    %1998 = vmatprep.mubr.f32.mxu0 0.0
    %1999 = vmatmul.mubr.f32.gmra.mxu0 %v1929
    %v2000 = vpop.f32.mrf.mxu0
    %v2001 = vadd.f32 0.0, %v2000
    %v2002 = vpop.f32.mrf.mxu0
    %2003 = vmatprep.mubr.f32.mxu0 0.0
    %2004 = vmatmul.mubr.f32.gmra.mxu0 %v1932
    %v2005 = vpop.f32.mrf.mxu0
    %v2006 = vadd.f32 0.0, %v2005
    %v2007 = vpop.f32.mrf.mxu0
    %2008 = vdwg.mxu0
    %2009 = vrot.lane.b32.xlu0 %v1325, 96
    %v2010 = vpop.permute.xlu0 %2009
    %2011 = vrot.lane.b32.xlu0 %v1327, 96
    %v2012 = vpop.permute.xlu0 %2011
    %v2016 = vsel %vm501, %v1745, 0
    %v2019 = vsel %vm501, %v1747, 0
    %2021 = vmatprep.subr.mxu0 0.0
    %2022 = vmatpush1.msra.mxu0 0.0
    %2023 = vmatprep.subr.mxu0 0.0
    %2024 = vmatpush1.msra.mxu0 0.0
    %2025 = vmatprep.subr.mxu0 0.0
    %2026 = vmatpush1.msra.mxu0 0.0
    %2027 = vmatprep.subr.mxu0 0.0
    %2028 = vmatpush1.msra.mxu0 0.0
    %2029 = vmatprep.subr.mxu0 0.0
    %2030 = vmatpush1.msra.mxu0 0.0
    %2031 = vmatprep.subr.mxu0 0.0
    %2032 = vmatpush1.msra.mxu0 0.0
    %2033 = vmatprep.subr.mxu0 0.0
    %2034 = vmatpush1.msra.mxu0 0.0
    %2035 = vmatprep.subr.mxu0 0.0
    %2036 = vmatpush1.msra.mxu0 0.0
    %2037 = vmatprep.subr.mxu0 0.0
    %2038 = vmatpush1.msra.mxu0 0.0
    %2039 = vmatprep.subr.mxu0 0.0
    %2040 = vmatpush1.msra.mxu0 0.0
    %2041 = vmatprep.subr.mxu0 0.0
    %2042 = vmatpush1.msra.mxu0 0.0
    %2043 = vmatprep.subr.mxu0 0.0
    %2044 = vmatpush1.msra.mxu0 0.0
    %2045 = vmatprep.subr.mxu0 0.0
    %2046 = vmatpush1.msra.mxu0 0.0
    %2047 = vmatprep.subr.mxu0 0.0
    %2048 = vmatpush1.msra.mxu0 0.0
    %2049 = vmatprep.subr.mxu0 0.0
    %2050 = vmatpush1.msra.mxu0 %v2012
    %2051 = vmatprep.subr.mxu0 0.0
    %2052 = vmatpush1.msra.mxu0 %v2010
    %2053 = vmatprep.subr.mxu0 0.0
    %2054 = vmatpush2.msra.mxu0 0.0
    %2055 = vmatprep.subr.mxu0 0.0
    %2056 = vmatpush2.msra.mxu0 0.0
    %2057 = vmatprep.subr.mxu0 0.0
    %2058 = vmatpush2.msra.mxu0 0.0
    %2059 = vmatprep.subr.mxu0 0.0
    %2060 = vmatpush2.msra.mxu0 0.0
    %2061 = vmatprep.subr.mxu0 0.0
    %2062 = vmatpush2.msra.mxu0 0.0
    %2063 = vmatprep.subr.mxu0 0.0
    %2064 = vmatpush2.msra.mxu0 0.0
    %2065 = vmatprep.subr.mxu0 0.0
    %2066 = vmatpush2.msra.mxu0 0.0
    %2067 = vmatprep.subr.mxu0 0.0
    %2068 = vmatpush2.msra.mxu0 0.0
    %2069 = vmatprep.subr.mxu0 0.0
    %2070 = vmatpush2.msra.mxu0 0.0
    %2071 = vmatprep.subr.mxu0 0.0
    %2072 = vmatpush2.msra.mxu0 0.0
    %2073 = vmatprep.subr.mxu0 0.0
    %2074 = vmatpush2.msra.mxu0 0.0
    %2075 = vmatprep.subr.mxu0 0.0
    %2076 = vmatpush2.msra.mxu0 0.0
    %2077 = vmatprep.subr.mxu0 0.0
    %2078 = vmatpush2.msra.mxu0 0.0
    %2079 = vmatprep.subr.mxu0 0.0
    %2080 = vmatpush2.msra.mxu0 0.0
    %2081 = vmatprep.subr.mxu0 0.0
    %2082 = vmatpush2.msra.mxu0 0.0
    %2083 = vmatprep.subr.mxu0 0.0
    %2084 = vmatpush2.msra.mxu0 0.0
    %2085 = vmatprep.mubr.f32.mxu0 0.0
    %2086 = vmatmul.mubr.f32.gmra.mxu0 %v2016
    %v2087 = vpop.f32.mrf.mxu0
    %v2088 = vadd.f32 0.0, %v2087
    %v2089 = vpop.f32.mrf.mxu0
    %2090 = vmatprep.mubr.f32.mxu0 0.0
    %2091 = vmatmul.mubr.f32.gmra.mxu0 %v2019
    %v2092 = vpop.f32.mrf.mxu0
    %v2093 = vadd.f32 0.0, %v2092
    %v2094 = vpop.f32.mrf.mxu0
    %2095 = vdwg.mxu0
    %2098 = vrot.lane.b32.xlu0 %v1914, 8
    %v2099 = vpop.permute.xlu0 %2098
    %2100 = vrot.lane.b32.xlu0 %v1919, 8
    %v2101 = vpop.permute.xlu0 %2100
    %2106 = vrot.lane.b32.xlu0 %v2001, 16
    %v2107 = vpop.permute.xlu0 %2106
    %2108 = vrot.lane.b32.xlu0 %v2006, 16
    %v2109 = vpop.permute.xlu0 %2108
    %2114 = vrot.lane.b32.xlu0 %v2088, 24
    %v2115 = vpop.permute.xlu0 %2114
    %2116 = vrot.lane.b32.xlu0 %v2093, 24
    %v2117 = vpop.permute.xlu0 %2116
    %v2120 = vsel %vm156, %v1827, %v2099
    %v2121 = vsel %vm156, %v1832, %v2101
    %v2122 = vsel %vm501, %v2120, %v2107
    %v2123 = vsel %vm501, %v2121, %v2109
    %v2124 = vsel %vm966, %v2122, %v2115
    %v2125 = vsel %vm966, %v2123, %v2117
    %2126 = vrot.lane.b32.xlu0 %v30, 32
    %v2127 = vpop.permute.xlu0 %2126
    %2128 = vrot.lane.b32.xlu0 %v33, 32
    %v2129 = vpop.permute.xlu0 %2128
    %2130 = vrot.lane.b32.xlu0 %v36, 32
    %v2131 = vpop.permute.xlu0 %2130
    %2132 = vrot.lane.b32.xlu0 %v39, 32
    %v2133 = vpop.permute.xlu0 %2132
    %2138 = vrot.lane.b32.xlu0 %v1117, 32
    %v2139 = vpop.permute.xlu0 %2138
    %v2142 = vsel %vm56, %v2124, 0
    %v2145 = vsel %vm56, %v2125, 0
    %2147 = vmatprep.subr.mxu0 0.0
    %2148 = vmatpush1.msra.mxu0 0.0
    %2149 = vmatprep.subr.mxu0 0.0
    %2150 = vmatpush1.msra.mxu0 0.0
    %2151 = vmatprep.subr.mxu0 0.0
    %2152 = vmatpush1.msra.mxu0 0.0
    %2153 = vmatprep.subr.mxu0 0.0
    %2154 = vmatpush1.msra.mxu0 0.0
    %2155 = vmatprep.subr.mxu0 0.0
    %2156 = vmatpush1.msra.mxu0 0.0
    %2157 = vmatprep.subr.mxu0 0.0
    %2158 = vmatpush1.msra.mxu0 0.0
    %2159 = vmatprep.subr.mxu0 0.0
    %2160 = vmatpush1.msra.mxu0 0.0
    %2161 = vmatprep.subr.mxu0 0.0
    %2162 = vmatpush1.msra.mxu0 0.0
    %2163 = vmatprep.subr.mxu0 0.0
    %2164 = vmatpush1.msra.mxu0 0.0
    %2165 = vmatprep.subr.mxu0 0.0
    %2166 = vmatpush1.msra.mxu0 0.0
    %2167 = vmatprep.subr.mxu0 0.0
    %2168 = vmatpush1.msra.mxu0 0.0
    %2169 = vmatprep.subr.mxu0 0.0
    %2170 = vmatpush1.msra.mxu0 0.0
    %2171 = vmatprep.subr.mxu0 0.0
    %2172 = vmatpush1.msra.mxu0 %v2133
    %2173 = vmatprep.subr.mxu0 0.0
    %2174 = vmatpush1.msra.mxu0 %v2131
    %2175 = vmatprep.subr.mxu0 0.0
    %2176 = vmatpush1.msra.mxu0 %v2129
    %2177 = vmatprep.subr.mxu0 0.0
    %2178 = vmatpush1.msra.mxu0 %v2127
    %2179 = vmatprep.subr.mxu0 0.0
    %2180 = vmatpush2.msra.mxu0 0.0
    %2181 = vmatprep.subr.mxu0 0.0
    %2182 = vmatpush2.msra.mxu0 0.0
    %2183 = vmatprep.subr.mxu0 0.0
    %2184 = vmatpush2.msra.mxu0 0.0
    %2185 = vmatprep.subr.mxu0 0.0
    %2186 = vmatpush2.msra.mxu0 0.0
    %2187 = vmatprep.subr.mxu0 0.0
    %2188 = vmatpush2.msra.mxu0 0.0
    %2189 = vmatprep.subr.mxu0 0.0
    %2190 = vmatpush2.msra.mxu0 0.0
    %2191 = vmatprep.subr.mxu0 0.0
    %2192 = vmatpush2.msra.mxu0 0.0
    %2193 = vmatprep.subr.mxu0 0.0
    %2194 = vmatpush2.msra.mxu0 0.0
    %2195 = vmatprep.subr.mxu0 0.0
    %2196 = vmatpush2.msra.mxu0 0.0
    %2197 = vmatprep.subr.mxu0 0.0
    %2198 = vmatpush2.msra.mxu0 0.0
    %2199 = vmatprep.subr.mxu0 0.0
    %2200 = vmatpush2.msra.mxu0 0.0
    %2201 = vmatprep.subr.mxu0 0.0
    %2202 = vmatpush2.msra.mxu0 0.0
    %2203 = vmatprep.subr.mxu0 0.0
    %2204 = vmatpush2.msra.mxu0 0.0
    %2205 = vmatprep.subr.mxu0 0.0
    %2206 = vmatpush2.msra.mxu0 0.0
    %2207 = vmatprep.subr.mxu0 0.0
    %2208 = vmatpush2.msra.mxu0 0.0
    %2209 = vmatprep.subr.mxu0 0.0
    %2210 = vmatpush2.msra.mxu0 0.0
    %2211 = vmatprep.mubr.f32.mxu0 0.0
    %2212 = vmatmul.mubr.f32.gmra.mxu0 %v2142
    %v2213 = vpop.f32.mrf.mxu0
    %v2214 = vadd.f32 %v2139, %v2213
    %v2215 = vpop.f32.mrf.mxu0
    %2216 = vmatprep.mubr.f32.mxu0 0.0
    %2217 = vmatmul.mubr.f32.gmra.mxu0 %v2145
    %v2218 = vpop.f32.mrf.mxu0
    %v2219 = vadd.f32 %v2139, %v2218
    %v2220 = vpop.f32.mrf.mxu0
    %2221 = vdwg.mxu0
    %v2222 = vadd.f32 %v1112, %v2214
    %v2223 = vadd.f32 %v1113, %v2219
    %v2224 = vmul.f32 %v2222, %v2222
    %v2225 = vmul.f32 %v2223, %v2223
    %v2226 = vsel %vm56, %v2222, 0.0
    %2227 = vadd.xlane.f32.xlu0 %v2226
    %v2228 = vpop.xlane.xlu0 %2227
    %v2229 = vsel %vm56, %v2223, 0.0
    %2230 = vadd.xlane.f32.xlu0 %v2229
    %v2231 = vpop.xlane.xlu0 %2230
    %v2232 = vsel %vm56, %v2224, 0.0
    %2233 = vadd.xlane.f32.xlu0 %v2232
    %v2234 = vpop.xlane.xlu0 %2233
    %v2235 = vsel %vm56, %v2225, 0.0
    %2236 = vadd.xlane.f32.xlu0 %v2235
    %v2237 = vpop.xlane.xlu0 %2236
    %v2238 = vmul.f32 %v2228, 0.03125
    %v2239 = vmul.f32 %v2231, 0.03125
    %v2240 = vmul.f32 %v2234, 0.03125
    %v2241 = vmul.f32 %v2237, 0.03125
    %v2242 = vmul.f32 %v2238, %v2238
    %v2243 = vmul.f32 %v2239, %v2239
    %v2244 = vsub.f32 %v2240, %v2242
    %v2245 = vsub.f32 %v2241, %v2243
    %v2246 = vsub.f32 %v2222, %v2238
    %v2247 = vsub.f32 %v2223, %v2239
    %v2248 = vadd.f32 %v2244, 1e-05
    %v2249 = vadd.f32 %v2245, 1e-05
    %v2250 = vrsqrt.pop %v2248
    %v2251 = vrsqrt.pop %v2249
    %v2252 = vmul.f32 %v2246, %v2250
    %v2253 = vmul.f32 %v2247, %v2251
    %v2254 = vlaneseq
    %v2255 = vshrl.u32 %v2254, 7
    %v2256 = vsub.s32 2, %v2255
    %v2257 = vrot.slane %v49, %v2256
    %v2258 = vmul.f32 %v2252, %v2257
    %v2259 = vmul.f32 %v2253, %v2257
    %v2260 = vlaneseq
    %v2261 = vshrl.u32 %v2260, 7
    %v2262 = vsub.s32 5, %v2261
    %v2263 = vrot.slane %v49, %v2262
    %v2264 = vadd.f32 %v2258, %v2263
    %v2265 = vadd.f32 %v2259, %v2263
    %v2266 = vlaneseq
    %v2267 = vshrl.u32 %v2266, 7
    %v2268 = vsub.s32 0, %v2267
    %v2269 = vrot.slane %v51, %v2268
    %v2271 = vsel %vm56, %v2264, 0
    %v2274 = vsel %vm56, %v2265, 0
    %2276 = vmatprep.subr.mxu0 0.0
    %2277 = vmatpush1.msra.mxu0 0.0
    %2278 = vmatprep.subr.mxu0 0.0
    %2279 = vmatpush1.msra.mxu0 0.0
    %2280 = vmatprep.subr.mxu0 0.0
    %2281 = vmatpush1.msra.mxu0 0.0
    %2282 = vmatprep.subr.mxu0 0.0
    %2283 = vmatpush1.msra.mxu0 0.0
    %2284 = vmatprep.subr.mxu0 0.0
    %2285 = vmatpush1.msra.mxu0 0.0
    %2286 = vmatprep.subr.mxu0 0.0
    %2287 = vmatpush1.msra.mxu0 0.0
    %2288 = vmatprep.subr.mxu0 0.0
    %2289 = vmatpush1.msra.mxu0 0.0
    %2290 = vmatprep.subr.mxu0 0.0
    %2291 = vmatpush1.msra.mxu0 0.0
    %2292 = vmatprep.subr.mxu0 0.0
    %2293 = vmatpush1.msra.mxu0 0.0
    %2294 = vmatprep.subr.mxu0 0.0
    %2295 = vmatpush1.msra.mxu0 0.0
    %2296 = vmatprep.subr.mxu0 0.0
    %2297 = vmatpush1.msra.mxu0 0.0
    %2298 = vmatprep.subr.mxu0 0.0
    %2299 = vmatpush1.msra.mxu0 0.0
    %2300 = vmatprep.subr.mxu0 0.0
    %2301 = vmatpush1.msra.mxu0 %v40
    %2302 = vmatprep.subr.mxu0 0.0
    %2303 = vmatpush1.msra.mxu0 %v37
    %2304 = vmatprep.subr.mxu0 0.0
    %2305 = vmatpush1.msra.mxu0 %v34
    %2306 = vmatprep.subr.mxu0 0.0
    %2307 = vmatpush1.msra.mxu0 %v31
    %2308 = vmatprep.subr.mxu0 0.0
    %2309 = vmatpush2.msra.mxu0 0.0
    %2310 = vmatprep.subr.mxu0 0.0
    %2311 = vmatpush2.msra.mxu0 0.0
    %2312 = vmatprep.subr.mxu0 0.0
    %2313 = vmatpush2.msra.mxu0 0.0
    %2314 = vmatprep.subr.mxu0 0.0
    %2315 = vmatpush2.msra.mxu0 0.0
    %2316 = vmatprep.subr.mxu0 0.0
    %2317 = vmatpush2.msra.mxu0 0.0
    %2318 = vmatprep.subr.mxu0 0.0
    %2319 = vmatpush2.msra.mxu0 0.0
    %2320 = vmatprep.subr.mxu0 0.0
    %2321 = vmatpush2.msra.mxu0 0.0
    %2322 = vmatprep.subr.mxu0 0.0
    %2323 = vmatpush2.msra.mxu0 0.0
    %2324 = vmatprep.subr.mxu0 0.0
    %2325 = vmatpush2.msra.mxu0 0.0
    %2326 = vmatprep.subr.mxu0 0.0
    %2327 = vmatpush2.msra.mxu0 0.0
    %2328 = vmatprep.subr.mxu0 0.0
    %2329 = vmatpush2.msra.mxu0 0.0
    %2330 = vmatprep.subr.mxu0 0.0
    %2331 = vmatpush2.msra.mxu0 0.0
    %2332 = vmatprep.subr.mxu0 0.0
    %2333 = vmatpush2.msra.mxu0 0.0
    %2334 = vmatprep.subr.mxu0 0.0
    %2335 = vmatpush2.msra.mxu0 0.0
    %2336 = vmatprep.subr.mxu0 0.0
    %2337 = vmatpush2.msra.mxu0 0.0
    %2338 = vmatprep.subr.mxu0 0.0
    %2339 = vmatpush2.msra.mxu0 0.0
    %2340 = vmatprep.mubr.f32.mxu0 0.0
    %2341 = vmatmul.mubr.f32.gmra.mxu0 %v2271
    %v2342 = vpop.f32.mrf.mxu0
    %v2343 = vadd.f32 %v2269, %v2342
    %v2344 = vpop.f32.mrf.mxu0
    %2345 = vmatprep.mubr.f32.mxu0 0.0
    %2346 = vmatmul.mubr.f32.gmra.mxu0 %v2274
    %v2347 = vpop.f32.mrf.mxu0
    %v2348 = vadd.f32 %v2269, %v2347
    %v2349 = vpop.f32.mrf.mxu0
    %2350 = vdwg.mxu0
    %v2351 = vmax.f32 %v2343, 0.0
    %v2352 = vmax.f32 %v2348, 0.0
    %2354 = vrot.lane.b32.xlu0 %v2269, 64
    %v2355 = vpop.permute.xlu0 %2354
    %vm2357 = vcmask 523264
    %v2359 = vsel %vm2357, %v2351, 0
    %v2362 = vsel %vm2357, %v2352, 0
    %2364 = vmatprep.subr.mxu0 0.0
    %2365 = vmatpush1.msra.mxu0 0.0
    %2366 = vmatprep.subr.mxu0 0.0
    %2367 = vmatpush1.msra.mxu0 0.0
    %2368 = vmatprep.subr.mxu0 0.0
    %2369 = vmatpush1.msra.mxu0 0.0
    %2370 = vmatprep.subr.mxu0 0.0
    %2371 = vmatpush1.msra.mxu0 0.0
    %2372 = vmatprep.subr.mxu0 0.0
    %2373 = vmatpush1.msra.mxu0 0.0
    %2374 = vmatprep.subr.mxu0 0.0
    %2375 = vmatpush1.msra.mxu0 0.0
    %2376 = vmatprep.subr.mxu0 0.0
    %2377 = vmatpush1.msra.mxu0 0.0
    %2378 = vmatprep.subr.mxu0 0.0
    %2379 = vmatpush1.msra.mxu0 0.0
    %2380 = vmatprep.subr.mxu0 0.0
    %2381 = vmatpush1.msra.mxu0 %v48
    %2382 = vmatprep.subr.mxu0 0.0
    %2383 = vmatpush1.msra.mxu0 %v47
    %2384 = vmatprep.subr.mxu0 0.0
    %2385 = vmatpush1.msra.mxu0 %v46
    %2386 = vmatprep.subr.mxu0 0.0
    %2387 = vmatpush1.msra.mxu0 %v45
    %2388 = vmatprep.subr.mxu0 0.0
    %2389 = vmatpush1.msra.mxu0 %v44
    %2390 = vmatprep.subr.mxu0 0.0
    %2391 = vmatpush1.msra.mxu0 %v43
    %2392 = vmatprep.subr.mxu0 0.0
    %2393 = vmatpush1.msra.mxu0 %v42
    %2394 = vmatprep.subr.mxu0 0.0
    %2395 = vmatpush1.msra.mxu0 %v41
    %2396 = vmatprep.subr.mxu0 0.0
    %2397 = vmatpush2.msra.mxu0 0.0
    %2398 = vmatprep.subr.mxu0 0.0
    %2399 = vmatpush2.msra.mxu0 0.0
    %2400 = vmatprep.subr.mxu0 0.0
    %2401 = vmatpush2.msra.mxu0 0.0
    %2402 = vmatprep.subr.mxu0 0.0
    %2403 = vmatpush2.msra.mxu0 0.0
    %2404 = vmatprep.subr.mxu0 0.0
    %2405 = vmatpush2.msra.mxu0 0.0
    %2406 = vmatprep.subr.mxu0 0.0
    %2407 = vmatpush2.msra.mxu0 0.0
    %2408 = vmatprep.subr.mxu0 0.0
    %2409 = vmatpush2.msra.mxu0 0.0
    %2410 = vmatprep.subr.mxu0 0.0
    %2411 = vmatpush2.msra.mxu0 0.0
    %2412 = vmatprep.subr.mxu0 0.0
    %2413 = vmatpush2.msra.mxu0 0.0
    %2414 = vmatprep.subr.mxu0 0.0
    %2415 = vmatpush2.msra.mxu0 0.0
    %2416 = vmatprep.subr.mxu0 0.0
    %2417 = vmatpush2.msra.mxu0 0.0
    %2418 = vmatprep.subr.mxu0 0.0
    %2419 = vmatpush2.msra.mxu0 0.0
    %2420 = vmatprep.subr.mxu0 0.0
    %2421 = vmatpush2.msra.mxu0 0.0
    %2422 = vmatprep.subr.mxu0 0.0
    %2423 = vmatpush2.msra.mxu0 0.0
    %2424 = vmatprep.subr.mxu0 0.0
    %2425 = vmatpush2.msra.mxu0 0.0
    %2426 = vmatprep.subr.mxu0 0.0
    %2427 = vmatpush2.msra.mxu0 0.0
    %2428 = vmatprep.mubr.f32.mxu0 0.0
    %2429 = vmatmul.mubr.f32.gmra.mxu0 %v2359
    %v2430 = vpop.f32.mrf.mxu0
    %v2431 = vadd.f32 %v2355, %v2430
    %v2432 = vpop.f32.mrf.mxu0
    %2433 = vmatprep.mubr.f32.mxu0 0.0
    %2434 = vmatmul.mubr.f32.gmra.mxu0 %v2362
    %v2435 = vpop.f32.mrf.mxu0
    %v2436 = vadd.f32 %v2355, %v2435
    %v2437 = vpop.f32.mrf.mxu0
    %2438 = vdwg.mxu0
    %v2439 = vadd.f32 %v2264, %v2431
    %v2440 = vadd.f32 %v2265, %v2436
    %v2441 = vmul.f32 %v2439, %v2439
    %v2442 = vmul.f32 %v2440, %v2440
    %v2443 = vsel %vm56, %v2439, 0.0
    %2444 = vadd.xlane.f32.xlu0 %v2443
    %v2445 = vpop.xlane.xlu0 %2444
    %v2446 = vsel %vm56, %v2440, 0.0
    %2447 = vadd.xlane.f32.xlu0 %v2446
    %v2448 = vpop.xlane.xlu0 %2447
    %v2449 = vsel %vm56, %v2441, 0.0
    %2450 = vadd.xlane.f32.xlu0 %v2449
    %v2451 = vpop.xlane.xlu0 %2450
    %v2452 = vsel %vm56, %v2442, 0.0
    %2453 = vadd.xlane.f32.xlu0 %v2452
    %v2454 = vpop.xlane.xlu0 %2453
    %v2455 = vmul.f32 %v2445, 0.03125
    %v2456 = vmul.f32 %v2448, 0.03125
    %v2457 = vmul.f32 %v2451, 0.03125
    %v2458 = vmul.f32 %v2454, 0.03125
    %v2459 = vmul.f32 %v2455, %v2455
    %v2460 = vmul.f32 %v2456, %v2456
    %v2461 = vsub.f32 %v2457, %v2459
    %v2462 = vsub.f32 %v2458, %v2460
    %v2463 = vsub.f32 %v2439, %v2455
    %v2464 = vsub.f32 %v2440, %v2456
    %v2465 = vadd.f32 %v2461, 1e-05
    %v2466 = vadd.f32 %v2462, 1e-05
    %v2467 = vrsqrt.pop %v2465
    %v2468 = vrsqrt.pop %v2466
    %v2469 = vmul.f32 %v2463, %v2467
    %v2470 = vmul.f32 %v2464, %v2468
    %v2471 = vlaneseq
    %v2472 = vshrl.u32 %v2471, 7
    %v2473 = vsub.s32 3, %v2472
    %v2474 = vrot.slane %v49, %v2473
    %v2475 = vmul.f32 %v2469, %v2474
    %v2476 = vmul.f32 %v2470, %v2474
    %v2477 = vlaneseq
    %v2478 = vshrl.u32 %v2477, 7
    %v2479 = vsub.s32 6, %v2478
    %v2480 = vrot.slane %v49, %v2479
    %v2481 = vadd.f32 %v2475, %v2480
    %v2482 = vadd.f32 %v2476, %v2480
    %s2483 = scalar_lea.vmem %s2, 96
    %v2484 = vld [vmem:[%s2483] sm:$0xff]
    %v2485 = vld [vmem:[%s2483 + $0x8] sm:$0xff]
    %v2486 = vld [vmem:[%s2483 + $0x10] sm:$0xff]
    %v2487 = vld [vmem:[%s2483 + $0x18] sm:$0xff]
    %v2488 = vld [vmem:[%s2483 + $0x20] sm:$0xff]
    %v2489 = vld [vmem:[%s2483 + $0x28] sm:$0xff]
    %v2490 = vld [vmem:[%s2483 + $0x30] sm:$0xff]
    %v2491 = vld [vmem:[%s2483 + $0x38] sm:$0xff]
    %v2492 = vld [vmem:[%s2483 + $0x40] sm:$0xff]
    %v2493 = vld [vmem:[%s2483 + $0x48] sm:$0xff]
    %v2494 = vld [vmem:[%s2483 + $0x50] sm:$0xff]
    %v2495 = vld [vmem:[%s2483 + $0x58] sm:$0xff]
    %s2496 = scalar_lea.vmem %s3, 64
    %v2497 = vld [vmem:[%s2496] sm:$0xff]
    %v2498 = vld [vmem:[%s2496 + $0x8] sm:$0xff]
    %v2499 = vld [vmem:[%s2496 + $0x10] sm:$0xff]
    %v2500 = vld [vmem:[%s2496 + $0x18] sm:$0xff]
    %v2501 = vld [vmem:[%s2496 + $0x20] sm:$0xff]
    %v2502 = vld [vmem:[%s2496 + $0x28] sm:$0xff]
    %v2503 = vld [vmem:[%s2496 + $0x30] sm:$0xff]
    %v2504 = vld [vmem:[%s2496 + $0x38] sm:$0xff]
    %s2505 = scalar_lea.vmem %s4, 24
    %v2506 = vld [vmem:[%s2505] sm:$0xff]
    %v2507 = vld [vmem:[%s2505 + $0x8] sm:$0xff]
    %v2508 = vld [vmem:[%s2505 + $0x10] sm:$0xff]
    %v2509 = vlaneseq
    %v2510 = vshrl.u32 %v2509, 7
    %v2511 = vsub.s32 0, %v2510
    %v2512 = vrot.slane %v2506, %v2511
    %v2514 = vsel %vm56, %v2481, 0
    %v2517 = vsel %vm56, %v2482, 0
    %2519 = vmatprep.subr.mxu0 0.0
    %2520 = vmatpush1.msra.mxu0 0.0
    %2521 = vmatprep.subr.mxu0 0.0
    %2522 = vmatpush1.msra.mxu0 0.0
    %2523 = vmatprep.subr.mxu0 0.0
    %2524 = vmatpush1.msra.mxu0 0.0
    %2525 = vmatprep.subr.mxu0 0.0
    %2526 = vmatpush1.msra.mxu0 0.0
    %2527 = vmatprep.subr.mxu0 0.0
    %2528 = vmatpush1.msra.mxu0 0.0
    %2529 = vmatprep.subr.mxu0 0.0
    %2530 = vmatpush1.msra.mxu0 0.0
    %2531 = vmatprep.subr.mxu0 0.0
    %2532 = vmatpush1.msra.mxu0 0.0
    %2533 = vmatprep.subr.mxu0 0.0
    %2534 = vmatpush1.msra.mxu0 0.0
    %2535 = vmatprep.subr.mxu0 0.0
    %2536 = vmatpush1.msra.mxu0 0.0
    %2537 = vmatprep.subr.mxu0 0.0
    %2538 = vmatpush1.msra.mxu0 0.0
    %2539 = vmatprep.subr.mxu0 0.0
    %2540 = vmatpush1.msra.mxu0 0.0
    %2541 = vmatprep.subr.mxu0 0.0
    %2542 = vmatpush1.msra.mxu0 0.0
    %2543 = vmatprep.subr.mxu0 0.0
    %2544 = vmatpush1.msra.mxu0 %v2493
    %2545 = vmatprep.subr.mxu0 0.0
    %2546 = vmatpush1.msra.mxu0 %v2490
    %2547 = vmatprep.subr.mxu0 0.0
    %2548 = vmatpush1.msra.mxu0 %v2487
    %2549 = vmatprep.subr.mxu0 0.0
    %2550 = vmatpush1.msra.mxu0 %v2484
    %2551 = vmatprep.subr.mxu0 0.0
    %2552 = vmatpush2.msra.mxu0 0.0
    %2553 = vmatprep.subr.mxu0 0.0
    %2554 = vmatpush2.msra.mxu0 0.0
    %2555 = vmatprep.subr.mxu0 0.0
    %2556 = vmatpush2.msra.mxu0 0.0
    %2557 = vmatprep.subr.mxu0 0.0
    %2558 = vmatpush2.msra.mxu0 0.0
    %2559 = vmatprep.subr.mxu0 0.0
    %2560 = vmatpush2.msra.mxu0 0.0
    %2561 = vmatprep.subr.mxu0 0.0
    %2562 = vmatpush2.msra.mxu0 0.0
    %2563 = vmatprep.subr.mxu0 0.0
    %2564 = vmatpush2.msra.mxu0 0.0
    %2565 = vmatprep.subr.mxu0 0.0
    %2566 = vmatpush2.msra.mxu0 0.0
    %2567 = vmatprep.subr.mxu0 0.0
    %2568 = vmatpush2.msra.mxu0 0.0
    %2569 = vmatprep.subr.mxu0 0.0
    %2570 = vmatpush2.msra.mxu0 0.0
    %2571 = vmatprep.subr.mxu0 0.0
    %2572 = vmatpush2.msra.mxu0 0.0
    %2573 = vmatprep.subr.mxu0 0.0
    %2574 = vmatpush2.msra.mxu0 0.0
    %2575 = vmatprep.subr.mxu0 0.0
    %2576 = vmatpush2.msra.mxu0 0.0
    %2577 = vmatprep.subr.mxu0 0.0
    %2578 = vmatpush2.msra.mxu0 0.0
    %2579 = vmatprep.subr.mxu0 0.0
    %2580 = vmatpush2.msra.mxu0 0.0
    %2581 = vmatprep.subr.mxu0 0.0
    %2582 = vmatpush2.msra.mxu0 0.0
    %2583 = vmatprep.mubr.f32.mxu0 0.0
    %2584 = vmatmul.mubr.f32.gmra.mxu0 %v2514
    %v2585 = vpop.f32.mrf.mxu0
    %v2586 = vadd.f32 %v2512, %v2585
    %v2587 = vpop.f32.mrf.mxu0
    %2588 = vmatprep.mubr.f32.mxu0 0.0
    %2589 = vmatmul.mubr.f32.gmra.mxu0 %v2517
    %v2590 = vpop.f32.mrf.mxu0
    %v2591 = vadd.f32 %v2512, %v2590
    %v2592 = vpop.f32.mrf.mxu0
    %2593 = vdwg.mxu0
    %2596 = vrot.lane.b32.xlu0 %v2586, 120
    %v2597 = vpop.permute.xlu0 %2596
    %2598 = vrot.lane.b32.xlu0 %v2591, 120
    %v2599 = vpop.permute.xlu0 %2598
    %2600 = vrot.lane.b32.xlu0 %v2586, 112
    %v2601 = vpop.permute.xlu0 %2600
    %2602 = vrot.lane.b32.xlu0 %v2591, 112
    %v2603 = vpop.permute.xlu0 %2602
    %2604 = vrot.lane.b32.xlu0 %v2586, 104
    %v2605 = vpop.permute.xlu0 %2604
    %2606 = vrot.lane.b32.xlu0 %v2591, 104
    %v2607 = vpop.permute.xlu0 %2606
    %2608 = vrot.lane.b32.xlu0 %v2586, 96
    %v2609 = vpop.permute.xlu0 %2608
    %2610 = vrot.lane.b32.xlu0 %v2591, 96
    %v2611 = vpop.permute.xlu0 %2610
    %v2612 = vsel %vm156, %v2586, 0
    %v2614 = vsel %vm156, %v2591, 0
    %v2616 = vsel %vm156, %v2609, 0
    %v2618 = vsel %vm156, %v2611, 0
    %2620 = vmatprep.subr.mxu0 0.0
    %2621 = vmatpush1.xpose.msra.mxu0 0.0
    %2622 = vmatprep.subr.mxu0 0.0
    %2623 = vmatpush1.xpose.msra.mxu0 0.0
    %2624 = vmatprep.subr.mxu0 0.0
    %2625 = vmatpush1.xpose.msra.mxu0 0.0
    %2626 = vmatprep.subr.mxu0 0.0
    %2627 = vmatpush1.xpose.msra.mxu0 0.0
    %2628 = vmatprep.subr.mxu0 0.0
    %2629 = vmatpush1.xpose.msra.mxu0 0.0
    %2630 = vmatprep.subr.mxu0 0.0
    %2631 = vmatpush1.xpose.msra.mxu0 0.0
    %2632 = vmatprep.subr.mxu0 0.0
    %2633 = vmatpush1.xpose.msra.mxu0 0.0
    %2634 = vmatprep.subr.mxu0 0.0
    %2635 = vmatpush1.xpose.msra.mxu0 0.0
    %2636 = vmatprep.subr.mxu0 0.0
    %2637 = vmatpush1.xpose.msra.mxu0 0.0
    %2638 = vmatprep.subr.mxu0 0.0
    %2639 = vmatpush1.xpose.msra.mxu0 0.0
    %2640 = vmatprep.subr.mxu0 0.0
    %2641 = vmatpush1.xpose.msra.mxu0 0.0
    %2642 = vmatprep.subr.mxu0 0.0
    %2643 = vmatpush1.xpose.msra.mxu0 0.0
    %2644 = vmatprep.subr.mxu0 0.0
    %2645 = vmatpush1.xpose.msra.mxu0 0.0
    %2646 = vmatprep.subr.mxu0 0.0
    %2647 = vmatpush1.xpose.msra.mxu0 0.0
    %2648 = vmatprep.subr.mxu0 0.0
    %2649 = vmatpush1.xpose.msra.mxu0 %v2618
    %2650 = vmatprep.subr.mxu0 0.0
    %2651 = vmatpush1.xpose.msra.mxu0 %v2616
    %2652 = vmatprep.subr.mxu0 0.0
    %2653 = vmatpush2.xpose.msra.mxu0 0.0
    %2654 = vmatprep.subr.mxu0 0.0
    %2655 = vmatpush2.xpose.msra.mxu0 0.0
    %2656 = vmatprep.subr.mxu0 0.0
    %2657 = vmatpush2.xpose.msra.mxu0 0.0
    %2658 = vmatprep.subr.mxu0 0.0
    %2659 = vmatpush2.xpose.msra.mxu0 0.0
    %2660 = vmatprep.subr.mxu0 0.0
    %2661 = vmatpush2.xpose.msra.mxu0 0.0
    %2662 = vmatprep.subr.mxu0 0.0
    %2663 = vmatpush2.xpose.msra.mxu0 0.0
    %2664 = vmatprep.subr.mxu0 0.0
    %2665 = vmatpush2.xpose.msra.mxu0 0.0
    %2666 = vmatprep.subr.mxu0 0.0
    %2667 = vmatpush2.xpose.msra.mxu0 0.0
    %2668 = vmatprep.subr.mxu0 0.0
    %2669 = vmatpush2.xpose.msra.mxu0 0.0
    %2670 = vmatprep.subr.mxu0 0.0
    %2671 = vmatpush2.xpose.msra.mxu0 0.0
    %2672 = vmatprep.subr.mxu0 0.0
    %2673 = vmatpush2.xpose.msra.mxu0 0.0
    %2674 = vmatprep.subr.mxu0 0.0
    %2675 = vmatpush2.xpose.msra.mxu0 0.0
    %2676 = vmatprep.subr.mxu0 0.0
    %2677 = vmatpush2.xpose.msra.mxu0 0.0
    %2678 = vmatprep.subr.mxu0 0.0
    %2679 = vmatpush2.xpose.msra.mxu0 0.0
    %2680 = vmatprep.subr.mxu0 0.0
    %2681 = vmatpush2.xpose.msra.mxu0 0.0
    %2682 = vmatprep.subr.mxu0 0.0
    %2683 = vmatpush2.xpose.msra.mxu0 0.0
    %2684 = vmatprep.mubr.f32.mxu0 0.0
    %2685 = vmatmul.mubr.f32.gmra.mxu0 %v2612
    %v2686 = vpop.f32.mrf.mxu0
    %v2687 = vadd.f32 %v25, %v2686
    %v2688 = vpop.f32.mrf.mxu0
    %2689 = vmatprep.mubr.f32.mxu0 0.0
    %2690 = vmatmul.mubr.f32.gmra.mxu0 %v2614
    %v2691 = vpop.f32.mrf.mxu0
    %v2692 = vadd.f32 %v26, %v2691
    %v2693 = vpop.f32.mrf.mxu0
    %2694 = vdwg.mxu0
    %2695 = vrot.lane.b32.xlu0 %v2597, 96
    %v2696 = vpop.permute.xlu0 %2695
    %2697 = vrot.lane.b32.xlu0 %v2599, 96
    %v2698 = vpop.permute.xlu0 %2697
    %v2699 = vsel %vm156, %v2597, 0
    %v2701 = vsel %vm156, %v2599, 0
    %v2703 = vsel %vm156, %v2696, 0
    %v2705 = vsel %vm156, %v2698, 0
    %2707 = vmatprep.subr.mxu0 0.0
    %2708 = vmatpush1.xpose.msra.mxu0 0.0
    %2709 = vmatprep.subr.mxu0 0.0
    %2710 = vmatpush1.xpose.msra.mxu0 0.0
    %2711 = vmatprep.subr.mxu0 0.0
    %2712 = vmatpush1.xpose.msra.mxu0 0.0
    %2713 = vmatprep.subr.mxu0 0.0
    %2714 = vmatpush1.xpose.msra.mxu0 0.0
    %2715 = vmatprep.subr.mxu0 0.0
    %2716 = vmatpush1.xpose.msra.mxu0 0.0
    %2717 = vmatprep.subr.mxu0 0.0
    %2718 = vmatpush1.xpose.msra.mxu0 0.0
    %2719 = vmatprep.subr.mxu0 0.0
    %2720 = vmatpush1.xpose.msra.mxu0 0.0
    %2721 = vmatprep.subr.mxu0 0.0
    %2722 = vmatpush1.xpose.msra.mxu0 0.0
    %2723 = vmatprep.subr.mxu0 0.0
    %2724 = vmatpush1.xpose.msra.mxu0 0.0
    %2725 = vmatprep.subr.mxu0 0.0
    %2726 = vmatpush1.xpose.msra.mxu0 0.0
    %2727 = vmatprep.subr.mxu0 0.0
    %2728 = vmatpush1.xpose.msra.mxu0 0.0
    %2729 = vmatprep.subr.mxu0 0.0
    %2730 = vmatpush1.xpose.msra.mxu0 0.0
    %2731 = vmatprep.subr.mxu0 0.0
    %2732 = vmatpush1.xpose.msra.mxu0 0.0
    %2733 = vmatprep.subr.mxu0 0.0
    %2734 = vmatpush1.xpose.msra.mxu0 0.0
    %2735 = vmatprep.subr.mxu0 0.0
    %2736 = vmatpush1.xpose.msra.mxu0 %v2705
    %2737 = vmatprep.subr.mxu0 0.0
    %2738 = vmatpush1.xpose.msra.mxu0 %v2703
    %2739 = vmatprep.subr.mxu0 0.0
    %2740 = vmatpush2.xpose.msra.mxu0 0.0
    %2741 = vmatprep.subr.mxu0 0.0
    %2742 = vmatpush2.xpose.msra.mxu0 0.0
    %2743 = vmatprep.subr.mxu0 0.0
    %2744 = vmatpush2.xpose.msra.mxu0 0.0
    %2745 = vmatprep.subr.mxu0 0.0
    %2746 = vmatpush2.xpose.msra.mxu0 0.0
    %2747 = vmatprep.subr.mxu0 0.0
    %2748 = vmatpush2.xpose.msra.mxu0 0.0
    %2749 = vmatprep.subr.mxu0 0.0
    %2750 = vmatpush2.xpose.msra.mxu0 0.0
    %2751 = vmatprep.subr.mxu0 0.0
    %2752 = vmatpush2.xpose.msra.mxu0 0.0
    %2753 = vmatprep.subr.mxu0 0.0
    %2754 = vmatpush2.xpose.msra.mxu0 0.0
    %2755 = vmatprep.subr.mxu0 0.0
    %2756 = vmatpush2.xpose.msra.mxu0 0.0
    %2757 = vmatprep.subr.mxu0 0.0
    %2758 = vmatpush2.xpose.msra.mxu0 0.0
    %2759 = vmatprep.subr.mxu0 0.0
    %2760 = vmatpush2.xpose.msra.mxu0 0.0
    %2761 = vmatprep.subr.mxu0 0.0
    %2762 = vmatpush2.xpose.msra.mxu0 0.0
    %2763 = vmatprep.subr.mxu0 0.0
    %2764 = vmatpush2.xpose.msra.mxu0 0.0
    %2765 = vmatprep.subr.mxu0 0.0
    %2766 = vmatpush2.xpose.msra.mxu0 0.0
    %2767 = vmatprep.subr.mxu0 0.0
    %2768 = vmatpush2.xpose.msra.mxu0 0.0
    %2769 = vmatprep.subr.mxu0 0.0
    %2770 = vmatpush2.xpose.msra.mxu0 0.0
    %2771 = vmatprep.mubr.f32.mxu0 0.0
    %2772 = vmatmul.mubr.f32.gmra.mxu0 %v2699
    %v2773 = vpop.f32.mrf.mxu0
    %v2774 = vadd.f32 %v25, %v2773
    %v2775 = vpop.f32.mrf.mxu0
    %2776 = vmatprep.mubr.f32.mxu0 0.0
    %2777 = vmatmul.mubr.f32.gmra.mxu0 %v2701
    %v2778 = vpop.f32.mrf.mxu0
    %v2779 = vadd.f32 %v26, %v2778
    %v2780 = vpop.f32.mrf.mxu0
    %2781 = vdwg.mxu0
    %2782 = vrot.lane.b32.xlu0 %v2601, 96
    %v2783 = vpop.permute.xlu0 %2782
    %2784 = vrot.lane.b32.xlu0 %v2603, 96
    %v2785 = vpop.permute.xlu0 %2784
    %v2786 = vsel %vm156, %v2601, 0
    %v2788 = vsel %vm156, %v2603, 0
    %v2790 = vsel %vm156, %v2783, 0
    %v2792 = vsel %vm156, %v2785, 0
    %2794 = vmatprep.subr.mxu0 0.0
    %2795 = vmatpush1.xpose.msra.mxu0 0.0
    %2796 = vmatprep.subr.mxu0 0.0
    %2797 = vmatpush1.xpose.msra.mxu0 0.0
    %2798 = vmatprep.subr.mxu0 0.0
    %2799 = vmatpush1.xpose.msra.mxu0 0.0
    %2800 = vmatprep.subr.mxu0 0.0
    %2801 = vmatpush1.xpose.msra.mxu0 0.0
    %2802 = vmatprep.subr.mxu0 0.0
    %2803 = vmatpush1.xpose.msra.mxu0 0.0
    %2804 = vmatprep.subr.mxu0 0.0
    %2805 = vmatpush1.xpose.msra.mxu0 0.0
    %2806 = vmatprep.subr.mxu0 0.0
    %2807 = vmatpush1.xpose.msra.mxu0 0.0
    %2808 = vmatprep.subr.mxu0 0.0
    %2809 = vmatpush1.xpose.msra.mxu0 0.0
    %2810 = vmatprep.subr.mxu0 0.0
    %2811 = vmatpush1.xpose.msra.mxu0 0.0
    %2812 = vmatprep.subr.mxu0 0.0
    %2813 = vmatpush1.xpose.msra.mxu0 0.0
    %2814 = vmatprep.subr.mxu0 0.0
    %2815 = vmatpush1.xpose.msra.mxu0 0.0
    %2816 = vmatprep.subr.mxu0 0.0
    %2817 = vmatpush1.xpose.msra.mxu0 0.0
    %2818 = vmatprep.subr.mxu0 0.0
    %2819 = vmatpush1.xpose.msra.mxu0 0.0
    %2820 = vmatprep.subr.mxu0 0.0
    %2821 = vmatpush1.xpose.msra.mxu0 0.0
    %2822 = vmatprep.subr.mxu0 0.0
    %2823 = vmatpush1.xpose.msra.mxu0 %v2792
    %2824 = vmatprep.subr.mxu0 0.0
    %2825 = vmatpush1.xpose.msra.mxu0 %v2790
    %2826 = vmatprep.subr.mxu0 0.0
    %2827 = vmatpush2.xpose.msra.mxu0 0.0
    %2828 = vmatprep.subr.mxu0 0.0
    %2829 = vmatpush2.xpose.msra.mxu0 0.0
    %2830 = vmatprep.subr.mxu0 0.0
    %2831 = vmatpush2.xpose.msra.mxu0 0.0
    %2832 = vmatprep.subr.mxu0 0.0
    %2833 = vmatpush2.xpose.msra.mxu0 0.0
    %2834 = vmatprep.subr.mxu0 0.0
    %2835 = vmatpush2.xpose.msra.mxu0 0.0
    %2836 = vmatprep.subr.mxu0 0.0
    %2837 = vmatpush2.xpose.msra.mxu0 0.0
    %2838 = vmatprep.subr.mxu0 0.0
    %2839 = vmatpush2.xpose.msra.mxu0 0.0
    %2840 = vmatprep.subr.mxu0 0.0
    %2841 = vmatpush2.xpose.msra.mxu0 0.0
    %2842 = vmatprep.subr.mxu0 0.0
    %2843 = vmatpush2.xpose.msra.mxu0 0.0
    %2844 = vmatprep.subr.mxu0 0.0
    %2845 = vmatpush2.xpose.msra.mxu0 0.0
    %2846 = vmatprep.subr.mxu0 0.0
    %2847 = vmatpush2.xpose.msra.mxu0 0.0
    %2848 = vmatprep.subr.mxu0 0.0
    %2849 = vmatpush2.xpose.msra.mxu0 0.0
    %2850 = vmatprep.subr.mxu0 0.0
    %2851 = vmatpush2.xpose.msra.mxu0 0.0
    %2852 = vmatprep.subr.mxu0 0.0
    %2853 = vmatpush2.xpose.msra.mxu0 0.0
    %2854 = vmatprep.subr.mxu0 0.0
    %2855 = vmatpush2.xpose.msra.mxu0 0.0
    %2856 = vmatprep.subr.mxu0 0.0
    %2857 = vmatpush2.xpose.msra.mxu0 0.0
    %2858 = vmatprep.mubr.f32.mxu0 0.0
    %2859 = vmatmul.mubr.f32.gmra.mxu0 %v2786
    %v2860 = vpop.f32.mrf.mxu0
    %v2861 = vadd.f32 %v25, %v2860
    %v2862 = vpop.f32.mrf.mxu0
    %2863 = vmatprep.mubr.f32.mxu0 0.0
    %2864 = vmatmul.mubr.f32.gmra.mxu0 %v2788
    %v2865 = vpop.f32.mrf.mxu0
    %v2866 = vadd.f32 %v26, %v2865
    %v2867 = vpop.f32.mrf.mxu0
    %2868 = vdwg.mxu0
    %2869 = vrot.lane.b32.xlu0 %v2605, 96
    %v2870 = vpop.permute.xlu0 %2869
    %2871 = vrot.lane.b32.xlu0 %v2607, 96
    %v2872 = vpop.permute.xlu0 %2871
    %v2873 = vsel %vm156, %v2605, 0
    %v2875 = vsel %vm156, %v2607, 0
    %v2877 = vsel %vm156, %v2870, 0
    %v2879 = vsel %vm156, %v2872, 0
    %2881 = vmatprep.subr.mxu0 0.0
    %2882 = vmatpush1.xpose.msra.mxu0 0.0
    %2883 = vmatprep.subr.mxu0 0.0
    %2884 = vmatpush1.xpose.msra.mxu0 0.0
    %2885 = vmatprep.subr.mxu0 0.0
    %2886 = vmatpush1.xpose.msra.mxu0 0.0
    %2887 = vmatprep.subr.mxu0 0.0
    %2888 = vmatpush1.xpose.msra.mxu0 0.0
    %2889 = vmatprep.subr.mxu0 0.0
    %2890 = vmatpush1.xpose.msra.mxu0 0.0
    %2891 = vmatprep.subr.mxu0 0.0
    %2892 = vmatpush1.xpose.msra.mxu0 0.0
    %2893 = vmatprep.subr.mxu0 0.0
    %2894 = vmatpush1.xpose.msra.mxu0 0.0
    %2895 = vmatprep.subr.mxu0 0.0
    %2896 = vmatpush1.xpose.msra.mxu0 0.0
    %2897 = vmatprep.subr.mxu0 0.0
    %2898 = vmatpush1.xpose.msra.mxu0 0.0
    %2899 = vmatprep.subr.mxu0 0.0
    %2900 = vmatpush1.xpose.msra.mxu0 0.0
    %2901 = vmatprep.subr.mxu0 0.0
    %2902 = vmatpush1.xpose.msra.mxu0 0.0
    %2903 = vmatprep.subr.mxu0 0.0
    %2904 = vmatpush1.xpose.msra.mxu0 0.0
    %2905 = vmatprep.subr.mxu0 0.0
    %2906 = vmatpush1.xpose.msra.mxu0 0.0
    %2907 = vmatprep.subr.mxu0 0.0
    %2908 = vmatpush1.xpose.msra.mxu0 0.0
    %2909 = vmatprep.subr.mxu0 0.0
    %2910 = vmatpush1.xpose.msra.mxu0 %v2879
    %2911 = vmatprep.subr.mxu0 0.0
    %2912 = vmatpush1.xpose.msra.mxu0 %v2877
    %2913 = vmatprep.subr.mxu0 0.0
    %2914 = vmatpush2.xpose.msra.mxu0 0.0
    %2915 = vmatprep.subr.mxu0 0.0
    %2916 = vmatpush2.xpose.msra.mxu0 0.0
    %2917 = vmatprep.subr.mxu0 0.0
    %2918 = vmatpush2.xpose.msra.mxu0 0.0
    %2919 = vmatprep.subr.mxu0 0.0
    %2920 = vmatpush2.xpose.msra.mxu0 0.0
    %2921 = vmatprep.subr.mxu0 0.0
    %2922 = vmatpush2.xpose.msra.mxu0 0.0
    %2923 = vmatprep.subr.mxu0 0.0
    %2924 = vmatpush2.xpose.msra.mxu0 0.0
    %2925 = vmatprep.subr.mxu0 0.0
    %2926 = vmatpush2.xpose.msra.mxu0 0.0
    %2927 = vmatprep.subr.mxu0 0.0
    %2928 = vmatpush2.xpose.msra.mxu0 0.0
    %2929 = vmatprep.subr.mxu0 0.0
    %2930 = vmatpush2.xpose.msra.mxu0 0.0
    %2931 = vmatprep.subr.mxu0 0.0
    %2932 = vmatpush2.xpose.msra.mxu0 0.0
    %2933 = vmatprep.subr.mxu0 0.0
    %2934 = vmatpush2.xpose.msra.mxu0 0.0
    %2935 = vmatprep.subr.mxu0 0.0
    %2936 = vmatpush2.xpose.msra.mxu0 0.0
    %2937 = vmatprep.subr.mxu0 0.0
    %2938 = vmatpush2.xpose.msra.mxu0 0.0
    %2939 = vmatprep.subr.mxu0 0.0
    %2940 = vmatpush2.xpose.msra.mxu0 0.0
    %2941 = vmatprep.subr.mxu0 0.0
    %2942 = vmatpush2.xpose.msra.mxu0 0.0
    %2943 = vmatprep.subr.mxu0 0.0
    %2944 = vmatpush2.xpose.msra.mxu0 0.0
    %2945 = vmatprep.mubr.f32.mxu0 0.0
    %2946 = vmatmul.mubr.f32.gmra.mxu0 %v2873
    %v2947 = vpop.f32.mrf.mxu0
    %v2948 = vadd.f32 %v25, %v2947
    %v2949 = vpop.f32.mrf.mxu0
    %2950 = vmatprep.mubr.f32.mxu0 0.0
    %2951 = vmatmul.mubr.f32.gmra.mxu0 %v2875
    %v2952 = vpop.f32.mrf.mxu0
    %v2953 = vadd.f32 %v26, %v2952
    %v2954 = vpop.f32.mrf.mxu0
    %2955 = vdwg.mxu0
    %v2956 = vsel %vm501, %v2687, -inf
    %2957 = vmax.xlane.f32.xlu0 %v2956
    %v2958 = vpop.xlane.xlu0 %2957
    %v2959 = vsel %vm501, %v2692, -inf
    %2960 = vmax.xlane.f32.xlu0 %v2959
    %v2961 = vpop.xlane.xlu0 %2960
    %v2962 = vsel %vm501, %v2774, -inf
    %2963 = vmax.xlane.f32.xlu0 %v2962
    %v2964 = vpop.xlane.xlu0 %2963
    %v2965 = vsel %vm501, %v2779, -inf
    %2966 = vmax.xlane.f32.xlu0 %v2965
    %v2967 = vpop.xlane.xlu0 %2966
    %v2968 = vsel %vm501, %v2861, -inf
    %2969 = vmax.xlane.f32.xlu0 %v2968
    %v2970 = vpop.xlane.xlu0 %2969
    %v2971 = vsel %vm501, %v2866, -inf
    %2972 = vmax.xlane.f32.xlu0 %v2971
    %v2973 = vpop.xlane.xlu0 %2972
    %v2974 = vsel %vm501, %v2948, -inf
    %2975 = vmax.xlane.f32.xlu0 %v2974
    %v2976 = vpop.xlane.xlu0 %2975
    %v2977 = vsel %vm501, %v2953, -inf
    %2978 = vmax.xlane.f32.xlu0 %v2977
    %v2979 = vpop.xlane.xlu0 %2978
    %v2980 = vsub.f32 %v2687, %v2958
    %v2981 = vsub.f32 %v2692, %v2961
    %v2982 = vsub.f32 %v2774, %v2964
    %v2983 = vsub.f32 %v2779, %v2967
    %v2984 = vsub.f32 %v2861, %v2970
    %v2985 = vsub.f32 %v2866, %v2973
    %v2986 = vsub.f32 %v2948, %v2976
    %v2987 = vsub.f32 %v2953, %v2979
    %v2988 = vmul.f32 %v2980, 1.442695
    %v2989 = vpow.pop %v2988
    %v2990 = vmul.f32 %v2981, 1.442695
    %v2991 = vpow.pop %v2990
    %v2992 = vmul.f32 %v2982, 1.442695
    %v2993 = vpow.pop %v2992
    %v2994 = vmul.f32 %v2983, 1.442695
    %v2995 = vpow.pop %v2994
    %v2996 = vmul.f32 %v2984, 1.442695
    %v2997 = vpow.pop %v2996
    %v2998 = vmul.f32 %v2985, 1.442695
    %v2999 = vpow.pop %v2998
    %v3000 = vmul.f32 %v2986, 1.442695
    %v3001 = vpow.pop %v3000
    %v3002 = vmul.f32 %v2987, 1.442695
    %v3003 = vpow.pop %v3002
    %v3004 = vsel %vm501, %v2989, 0.0
    %3005 = vadd.xlane.f32.xlu0 %v3004
    %v3006 = vpop.xlane.xlu0 %3005
    %v3007 = vsel %vm501, %v2991, 0.0
    %3008 = vadd.xlane.f32.xlu0 %v3007
    %v3009 = vpop.xlane.xlu0 %3008
    %v3010 = vsel %vm501, %v2993, 0.0
    %3011 = vadd.xlane.f32.xlu0 %v3010
    %v3012 = vpop.xlane.xlu0 %3011
    %v3013 = vsel %vm501, %v2995, 0.0
    %3014 = vadd.xlane.f32.xlu0 %v3013
    %v3015 = vpop.xlane.xlu0 %3014
    %v3016 = vsel %vm501, %v2997, 0.0
    %3017 = vadd.xlane.f32.xlu0 %v3016
    %v3018 = vpop.xlane.xlu0 %3017
    %v3019 = vsel %vm501, %v2999, 0.0
    %3020 = vadd.xlane.f32.xlu0 %v3019
    %v3021 = vpop.xlane.xlu0 %3020
    %v3022 = vsel %vm501, %v3001, 0.0
    %3023 = vadd.xlane.f32.xlu0 %v3022
    %v3024 = vpop.xlane.xlu0 %3023
    %v3025 = vsel %vm501, %v3003, 0.0
    %3026 = vadd.xlane.f32.xlu0 %v3025
    %v3027 = vpop.xlane.xlu0 %3026
    %v3028 = vrcp.pop %v3006
    %v3029 = vmul.f32 %v2989, %v3028
    %v3030 = vrcp.pop %v3009
    %v3031 = vmul.f32 %v2991, %v3030
    %v3032 = vrcp.pop %v3012
    %v3033 = vmul.f32 %v2993, %v3032
    %v3034 = vrcp.pop %v3015
    %v3035 = vmul.f32 %v2995, %v3034
    %v3036 = vrcp.pop %v3018
    %v3037 = vmul.f32 %v2997, %v3036
    %v3038 = vrcp.pop %v3021
    %v3039 = vmul.f32 %v2999, %v3038
    %v3040 = vrcp.pop %v3024
    %v3041 = vmul.f32 %v3001, %v3040
    %v3042 = vrcp.pop %v3027
    %v3043 = vmul.f32 %v3003, %v3042
    %3044 = vrot.lane.b32.xlu0 %v2586, 64
    %v3045 = vpop.permute.xlu0 %3044
    %3046 = vrot.lane.b32.xlu0 %v2591, 64
    %v3047 = vpop.permute.xlu0 %3046
    %v3051 = vsel %vm501, %v3029, 0
    %v3054 = vsel %vm501, %v3031, 0
    %3056 = vmatprep.subr.mxu0 0.0
    %3057 = vmatpush1.msra.mxu0 0.0
    %3058 = vmatprep.subr.mxu0 0.0
    %3059 = vmatpush1.msra.mxu0 0.0
    %3060 = vmatprep.subr.mxu0 0.0
    %3061 = vmatpush1.msra.mxu0 0.0
    %3062 = vmatprep.subr.mxu0 0.0
    %3063 = vmatpush1.msra.mxu0 0.0
    %3064 = vmatprep.subr.mxu0 0.0
    %3065 = vmatpush1.msra.mxu0 0.0
    %3066 = vmatprep.subr.mxu0 0.0
    %3067 = vmatpush1.msra.mxu0 0.0
    %3068 = vmatprep.subr.mxu0 0.0
    %3069 = vmatpush1.msra.mxu0 0.0
    %3070 = vmatprep.subr.mxu0 0.0
    %3071 = vmatpush1.msra.mxu0 0.0
    %3072 = vmatprep.subr.mxu0 0.0
    %3073 = vmatpush1.msra.mxu0 0.0
    %3074 = vmatprep.subr.mxu0 0.0
    %3075 = vmatpush1.msra.mxu0 0.0
    %3076 = vmatprep.subr.mxu0 0.0
    %3077 = vmatpush1.msra.mxu0 0.0
    %3078 = vmatprep.subr.mxu0 0.0
    %3079 = vmatpush1.msra.mxu0 0.0
    %3080 = vmatprep.subr.mxu0 0.0
    %3081 = vmatpush1.msra.mxu0 0.0
    %3082 = vmatprep.subr.mxu0 0.0
    %3083 = vmatpush1.msra.mxu0 0.0
    %3084 = vmatprep.subr.mxu0 0.0
    %3085 = vmatpush1.msra.mxu0 %v3047
    %3086 = vmatprep.subr.mxu0 0.0
    %3087 = vmatpush1.msra.mxu0 %v3045
    %3088 = vmatprep.subr.mxu0 0.0
    %3089 = vmatpush2.msra.mxu0 0.0
    %3090 = vmatprep.subr.mxu0 0.0
    %3091 = vmatpush2.msra.mxu0 0.0
    %3092 = vmatprep.subr.mxu0 0.0
    %3093 = vmatpush2.msra.mxu0 0.0
    %3094 = vmatprep.subr.mxu0 0.0
    %3095 = vmatpush2.msra.mxu0 0.0
    %3096 = vmatprep.subr.mxu0 0.0
    %3097 = vmatpush2.msra.mxu0 0.0
    %3098 = vmatprep.subr.mxu0 0.0
    %3099 = vmatpush2.msra.mxu0 0.0
    %3100 = vmatprep.subr.mxu0 0.0
    %3101 = vmatpush2.msra.mxu0 0.0
    %3102 = vmatprep.subr.mxu0 0.0
    %3103 = vmatpush2.msra.mxu0 0.0
    %3104 = vmatprep.subr.mxu0 0.0
    %3105 = vmatpush2.msra.mxu0 0.0
    %3106 = vmatprep.subr.mxu0 0.0
    %3107 = vmatpush2.msra.mxu0 0.0
    %3108 = vmatprep.subr.mxu0 0.0
    %3109 = vmatpush2.msra.mxu0 0.0
    %3110 = vmatprep.subr.mxu0 0.0
    %3111 = vmatpush2.msra.mxu0 0.0
    %3112 = vmatprep.subr.mxu0 0.0
    %3113 = vmatpush2.msra.mxu0 0.0
    %3114 = vmatprep.subr.mxu0 0.0
    %3115 = vmatpush2.msra.mxu0 0.0
    %3116 = vmatprep.subr.mxu0 0.0
    %3117 = vmatpush2.msra.mxu0 0.0
    %3118 = vmatprep.subr.mxu0 0.0
    %3119 = vmatpush2.msra.mxu0 0.0
    %3120 = vmatprep.mubr.f32.mxu0 0.0
    %3121 = vmatmul.mubr.f32.gmra.mxu0 %v3051
    %v3122 = vpop.f32.mrf.mxu0
    %v3123 = vadd.f32 0.0, %v3122
    %v3124 = vpop.f32.mrf.mxu0
    %3125 = vmatprep.mubr.f32.mxu0 0.0
    %3126 = vmatmul.mubr.f32.gmra.mxu0 %v3054
    %v3127 = vpop.f32.mrf.mxu0
    %v3128 = vadd.f32 0.0, %v3127
    %v3129 = vpop.f32.mrf.mxu0
    %3130 = vdwg.mxu0
    %3131 = vrot.lane.b32.xlu0 %v2597, 64
    %v3132 = vpop.permute.xlu0 %3131
    %3133 = vrot.lane.b32.xlu0 %v2599, 64
    %v3134 = vpop.permute.xlu0 %3133
    %v3138 = vsel %vm501, %v3033, 0
    %v3141 = vsel %vm501, %v3035, 0
    %3143 = vmatprep.subr.mxu0 0.0
    %3144 = vmatpush1.msra.mxu0 0.0
    %3145 = vmatprep.subr.mxu0 0.0
    %3146 = vmatpush1.msra.mxu0 0.0
    %3147 = vmatprep.subr.mxu0 0.0
    %3148 = vmatpush1.msra.mxu0 0.0
    %3149 = vmatprep.subr.mxu0 0.0
    %3150 = vmatpush1.msra.mxu0 0.0
    %3151 = vmatprep.subr.mxu0 0.0
    %3152 = vmatpush1.msra.mxu0 0.0
    %3153 = vmatprep.subr.mxu0 0.0
    %3154 = vmatpush1.msra.mxu0 0.0
    %3155 = vmatprep.subr.mxu0 0.0
    %3156 = vmatpush1.msra.mxu0 0.0
    %3157 = vmatprep.subr.mxu0 0.0
    %3158 = vmatpush1.msra.mxu0 0.0
    %3159 = vmatprep.subr.mxu0 0.0
    %3160 = vmatpush1.msra.mxu0 0.0
    %3161 = vmatprep.subr.mxu0 0.0
    %3162 = vmatpush1.msra.mxu0 0.0
    %3163 = vmatprep.subr.mxu0 0.0
    %3164 = vmatpush1.msra.mxu0 0.0
    %3165 = vmatprep.subr.mxu0 0.0
    %3166 = vmatpush1.msra.mxu0 0.0
    %3167 = vmatprep.subr.mxu0 0.0
    %3168 = vmatpush1.msra.mxu0 0.0
    %3169 = vmatprep.subr.mxu0 0.0
    %3170 = vmatpush1.msra.mxu0 0.0
    %3171 = vmatprep.subr.mxu0 0.0
    %3172 = vmatpush1.msra.mxu0 %v3134
    %3173 = vmatprep.subr.mxu0 0.0
    %3174 = vmatpush1.msra.mxu0 %v3132
    %3175 = vmatprep.subr.mxu0 0.0
    %3176 = vmatpush2.msra.mxu0 0.0
    %3177 = vmatprep.subr.mxu0 0.0
    %3178 = vmatpush2.msra.mxu0 0.0
    %3179 = vmatprep.subr.mxu0 0.0
    %3180 = vmatpush2.msra.mxu0 0.0
    %3181 = vmatprep.subr.mxu0 0.0
    %3182 = vmatpush2.msra.mxu0 0.0
    %3183 = vmatprep.subr.mxu0 0.0
    %3184 = vmatpush2.msra.mxu0 0.0
    %3185 = vmatprep.subr.mxu0 0.0
    %3186 = vmatpush2.msra.mxu0 0.0
    %3187 = vmatprep.subr.mxu0 0.0
    %3188 = vmatpush2.msra.mxu0 0.0
    %3189 = vmatprep.subr.mxu0 0.0
    %3190 = vmatpush2.msra.mxu0 0.0
    %3191 = vmatprep.subr.mxu0 0.0
    %3192 = vmatpush2.msra.mxu0 0.0
    %3193 = vmatprep.subr.mxu0 0.0
    %3194 = vmatpush2.msra.mxu0 0.0
    %3195 = vmatprep.subr.mxu0 0.0
    %3196 = vmatpush2.msra.mxu0 0.0
    %3197 = vmatprep.subr.mxu0 0.0
    %3198 = vmatpush2.msra.mxu0 0.0
    %3199 = vmatprep.subr.mxu0 0.0
    %3200 = vmatpush2.msra.mxu0 0.0
    %3201 = vmatprep.subr.mxu0 0.0
    %3202 = vmatpush2.msra.mxu0 0.0
    %3203 = vmatprep.subr.mxu0 0.0
    %3204 = vmatpush2.msra.mxu0 0.0
    %3205 = vmatprep.subr.mxu0 0.0
    %3206 = vmatpush2.msra.mxu0 0.0
    %3207 = vmatprep.mubr.f32.mxu0 0.0
    %3208 = vmatmul.mubr.f32.gmra.mxu0 %v3138
    %v3209 = vpop.f32.mrf.mxu0
    %v3210 = vadd.f32 0.0, %v3209
    %v3211 = vpop.f32.mrf.mxu0
    %3212 = vmatprep.mubr.f32.mxu0 0.0
    %3213 = vmatmul.mubr.f32.gmra.mxu0 %v3141
    %v3214 = vpop.f32.mrf.mxu0
    %v3215 = vadd.f32 0.0, %v3214
    %v3216 = vpop.f32.mrf.mxu0
    %3217 = vdwg.mxu0
    %3218 = vrot.lane.b32.xlu0 %v2601, 64
    %v3219 = vpop.permute.xlu0 %3218
    %3220 = vrot.lane.b32.xlu0 %v2603, 64
    %v3221 = vpop.permute.xlu0 %3220
    %v3225 = vsel %vm501, %v3037, 0
    %v3228 = vsel %vm501, %v3039, 0
    %3230 = vmatprep.subr.mxu0 0.0
    %3231 = vmatpush1.msra.mxu0 0.0
    %3232 = vmatprep.subr.mxu0 0.0
    %3233 = vmatpush1.msra.mxu0 0.0
    %3234 = vmatprep.subr.mxu0 0.0
    %3235 = vmatpush1.msra.mxu0 0.0
    %3236 = vmatprep.subr.mxu0 0.0
    %3237 = vmatpush1.msra.mxu0 0.0
    %3238 = vmatprep.subr.mxu0 0.0
    %3239 = vmatpush1.msra.mxu0 0.0
    %3240 = vmatprep.subr.mxu0 0.0
    %3241 = vmatpush1.msra.mxu0 0.0
    %3242 = vmatprep.subr.mxu0 0.0
    %3243 = vmatpush1.msra.mxu0 0.0
    %3244 = vmatprep.subr.mxu0 0.0
    %3245 = vmatpush1.msra.mxu0 0.0
    %3246 = vmatprep.subr.mxu0 0.0
    %3247 = vmatpush1.msra.mxu0 0.0
    %3248 = vmatprep.subr.mxu0 0.0
    %3249 = vmatpush1.msra.mxu0 0.0
    %3250 = vmatprep.subr.mxu0 0.0
    %3251 = vmatpush1.msra.mxu0 0.0
    %3252 = vmatprep.subr.mxu0 0.0
    %3253 = vmatpush1.msra.mxu0 0.0
    %3254 = vmatprep.subr.mxu0 0.0
    %3255 = vmatpush1.msra.mxu0 0.0
    %3256 = vmatprep.subr.mxu0 0.0
    %3257 = vmatpush1.msra.mxu0 0.0
    %3258 = vmatprep.subr.mxu0 0.0
    %3259 = vmatpush1.msra.mxu0 %v3221
    %3260 = vmatprep.subr.mxu0 0.0
    %3261 = vmatpush1.msra.mxu0 %v3219
    %3262 = vmatprep.subr.mxu0 0.0
    %3263 = vmatpush2.msra.mxu0 0.0
    %3264 = vmatprep.subr.mxu0 0.0
    %3265 = vmatpush2.msra.mxu0 0.0
    %3266 = vmatprep.subr.mxu0 0.0
    %3267 = vmatpush2.msra.mxu0 0.0
    %3268 = vmatprep.subr.mxu0 0.0
    %3269 = vmatpush2.msra.mxu0 0.0
    %3270 = vmatprep.subr.mxu0 0.0
    %3271 = vmatpush2.msra.mxu0 0.0
    %3272 = vmatprep.subr.mxu0 0.0
    %3273 = vmatpush2.msra.mxu0 0.0
    %3274 = vmatprep.subr.mxu0 0.0
    %3275 = vmatpush2.msra.mxu0 0.0
    %3276 = vmatprep.subr.mxu0 0.0
    %3277 = vmatpush2.msra.mxu0 0.0
    %3278 = vmatprep.subr.mxu0 0.0
    %3279 = vmatpush2.msra.mxu0 0.0
    %3280 = vmatprep.subr.mxu0 0.0
    %3281 = vmatpush2.msra.mxu0 0.0
    %3282 = vmatprep.subr.mxu0 0.0
    %3283 = vmatpush2.msra.mxu0 0.0
    %3284 = vmatprep.subr.mxu0 0.0
    %3285 = vmatpush2.msra.mxu0 0.0
    %3286 = vmatprep.subr.mxu0 0.0
    %3287 = vmatpush2.msra.mxu0 0.0
    %3288 = vmatprep.subr.mxu0 0.0
    %3289 = vmatpush2.msra.mxu0 0.0
    %3290 = vmatprep.subr.mxu0 0.0
    %3291 = vmatpush2.msra.mxu0 0.0
    %3292 = vmatprep.subr.mxu0 0.0
    %3293 = vmatpush2.msra.mxu0 0.0
    %3294 = vmatprep.mubr.f32.mxu0 0.0
    %3295 = vmatmul.mubr.f32.gmra.mxu0 %v3225
    %v3296 = vpop.f32.mrf.mxu0
    %v3297 = vadd.f32 0.0, %v3296
    %v3298 = vpop.f32.mrf.mxu0
    %3299 = vmatprep.mubr.f32.mxu0 0.0
    %3300 = vmatmul.mubr.f32.gmra.mxu0 %v3228
    %v3301 = vpop.f32.mrf.mxu0
    %v3302 = vadd.f32 0.0, %v3301
    %v3303 = vpop.f32.mrf.mxu0
    %3304 = vdwg.mxu0
    %3305 = vrot.lane.b32.xlu0 %v2605, 64
    %v3306 = vpop.permute.xlu0 %3305
    %3307 = vrot.lane.b32.xlu0 %v2607, 64
    %v3308 = vpop.permute.xlu0 %3307
    %v3312 = vsel %vm501, %v3041, 0
    %v3315 = vsel %vm501, %v3043, 0
    %3317 = vmatprep.subr.mxu0 0.0
    %3318 = vmatpush1.msra.mxu0 0.0
    %3319 = vmatprep.subr.mxu0 0.0
    %3320 = vmatpush1.msra.mxu0 0.0
    %3321 = vmatprep.subr.mxu0 0.0
    %3322 = vmatpush1.msra.mxu0 0.0
    %3323 = vmatprep.subr.mxu0 0.0
    %3324 = vmatpush1.msra.mxu0 0.0
    %3325 = vmatprep.subr.mxu0 0.0
    %3326 = vmatpush1.msra.mxu0 0.0
    %3327 = vmatprep.subr.mxu0 0.0
    %3328 = vmatpush1.msra.mxu0 0.0
    %3329 = vmatprep.subr.mxu0 0.0
    %3330 = vmatpush1.msra.mxu0 0.0
    %3331 = vmatprep.subr.mxu0 0.0
    %3332 = vmatpush1.msra.mxu0 0.0
    %3333 = vmatprep.subr.mxu0 0.0
    %3334 = vmatpush1.msra.mxu0 0.0
    %3335 = vmatprep.subr.mxu0 0.0
    %3336 = vmatpush1.msra.mxu0 0.0
    %3337 = vmatprep.subr.mxu0 0.0
    %3338 = vmatpush1.msra.mxu0 0.0
    %3339 = vmatprep.subr.mxu0 0.0
    %3340 = vmatpush1.msra.mxu0 0.0
    %3341 = vmatprep.subr.mxu0 0.0
    %3342 = vmatpush1.msra.mxu0 0.0
    %3343 = vmatprep.subr.mxu0 0.0
    %3344 = vmatpush1.msra.mxu0 0.0
    %3345 = vmatprep.subr.mxu0 0.0
    %3346 = vmatpush1.msra.mxu0 %v3308
    %3347 = vmatprep.subr.mxu0 0.0
    %3348 = vmatpush1.msra.mxu0 %v3306
    %3349 = vmatprep.subr.mxu0 0.0
    %3350 = vmatpush2.msra.mxu0 0.0
    %3351 = vmatprep.subr.mxu0 0.0
    %3352 = vmatpush2.msra.mxu0 0.0
    %3353 = vmatprep.subr.mxu0 0.0
    %3354 = vmatpush2.msra.mxu0 0.0
    %3355 = vmatprep.subr.mxu0 0.0
    %3356 = vmatpush2.msra.mxu0 0.0
    %3357 = vmatprep.subr.mxu0 0.0
    %3358 = vmatpush2.msra.mxu0 0.0
    %3359 = vmatprep.subr.mxu0 0.0
    %3360 = vmatpush2.msra.mxu0 0.0
    %3361 = vmatprep.subr.mxu0 0.0
    %3362 = vmatpush2.msra.mxu0 0.0
    %3363 = vmatprep.subr.mxu0 0.0
    %3364 = vmatpush2.msra.mxu0 0.0
    %3365 = vmatprep.subr.mxu0 0.0
    %3366 = vmatpush2.msra.mxu0 0.0
    %3367 = vmatprep.subr.mxu0 0.0
    %3368 = vmatpush2.msra.mxu0 0.0
    %3369 = vmatprep.subr.mxu0 0.0
    %3370 = vmatpush2.msra.mxu0 0.0
    %3371 = vmatprep.subr.mxu0 0.0
    %3372 = vmatpush2.msra.mxu0 0.0
    %3373 = vmatprep.subr.mxu0 0.0
    %3374 = vmatpush2.msra.mxu0 0.0
    %3375 = vmatprep.subr.mxu0 0.0
    %3376 = vmatpush2.msra.mxu0 0.0
    %3377 = vmatprep.subr.mxu0 0.0
    %3378 = vmatpush2.msra.mxu0 0.0
    %3379 = vmatprep.subr.mxu0 0.0
    %3380 = vmatpush2.msra.mxu0 0.0
    %3381 = vmatprep.mubr.f32.mxu0 0.0
    %3382 = vmatmul.mubr.f32.gmra.mxu0 %v3312
    %v3383 = vpop.f32.mrf.mxu0
    %v3384 = vadd.f32 0.0, %v3383
    %v3385 = vpop.f32.mrf.mxu0
    %3386 = vmatprep.mubr.f32.mxu0 0.0
    %3387 = vmatmul.mubr.f32.gmra.mxu0 %v3315
    %v3388 = vpop.f32.mrf.mxu0
    %v3389 = vadd.f32 0.0, %v3388
    %v3390 = vpop.f32.mrf.mxu0
    %3391 = vdwg.mxu0
    %3394 = vrot.lane.b32.xlu0 %v3210, 8
    %v3395 = vpop.permute.xlu0 %3394
    %3396 = vrot.lane.b32.xlu0 %v3215, 8
    %v3397 = vpop.permute.xlu0 %3396
    %3402 = vrot.lane.b32.xlu0 %v3297, 16
    %v3403 = vpop.permute.xlu0 %3402
    %3404 = vrot.lane.b32.xlu0 %v3302, 16
    %v3405 = vpop.permute.xlu0 %3404
    %3410 = vrot.lane.b32.xlu0 %v3384, 24
    %v3411 = vpop.permute.xlu0 %3410
    %3412 = vrot.lane.b32.xlu0 %v3389, 24
    %v3413 = vpop.permute.xlu0 %3412
    %v3416 = vsel %vm156, %v3123, %v3395
    %v3417 = vsel %vm156, %v3128, %v3397
    %v3418 = vsel %vm501, %v3416, %v3403
    %v3419 = vsel %vm501, %v3417, %v3405
    %v3420 = vsel %vm966, %v3418, %v3411
    %v3421 = vsel %vm966, %v3419, %v3413
    %3426 = vrot.lane.b32.xlu0 %v2484, 32
    %v3427 = vpop.permute.xlu0 %3426
    %3428 = vrot.lane.b32.xlu0 %v2487, 32
    %v3429 = vpop.permute.xlu0 %3428
    %3430 = vrot.lane.b32.xlu0 %v2490, 32
    %v3431 = vpop.permute.xlu0 %3430
    %3432 = vrot.lane.b32.xlu0 %v2493, 32
    %v3433 = vpop.permute.xlu0 %3432
    %3439 = vrot.lane.b32.xlu0 %v2512, 32
    %v3440 = vpop.permute.xlu0 %3439
    %v3443 = vsel %vm56, %v3420, 0
    %v3446 = vsel %vm56, %v3421, 0
    %3448 = vmatprep.subr.mxu0 0.0
    %3449 = vmatpush1.msra.mxu0 0.0
    %3450 = vmatprep.subr.mxu0 0.0
    %3451 = vmatpush1.msra.mxu0 0.0
    %3452 = vmatprep.subr.mxu0 0.0
    %3453 = vmatpush1.msra.mxu0 0.0
    %3454 = vmatprep.subr.mxu0 0.0
    %3455 = vmatpush1.msra.mxu0 0.0
    %3456 = vmatprep.subr.mxu0 0.0
    %3457 = vmatpush1.msra.mxu0 0.0
    %3458 = vmatprep.subr.mxu0 0.0
    %3459 = vmatpush1.msra.mxu0 0.0
    %3460 = vmatprep.subr.mxu0 0.0
    %3461 = vmatpush1.msra.mxu0 0.0
    %3462 = vmatprep.subr.mxu0 0.0
    %3463 = vmatpush1.msra.mxu0 0.0
    %3464 = vmatprep.subr.mxu0 0.0
    %3465 = vmatpush1.msra.mxu0 0.0
    %3466 = vmatprep.subr.mxu0 0.0
    %3467 = vmatpush1.msra.mxu0 0.0
    %3468 = vmatprep.subr.mxu0 0.0
    %3469 = vmatpush1.msra.mxu0 0.0
    %3470 = vmatprep.subr.mxu0 0.0
    %3471 = vmatpush1.msra.mxu0 0.0
    %3472 = vmatprep.subr.mxu0 0.0
    %3473 = vmatpush1.msra.mxu0 %v3433
    %3474 = vmatprep.subr.mxu0 0.0
    %3475 = vmatpush1.msra.mxu0 %v3431
    %3476 = vmatprep.subr.mxu0 0.0
    %3477 = vmatpush1.msra.mxu0 %v3429
    %3478 = vmatprep.subr.mxu0 0.0
    %3479 = vmatpush1.msra.mxu0 %v3427
    %3480 = vmatprep.subr.mxu0 0.0
    %3481 = vmatpush2.msra.mxu0 0.0
    %3482 = vmatprep.subr.mxu0 0.0
    %3483 = vmatpush2.msra.mxu0 0.0
    %3484 = vmatprep.subr.mxu0 0.0
    %3485 = vmatpush2.msra.mxu0 0.0
    %3486 = vmatprep.subr.mxu0 0.0
    %3487 = vmatpush2.msra.mxu0 0.0
    %3488 = vmatprep.subr.mxu0 0.0
    %3489 = vmatpush2.msra.mxu0 0.0
    %3490 = vmatprep.subr.mxu0 0.0
    %3491 = vmatpush2.msra.mxu0 0.0
    %3492 = vmatprep.subr.mxu0 0.0
    %3493 = vmatpush2.msra.mxu0 0.0
    %3494 = vmatprep.subr.mxu0 0.0
    %3495 = vmatpush2.msra.mxu0 0.0
    %3496 = vmatprep.subr.mxu0 0.0
    %3497 = vmatpush2.msra.mxu0 0.0
    %3498 = vmatprep.subr.mxu0 0.0
    %3499 = vmatpush2.msra.mxu0 0.0
    %3500 = vmatprep.subr.mxu0 0.0
    %3501 = vmatpush2.msra.mxu0 0.0
    %3502 = vmatprep.subr.mxu0 0.0
    %3503 = vmatpush2.msra.mxu0 0.0
    %3504 = vmatprep.subr.mxu0 0.0
    %3505 = vmatpush2.msra.mxu0 0.0
    %3506 = vmatprep.subr.mxu0 0.0
    %3507 = vmatpush2.msra.mxu0 0.0
    %3508 = vmatprep.subr.mxu0 0.0
    %3509 = vmatpush2.msra.mxu0 0.0
    %3510 = vmatprep.subr.mxu0 0.0
    %3511 = vmatpush2.msra.mxu0 0.0
    %3512 = vmatprep.mubr.f32.mxu0 0.0
    %3513 = vmatmul.mubr.f32.gmra.mxu0 %v3443
    %v3514 = vpop.f32.mrf.mxu0
    %v3515 = vadd.f32 %v3440, %v3514
    %v3516 = vpop.f32.mrf.mxu0
    %3517 = vmatprep.mubr.f32.mxu0 0.0
    %3518 = vmatmul.mubr.f32.gmra.mxu0 %v3446
    %v3519 = vpop.f32.mrf.mxu0
    %v3520 = vadd.f32 %v3440, %v3519
    %v3521 = vpop.f32.mrf.mxu0
    %3522 = vdwg.mxu0
    %v3523 = vadd.f32 %v2481, %v3515
    %v3524 = vadd.f32 %v2482, %v3520
    %v3525 = vmul.f32 %v3523, %v3523
    %v3526 = vmul.f32 %v3524, %v3524
    %v3527 = vsel %vm56, %v3523, 0.0
    %3528 = vadd.xlane.f32.xlu0 %v3527
    %v3529 = vpop.xlane.xlu0 %3528
    %v3530 = vsel %vm56, %v3524, 0.0
    %3531 = vadd.xlane.f32.xlu0 %v3530
    %v3532 = vpop.xlane.xlu0 %3531
    %v3533 = vsel %vm56, %v3525, 0.0
    %3534 = vadd.xlane.f32.xlu0 %v3533
    %v3535 = vpop.xlane.xlu0 %3534
    %v3536 = vsel %vm56, %v3526, 0.0
    %3537 = vadd.xlane.f32.xlu0 %v3536
    %v3538 = vpop.xlane.xlu0 %3537
    %v3539 = vmul.f32 %v3529, 0.03125
    %v3540 = vmul.f32 %v3532, 0.03125
    %v3541 = vmul.f32 %v3535, 0.03125
    %v3542 = vmul.f32 %v3538, 0.03125
    %v3543 = vmul.f32 %v3539, %v3539
    %v3544 = vmul.f32 %v3540, %v3540
    %v3545 = vsub.f32 %v3541, %v3543
    %v3546 = vsub.f32 %v3542, %v3544
    %v3547 = vsub.f32 %v3523, %v3539
    %v3548 = vsub.f32 %v3524, %v3540
    %v3549 = vadd.f32 %v3545, 1e-05
    %v3550 = vadd.f32 %v3546, 1e-05
    %v3551 = vrsqrt.pop %v3549
    %v3552 = vrsqrt.pop %v3550
    %v3553 = vmul.f32 %v3547, %v3551
    %v3554 = vmul.f32 %v3548, %v3552
    %v3555 = vlaneseq
    %v3556 = vshrl.u32 %v3555, 7
    %v3557 = vsub.s32 1, %v3556
    %v3558 = vrot.slane %v2506, %v3557
    %v3559 = vmul.f32 %v3553, %v3558
    %v3560 = vmul.f32 %v3554, %v3558
    %v3561 = vlaneseq
    %v3562 = vshrl.u32 %v3561, 7
    %v3563 = vsub.s32 4, %v3562
    %v3564 = vrot.slane %v2506, %v3563
    %v3565 = vadd.f32 %v3559, %v3564
    %v3566 = vadd.f32 %v3560, %v3564
    %v3567 = vlaneseq
    %v3568 = vshrl.u32 %v3567, 7
    %v3569 = vsub.s32 0, %v3568
    %v3570 = vrot.slane %v2507, %v3569
    %v3572 = vsel %vm56, %v3565, 0
    %v3575 = vsel %vm56, %v3566, 0
    %3577 = vmatprep.subr.mxu0 0.0
    %3578 = vmatpush1.msra.mxu0 0.0
    %3579 = vmatprep.subr.mxu0 0.0
    %3580 = vmatpush1.msra.mxu0 0.0
    %3581 = vmatprep.subr.mxu0 0.0
    %3582 = vmatpush1.msra.mxu0 0.0
    %3583 = vmatprep.subr.mxu0 0.0
    %3584 = vmatpush1.msra.mxu0 0.0
    %3585 = vmatprep.subr.mxu0 0.0
    %3586 = vmatpush1.msra.mxu0 0.0
    %3587 = vmatprep.subr.mxu0 0.0
    %3588 = vmatpush1.msra.mxu0 0.0
    %3589 = vmatprep.subr.mxu0 0.0
    %3590 = vmatpush1.msra.mxu0 0.0
    %3591 = vmatprep.subr.mxu0 0.0
    %3592 = vmatpush1.msra.mxu0 0.0
    %3593 = vmatprep.subr.mxu0 0.0
    %3594 = vmatpush1.msra.mxu0 0.0
    %3595 = vmatprep.subr.mxu0 0.0
    %3596 = vmatpush1.msra.mxu0 0.0
    %3597 = vmatprep.subr.mxu0 0.0
    %3598 = vmatpush1.msra.mxu0 0.0
    %3599 = vmatprep.subr.mxu0 0.0
    %3600 = vmatpush1.msra.mxu0 0.0
    %3601 = vmatprep.subr.mxu0 0.0
    %3602 = vmatpush1.msra.mxu0 %v2494
    %3603 = vmatprep.subr.mxu0 0.0
    %3604 = vmatpush1.msra.mxu0 %v2491
    %3605 = vmatprep.subr.mxu0 0.0
    %3606 = vmatpush1.msra.mxu0 %v2488
    %3607 = vmatprep.subr.mxu0 0.0
    %3608 = vmatpush1.msra.mxu0 %v2485
    %3609 = vmatprep.subr.mxu0 0.0
    %3610 = vmatpush2.msra.mxu0 0.0
    %3611 = vmatprep.subr.mxu0 0.0
    %3612 = vmatpush2.msra.mxu0 0.0
    %3613 = vmatprep.subr.mxu0 0.0
    %3614 = vmatpush2.msra.mxu0 0.0
    %3615 = vmatprep.subr.mxu0 0.0
    %3616 = vmatpush2.msra.mxu0 0.0
    %3617 = vmatprep.subr.mxu0 0.0
    %3618 = vmatpush2.msra.mxu0 0.0
    %3619 = vmatprep.subr.mxu0 0.0
    %3620 = vmatpush2.msra.mxu0 0.0
    %3621 = vmatprep.subr.mxu0 0.0
    %3622 = vmatpush2.msra.mxu0 0.0
    %3623 = vmatprep.subr.mxu0 0.0
    %3624 = vmatpush2.msra.mxu0 0.0
    %3625 = vmatprep.subr.mxu0 0.0
    %3626 = vmatpush2.msra.mxu0 0.0
    %3627 = vmatprep.subr.mxu0 0.0
    %3628 = vmatpush2.msra.mxu0 0.0
    %3629 = vmatprep.subr.mxu0 0.0
    %3630 = vmatpush2.msra.mxu0 0.0
    %3631 = vmatprep.subr.mxu0 0.0
    %3632 = vmatpush2.msra.mxu0 0.0
    %3633 = vmatprep.subr.mxu0 0.0
    %3634 = vmatpush2.msra.mxu0 0.0
    %3635 = vmatprep.subr.mxu0 0.0
    %3636 = vmatpush2.msra.mxu0 0.0
    %3637 = vmatprep.subr.mxu0 0.0
    %3638 = vmatpush2.msra.mxu0 0.0
    %3639 = vmatprep.subr.mxu0 0.0
    %3640 = vmatpush2.msra.mxu0 0.0
    %3641 = vmatprep.mubr.f32.mxu0 0.0
    %3642 = vmatmul.mubr.f32.gmra.mxu0 %v3572
    %v3643 = vpop.f32.mrf.mxu0
    %v3644 = vadd.f32 %v3570, %v3643
    %v3645 = vpop.f32.mrf.mxu0
    %3646 = vmatprep.mubr.f32.mxu0 0.0
    %3647 = vmatmul.mubr.f32.gmra.mxu0 %v3575
    %v3648 = vpop.f32.mrf.mxu0
    %v3649 = vadd.f32 %v3570, %v3648
    %v3650 = vpop.f32.mrf.mxu0
    %3651 = vdwg.mxu0
    %3656 = vrot.lane.b32.xlu0 %v2485, 96
    %v3657 = vpop.permute.xlu0 %3656
    %3658 = vrot.lane.b32.xlu0 %v2488, 96
    %v3659 = vpop.permute.xlu0 %3658
    %3660 = vrot.lane.b32.xlu0 %v2491, 96
    %v3661 = vpop.permute.xlu0 %3660
    %3662 = vrot.lane.b32.xlu0 %v2494, 96
    %v3663 = vpop.permute.xlu0 %3662
    %3669 = vrot.lane.b32.xlu0 %v3570, 96
    %v3670 = vpop.permute.xlu0 %3669
    %3672 = vmatprep.subr.mxu0 0.0
    %3673 = vmatpush1.msra.mxu0 0.0
    %3674 = vmatprep.subr.mxu0 0.0
    %3675 = vmatpush1.msra.mxu0 0.0
    %3676 = vmatprep.subr.mxu0 0.0
    %3677 = vmatpush1.msra.mxu0 0.0
    %3678 = vmatprep.subr.mxu0 0.0
    %3679 = vmatpush1.msra.mxu0 0.0
    %3680 = vmatprep.subr.mxu0 0.0
    %3681 = vmatpush1.msra.mxu0 0.0
    %3682 = vmatprep.subr.mxu0 0.0
    %3683 = vmatpush1.msra.mxu0 0.0
    %3684 = vmatprep.subr.mxu0 0.0
    %3685 = vmatpush1.msra.mxu0 0.0
    %3686 = vmatprep.subr.mxu0 0.0
    %3687 = vmatpush1.msra.mxu0 0.0
    %3688 = vmatprep.subr.mxu0 0.0
    %3689 = vmatpush1.msra.mxu0 0.0
    %3690 = vmatprep.subr.mxu0 0.0
    %3691 = vmatpush1.msra.mxu0 0.0
    %3692 = vmatprep.subr.mxu0 0.0
    %3693 = vmatpush1.msra.mxu0 0.0
    %3694 = vmatprep.subr.mxu0 0.0
    %3695 = vmatpush1.msra.mxu0 0.0
    %3696 = vmatprep.subr.mxu0 0.0
    %3697 = vmatpush1.msra.mxu0 %v3663
    %3698 = vmatprep.subr.mxu0 0.0
    %3699 = vmatpush1.msra.mxu0 %v3661
    %3700 = vmatprep.subr.mxu0 0.0
    %3701 = vmatpush1.msra.mxu0 %v3659
    %3702 = vmatprep.subr.mxu0 0.0
    %3703 = vmatpush1.msra.mxu0 %v3657
    %3704 = vmatprep.subr.mxu0 0.0
    %3705 = vmatpush2.msra.mxu0 0.0
    %3706 = vmatprep.subr.mxu0 0.0
    %3707 = vmatpush2.msra.mxu0 0.0
    %3708 = vmatprep.subr.mxu0 0.0
    %3709 = vmatpush2.msra.mxu0 0.0
    %3710 = vmatprep.subr.mxu0 0.0
    %3711 = vmatpush2.msra.mxu0 0.0
    %3712 = vmatprep.subr.mxu0 0.0
    %3713 = vmatpush2.msra.mxu0 0.0
    %3714 = vmatprep.subr.mxu0 0.0
    %3715 = vmatpush2.msra.mxu0 0.0
    %3716 = vmatprep.subr.mxu0 0.0
    %3717 = vmatpush2.msra.mxu0 0.0
    %3718 = vmatprep.subr.mxu0 0.0
    %3719 = vmatpush2.msra.mxu0 0.0
    %3720 = vmatprep.subr.mxu0 0.0
    %3721 = vmatpush2.msra.mxu0 0.0
    %3722 = vmatprep.subr.mxu0 0.0
    %3723 = vmatpush2.msra.mxu0 0.0
    %3724 = vmatprep.subr.mxu0 0.0
    %3725 = vmatpush2.msra.mxu0 0.0
    %3726 = vmatprep.subr.mxu0 0.0
    %3727 = vmatpush2.msra.mxu0 0.0
    %3728 = vmatprep.subr.mxu0 0.0
    %3729 = vmatpush2.msra.mxu0 0.0
    %3730 = vmatprep.subr.mxu0 0.0
    %3731 = vmatpush2.msra.mxu0 0.0
    %3732 = vmatprep.subr.mxu0 0.0
    %3733 = vmatpush2.msra.mxu0 0.0
    %3734 = vmatprep.subr.mxu0 0.0
    %3735 = vmatpush2.msra.mxu0 0.0
    %3736 = vmatprep.mubr.f32.mxu0 0.0
    %3737 = vmatmul.mubr.f32.gmra.mxu0 %v1220
    %v3738 = vpop.f32.mrf.mxu0
    %v3739 = vadd.f32 %v3670, %v3738
    %v3740 = vpop.f32.mrf.mxu0
    %3741 = vmatprep.mubr.f32.mxu0 0.0
    %3742 = vmatmul.mubr.f32.gmra.mxu0 %v1223
    %v3743 = vpop.f32.mrf.mxu0
    %v3744 = vadd.f32 %v3670, %v3743
    %v3745 = vpop.f32.mrf.mxu0
    %3746 = vdwg.mxu0
    %3749 = vrot.lane.b32.xlu0 %v3644, 120
    %v3750 = vpop.permute.xlu0 %3749
    %3751 = vrot.lane.b32.xlu0 %v3649, 120
    %v3752 = vpop.permute.xlu0 %3751
    %3753 = vrot.lane.b32.xlu0 %v3644, 112
    %v3754 = vpop.permute.xlu0 %3753
    %3755 = vrot.lane.b32.xlu0 %v3649, 112
    %v3756 = vpop.permute.xlu0 %3755
    %3757 = vrot.lane.b32.xlu0 %v3644, 104
    %v3758 = vpop.permute.xlu0 %3757
    %3759 = vrot.lane.b32.xlu0 %v3649, 104
    %v3760 = vpop.permute.xlu0 %3759
    %3763 = vrot.lane.b32.xlu0 %v3739, 120
    %v3764 = vpop.permute.xlu0 %3763
    %3765 = vrot.lane.b32.xlu0 %v3744, 120
    %v3766 = vpop.permute.xlu0 %3765
    %3767 = vrot.lane.b32.xlu0 %v3739, 112
    %v3768 = vpop.permute.xlu0 %3767
    %3769 = vrot.lane.b32.xlu0 %v3744, 112
    %v3770 = vpop.permute.xlu0 %3769
    %3771 = vrot.lane.b32.xlu0 %v3739, 104
    %v3772 = vpop.permute.xlu0 %3771
    %3773 = vrot.lane.b32.xlu0 %v3744, 104
    %v3774 = vpop.permute.xlu0 %3773
    %v3775 = vsel %vm156, %v3644, 0
    %v3777 = vsel %vm156, %v3649, 0
    %v3779 = vsel %vm156, %v3739, 0
    %v3781 = vsel %vm156, %v3744, 0
    %3783 = vmatprep.subr.mxu0 0.0
    %3784 = vmatpush1.xpose.msra.mxu0 0.0
    %3785 = vmatprep.subr.mxu0 0.0
    %3786 = vmatpush1.xpose.msra.mxu0 0.0
    %3787 = vmatprep.subr.mxu0 0.0
    %3788 = vmatpush1.xpose.msra.mxu0 0.0
    %3789 = vmatprep.subr.mxu0 0.0
    %3790 = vmatpush1.xpose.msra.mxu0 0.0
    %3791 = vmatprep.subr.mxu0 0.0
    %3792 = vmatpush1.xpose.msra.mxu0 0.0
    %3793 = vmatprep.subr.mxu0 0.0
    %3794 = vmatpush1.xpose.msra.mxu0 0.0
    %3795 = vmatprep.subr.mxu0 0.0
    %3796 = vmatpush1.xpose.msra.mxu0 0.0
    %3797 = vmatprep.subr.mxu0 0.0
    %3798 = vmatpush1.xpose.msra.mxu0 0.0
    %3799 = vmatprep.subr.mxu0 0.0
    %3800 = vmatpush1.xpose.msra.mxu0 0.0
    %3801 = vmatprep.subr.mxu0 0.0
    %3802 = vmatpush1.xpose.msra.mxu0 0.0
    %3803 = vmatprep.subr.mxu0 0.0
    %3804 = vmatpush1.xpose.msra.mxu0 0.0
    %3805 = vmatprep.subr.mxu0 0.0
    %3806 = vmatpush1.xpose.msra.mxu0 0.0
    %3807 = vmatprep.subr.mxu0 0.0
    %3808 = vmatpush1.xpose.msra.mxu0 0.0
    %3809 = vmatprep.subr.mxu0 0.0
    %3810 = vmatpush1.xpose.msra.mxu0 0.0
    %3811 = vmatprep.subr.mxu0 0.0
    %3812 = vmatpush1.xpose.msra.mxu0 %v3781
    %3813 = vmatprep.subr.mxu0 0.0
    %3814 = vmatpush1.xpose.msra.mxu0 %v3779
    %3815 = vmatprep.subr.mxu0 0.0
    %3816 = vmatpush2.xpose.msra.mxu0 0.0
    %3817 = vmatprep.subr.mxu0 0.0
    %3818 = vmatpush2.xpose.msra.mxu0 0.0
    %3819 = vmatprep.subr.mxu0 0.0
    %3820 = vmatpush2.xpose.msra.mxu0 0.0
    %3821 = vmatprep.subr.mxu0 0.0
    %3822 = vmatpush2.xpose.msra.mxu0 0.0
    %3823 = vmatprep.subr.mxu0 0.0
    %3824 = vmatpush2.xpose.msra.mxu0 0.0
    %3825 = vmatprep.subr.mxu0 0.0
    %3826 = vmatpush2.xpose.msra.mxu0 0.0
    %3827 = vmatprep.subr.mxu0 0.0
    %3828 = vmatpush2.xpose.msra.mxu0 0.0
    %3829 = vmatprep.subr.mxu0 0.0
    %3830 = vmatpush2.xpose.msra.mxu0 0.0
    %3831 = vmatprep.subr.mxu0 0.0
    %3832 = vmatpush2.xpose.msra.mxu0 0.0
    %3833 = vmatprep.subr.mxu0 0.0
    %3834 = vmatpush2.xpose.msra.mxu0 0.0
    %3835 = vmatprep.subr.mxu0 0.0
    %3836 = vmatpush2.xpose.msra.mxu0 0.0
    %3837 = vmatprep.subr.mxu0 0.0
    %3838 = vmatpush2.xpose.msra.mxu0 0.0
    %3839 = vmatprep.subr.mxu0 0.0
    %3840 = vmatpush2.xpose.msra.mxu0 0.0
    %3841 = vmatprep.subr.mxu0 0.0
    %3842 = vmatpush2.xpose.msra.mxu0 0.0
    %3843 = vmatprep.subr.mxu0 0.0
    %3844 = vmatpush2.xpose.msra.mxu0 0.0
    %3845 = vmatprep.subr.mxu0 0.0
    %3846 = vmatpush2.xpose.msra.mxu0 0.0
    %3847 = vmatprep.mubr.f32.mxu0 0.0
    %3848 = vmatmul.mubr.f32.gmra.mxu0 %v3775
    %v3849 = vpop.f32.mrf.mxu0
    %v3850 = vadd.f32 %v27, %v3849
    %v3851 = vpop.f32.mrf.mxu0
    %3852 = vmatprep.mubr.f32.mxu0 0.0
    %3853 = vmatmul.mubr.f32.gmra.mxu0 %v3777
    %v3854 = vpop.f32.mrf.mxu0
    %v3855 = vadd.f32 %v28, %v3854
    %v3856 = vpop.f32.mrf.mxu0
    %3857 = vdwg.mxu0
    %v3858 = vsel %vm156, %v3750, 0
    %v3860 = vsel %vm156, %v3752, 0
    %v3862 = vsel %vm156, %v3764, 0
    %v3864 = vsel %vm156, %v3766, 0
    %3866 = vmatprep.subr.mxu0 0.0
    %3867 = vmatpush1.xpose.msra.mxu0 0.0
    %3868 = vmatprep.subr.mxu0 0.0
    %3869 = vmatpush1.xpose.msra.mxu0 0.0
    %3870 = vmatprep.subr.mxu0 0.0
    %3871 = vmatpush1.xpose.msra.mxu0 0.0
    %3872 = vmatprep.subr.mxu0 0.0
    %3873 = vmatpush1.xpose.msra.mxu0 0.0
    %3874 = vmatprep.subr.mxu0 0.0
    %3875 = vmatpush1.xpose.msra.mxu0 0.0
    %3876 = vmatprep.subr.mxu0 0.0
    %3877 = vmatpush1.xpose.msra.mxu0 0.0
    %3878 = vmatprep.subr.mxu0 0.0
    %3879 = vmatpush1.xpose.msra.mxu0 0.0
    %3880 = vmatprep.subr.mxu0 0.0
    %3881 = vmatpush1.xpose.msra.mxu0 0.0
    %3882 = vmatprep.subr.mxu0 0.0
    %3883 = vmatpush1.xpose.msra.mxu0 0.0
    %3884 = vmatprep.subr.mxu0 0.0
    %3885 = vmatpush1.xpose.msra.mxu0 0.0
    %3886 = vmatprep.subr.mxu0 0.0
    %3887 = vmatpush1.xpose.msra.mxu0 0.0
    %3888 = vmatprep.subr.mxu0 0.0
    %3889 = vmatpush1.xpose.msra.mxu0 0.0
    %3890 = vmatprep.subr.mxu0 0.0
    %3891 = vmatpush1.xpose.msra.mxu0 0.0
    %3892 = vmatprep.subr.mxu0 0.0
    %3893 = vmatpush1.xpose.msra.mxu0 0.0
    %3894 = vmatprep.subr.mxu0 0.0
    %3895 = vmatpush1.xpose.msra.mxu0 %v3864
    %3896 = vmatprep.subr.mxu0 0.0
    %3897 = vmatpush1.xpose.msra.mxu0 %v3862
    %3898 = vmatprep.subr.mxu0 0.0
    %3899 = vmatpush2.xpose.msra.mxu0 0.0
    %3900 = vmatprep.subr.mxu0 0.0
    %3901 = vmatpush2.xpose.msra.mxu0 0.0
    %3902 = vmatprep.subr.mxu0 0.0
    %3903 = vmatpush2.xpose.msra.mxu0 0.0
    %3904 = vmatprep.subr.mxu0 0.0
    %3905 = vmatpush2.xpose.msra.mxu0 0.0
    %3906 = vmatprep.subr.mxu0 0.0
    %3907 = vmatpush2.xpose.msra.mxu0 0.0
    %3908 = vmatprep.subr.mxu0 0.0
    %3909 = vmatpush2.xpose.msra.mxu0 0.0
    %3910 = vmatprep.subr.mxu0 0.0
    %3911 = vmatpush2.xpose.msra.mxu0 0.0
    %3912 = vmatprep.subr.mxu0 0.0
    %3913 = vmatpush2.xpose.msra.mxu0 0.0
    %3914 = vmatprep.subr.mxu0 0.0
    %3915 = vmatpush2.xpose.msra.mxu0 0.0
    %3916 = vmatprep.subr.mxu0 0.0
    %3917 = vmatpush2.xpose.msra.mxu0 0.0
    %3918 = vmatprep.subr.mxu0 0.0
    %3919 = vmatpush2.xpose.msra.mxu0 0.0
    %3920 = vmatprep.subr.mxu0 0.0
    %3921 = vmatpush2.xpose.msra.mxu0 0.0
    %3922 = vmatprep.subr.mxu0 0.0
    %3923 = vmatpush2.xpose.msra.mxu0 0.0
    %3924 = vmatprep.subr.mxu0 0.0
    %3925 = vmatpush2.xpose.msra.mxu0 0.0
    %3926 = vmatprep.subr.mxu0 0.0
    %3927 = vmatpush2.xpose.msra.mxu0 0.0
    %3928 = vmatprep.subr.mxu0 0.0
    %3929 = vmatpush2.xpose.msra.mxu0 0.0
    %3930 = vmatprep.mubr.f32.mxu0 0.0
    %3931 = vmatmul.mubr.f32.gmra.mxu0 %v3858
    %v3932 = vpop.f32.mrf.mxu0
    %v3933 = vadd.f32 %v27, %v3932
    %v3934 = vpop.f32.mrf.mxu0
    %3935 = vmatprep.mubr.f32.mxu0 0.0
    %3936 = vmatmul.mubr.f32.gmra.mxu0 %v3860
    %v3937 = vpop.f32.mrf.mxu0
    %v3938 = vadd.f32 %v28, %v3937
    %v3939 = vpop.f32.mrf.mxu0
    %3940 = vdwg.mxu0
    %v3941 = vsel %vm156, %v3754, 0
    %v3943 = vsel %vm156, %v3756, 0
    %v3945 = vsel %vm156, %v3768, 0
    %v3947 = vsel %vm156, %v3770, 0
    %3949 = vmatprep.subr.mxu0 0.0
    %3950 = vmatpush1.xpose.msra.mxu0 0.0
    %3951 = vmatprep.subr.mxu0 0.0
    %3952 = vmatpush1.xpose.msra.mxu0 0.0
    %3953 = vmatprep.subr.mxu0 0.0
    %3954 = vmatpush1.xpose.msra.mxu0 0.0
    %3955 = vmatprep.subr.mxu0 0.0
    %3956 = vmatpush1.xpose.msra.mxu0 0.0
    %3957 = vmatprep.subr.mxu0 0.0
    %3958 = vmatpush1.xpose.msra.mxu0 0.0
    %3959 = vmatprep.subr.mxu0 0.0
    %3960 = vmatpush1.xpose.msra.mxu0 0.0
    %3961 = vmatprep.subr.mxu0 0.0
    %3962 = vmatpush1.xpose.msra.mxu0 0.0
    %3963 = vmatprep.subr.mxu0 0.0
    %3964 = vmatpush1.xpose.msra.mxu0 0.0
    %3965 = vmatprep.subr.mxu0 0.0
    %3966 = vmatpush1.xpose.msra.mxu0 0.0
    %3967 = vmatprep.subr.mxu0 0.0
    %3968 = vmatpush1.xpose.msra.mxu0 0.0
    %3969 = vmatprep.subr.mxu0 0.0
    %3970 = vmatpush1.xpose.msra.mxu0 0.0
    %3971 = vmatprep.subr.mxu0 0.0
    %3972 = vmatpush1.xpose.msra.mxu0 0.0
    %3973 = vmatprep.subr.mxu0 0.0
    %3974 = vmatpush1.xpose.msra.mxu0 0.0
    %3975 = vmatprep.subr.mxu0 0.0
    %3976 = vmatpush1.xpose.msra.mxu0 0.0
    %3977 = vmatprep.subr.mxu0 0.0
    %3978 = vmatpush1.xpose.msra.mxu0 %v3947
    %3979 = vmatprep.subr.mxu0 0.0
    %3980 = vmatpush1.xpose.msra.mxu0 %v3945
    %3981 = vmatprep.subr.mxu0 0.0
    %3982 = vmatpush2.xpose.msra.mxu0 0.0
    %3983 = vmatprep.subr.mxu0 0.0
    %3984 = vmatpush2.xpose.msra.mxu0 0.0
    %3985 = vmatprep.subr.mxu0 0.0
    %3986 = vmatpush2.xpose.msra.mxu0 0.0
    %3987 = vmatprep.subr.mxu0 0.0
    %3988 = vmatpush2.xpose.msra.mxu0 0.0
    %3989 = vmatprep.subr.mxu0 0.0
    %3990 = vmatpush2.xpose.msra.mxu0 0.0
    %3991 = vmatprep.subr.mxu0 0.0
    %3992 = vmatpush2.xpose.msra.mxu0 0.0
    %3993 = vmatprep.subr.mxu0 0.0
    %3994 = vmatpush2.xpose.msra.mxu0 0.0
    %3995 = vmatprep.subr.mxu0 0.0
    %3996 = vmatpush2.xpose.msra.mxu0 0.0
    %3997 = vmatprep.subr.mxu0 0.0
    %3998 = vmatpush2.xpose.msra.mxu0 0.0
    %3999 = vmatprep.subr.mxu0 0.0
    %4000 = vmatpush2.xpose.msra.mxu0 0.0
    %4001 = vmatprep.subr.mxu0 0.0
    %4002 = vmatpush2.xpose.msra.mxu0 0.0
    %4003 = vmatprep.subr.mxu0 0.0
    %4004 = vmatpush2.xpose.msra.mxu0 0.0
    %4005 = vmatprep.subr.mxu0 0.0
    %4006 = vmatpush2.xpose.msra.mxu0 0.0
    %4007 = vmatprep.subr.mxu0 0.0
    %4008 = vmatpush2.xpose.msra.mxu0 0.0
    %4009 = vmatprep.subr.mxu0 0.0
    %4010 = vmatpush2.xpose.msra.mxu0 0.0
    %4011 = vmatprep.subr.mxu0 0.0
    %4012 = vmatpush2.xpose.msra.mxu0 0.0
    %4013 = vmatprep.mubr.f32.mxu0 0.0
    %4014 = vmatmul.mubr.f32.gmra.mxu0 %v3941
    %v4015 = vpop.f32.mrf.mxu0
    %v4016 = vadd.f32 %v27, %v4015
    %v4017 = vpop.f32.mrf.mxu0
    %4018 = vmatprep.mubr.f32.mxu0 0.0
    %4019 = vmatmul.mubr.f32.gmra.mxu0 %v3943
    %v4020 = vpop.f32.mrf.mxu0
    %v4021 = vadd.f32 %v28, %v4020
    %v4022 = vpop.f32.mrf.mxu0
    %4023 = vdwg.mxu0
    %v4024 = vsel %vm156, %v3758, 0
    %v4026 = vsel %vm156, %v3760, 0
    %v4028 = vsel %vm156, %v3772, 0
    %v4030 = vsel %vm156, %v3774, 0
    %4032 = vmatprep.subr.mxu0 0.0
    %4033 = vmatpush1.xpose.msra.mxu0 0.0
    %4034 = vmatprep.subr.mxu0 0.0
    %4035 = vmatpush1.xpose.msra.mxu0 0.0
    %4036 = vmatprep.subr.mxu0 0.0
    %4037 = vmatpush1.xpose.msra.mxu0 0.0
    %4038 = vmatprep.subr.mxu0 0.0
    %4039 = vmatpush1.xpose.msra.mxu0 0.0
    %4040 = vmatprep.subr.mxu0 0.0
    %4041 = vmatpush1.xpose.msra.mxu0 0.0
    %4042 = vmatprep.subr.mxu0 0.0
    %4043 = vmatpush1.xpose.msra.mxu0 0.0
    %4044 = vmatprep.subr.mxu0 0.0
    %4045 = vmatpush1.xpose.msra.mxu0 0.0
    %4046 = vmatprep.subr.mxu0 0.0
    %4047 = vmatpush1.xpose.msra.mxu0 0.0
    %4048 = vmatprep.subr.mxu0 0.0
    %4049 = vmatpush1.xpose.msra.mxu0 0.0
    %4050 = vmatprep.subr.mxu0 0.0
    %4051 = vmatpush1.xpose.msra.mxu0 0.0
    %4052 = vmatprep.subr.mxu0 0.0
    %4053 = vmatpush1.xpose.msra.mxu0 0.0
    %4054 = vmatprep.subr.mxu0 0.0
    %4055 = vmatpush1.xpose.msra.mxu0 0.0
    %4056 = vmatprep.subr.mxu0 0.0
    %4057 = vmatpush1.xpose.msra.mxu0 0.0
    %4058 = vmatprep.subr.mxu0 0.0
    %4059 = vmatpush1.xpose.msra.mxu0 0.0
    %4060 = vmatprep.subr.mxu0 0.0
    %4061 = vmatpush1.xpose.msra.mxu0 %v4030
    %4062 = vmatprep.subr.mxu0 0.0
    %4063 = vmatpush1.xpose.msra.mxu0 %v4028
    %4064 = vmatprep.subr.mxu0 0.0
    %4065 = vmatpush2.xpose.msra.mxu0 0.0
    %4066 = vmatprep.subr.mxu0 0.0
    %4067 = vmatpush2.xpose.msra.mxu0 0.0
    %4068 = vmatprep.subr.mxu0 0.0
    %4069 = vmatpush2.xpose.msra.mxu0 0.0
    %4070 = vmatprep.subr.mxu0 0.0
    %4071 = vmatpush2.xpose.msra.mxu0 0.0
    %4072 = vmatprep.subr.mxu0 0.0
    %4073 = vmatpush2.xpose.msra.mxu0 0.0
    %4074 = vmatprep.subr.mxu0 0.0
    %4075 = vmatpush2.xpose.msra.mxu0 0.0
    %4076 = vmatprep.subr.mxu0 0.0
    %4077 = vmatpush2.xpose.msra.mxu0 0.0
    %4078 = vmatprep.subr.mxu0 0.0
    %4079 = vmatpush2.xpose.msra.mxu0 0.0
    %4080 = vmatprep.subr.mxu0 0.0
    %4081 = vmatpush2.xpose.msra.mxu0 0.0
    %4082 = vmatprep.subr.mxu0 0.0
    %4083 = vmatpush2.xpose.msra.mxu0 0.0
    %4084 = vmatprep.subr.mxu0 0.0
    %4085 = vmatpush2.xpose.msra.mxu0 0.0
    %4086 = vmatprep.subr.mxu0 0.0
    %4087 = vmatpush2.xpose.msra.mxu0 0.0
    %4088 = vmatprep.subr.mxu0 0.0
    %4089 = vmatpush2.xpose.msra.mxu0 0.0
    %4090 = vmatprep.subr.mxu0 0.0
    %4091 = vmatpush2.xpose.msra.mxu0 0.0
    %4092 = vmatprep.subr.mxu0 0.0
    %4093 = vmatpush2.xpose.msra.mxu0 0.0
    %4094 = vmatprep.subr.mxu0 0.0
    %4095 = vmatpush2.xpose.msra.mxu0 0.0
    %4096 = vmatprep.mubr.f32.mxu0 0.0
    %4097 = vmatmul.mubr.f32.gmra.mxu0 %v4024
    %v4098 = vpop.f32.mrf.mxu0
    %v4099 = vadd.f32 %v27, %v4098
    %v4100 = vpop.f32.mrf.mxu0
    %4101 = vmatprep.mubr.f32.mxu0 0.0
    %4102 = vmatmul.mubr.f32.gmra.mxu0 %v4026
    %v4103 = vpop.f32.mrf.mxu0
    %v4104 = vadd.f32 %v28, %v4103
    %v4105 = vpop.f32.mrf.mxu0
    %4106 = vdwg.mxu0
    %v4107 = vsel %vm501, %v3850, -inf
    %4108 = vmax.xlane.f32.xlu0 %v4107
    %v4109 = vpop.xlane.xlu0 %4108
    %v4110 = vsel %vm501, %v3855, -inf
    %4111 = vmax.xlane.f32.xlu0 %v4110
    %v4112 = vpop.xlane.xlu0 %4111
    %v4113 = vsel %vm501, %v3933, -inf
    %4114 = vmax.xlane.f32.xlu0 %v4113
    %v4115 = vpop.xlane.xlu0 %4114
    %v4116 = vsel %vm501, %v3938, -inf
    %4117 = vmax.xlane.f32.xlu0 %v4116
    %v4118 = vpop.xlane.xlu0 %4117
    %v4119 = vsel %vm501, %v4016, -inf
    %4120 = vmax.xlane.f32.xlu0 %v4119
    %v4121 = vpop.xlane.xlu0 %4120
    %v4122 = vsel %vm501, %v4021, -inf
    %4123 = vmax.xlane.f32.xlu0 %v4122
    %v4124 = vpop.xlane.xlu0 %4123
    %v4125 = vsel %vm501, %v4099, -inf
    %4126 = vmax.xlane.f32.xlu0 %v4125
    %v4127 = vpop.xlane.xlu0 %4126
    %v4128 = vsel %vm501, %v4104, -inf
    %4129 = vmax.xlane.f32.xlu0 %v4128
    %v4130 = vpop.xlane.xlu0 %4129
    %v4131 = vsub.f32 %v3850, %v4109
    %v4132 = vsub.f32 %v3855, %v4112
    %v4133 = vsub.f32 %v3933, %v4115
    %v4134 = vsub.f32 %v3938, %v4118
    %v4135 = vsub.f32 %v4016, %v4121
    %v4136 = vsub.f32 %v4021, %v4124
    %v4137 = vsub.f32 %v4099, %v4127
    %v4138 = vsub.f32 %v4104, %v4130
    %v4139 = vmul.f32 %v4131, 1.442695
    %v4140 = vpow.pop %v4139
    %v4141 = vmul.f32 %v4132, 1.442695
    %v4142 = vpow.pop %v4141
    %v4143 = vmul.f32 %v4133, 1.442695
    %v4144 = vpow.pop %v4143
    %v4145 = vmul.f32 %v4134, 1.442695
    %v4146 = vpow.pop %v4145
    %v4147 = vmul.f32 %v4135, 1.442695
    %v4148 = vpow.pop %v4147
    %v4149 = vmul.f32 %v4136, 1.442695
    %v4150 = vpow.pop %v4149
    %v4151 = vmul.f32 %v4137, 1.442695
    %v4152 = vpow.pop %v4151
    %v4153 = vmul.f32 %v4138, 1.442695
    %v4154 = vpow.pop %v4153
    %v4155 = vsel %vm501, %v4140, 0.0
    %4156 = vadd.xlane.f32.xlu0 %v4155
    %v4157 = vpop.xlane.xlu0 %4156
    %v4158 = vsel %vm501, %v4142, 0.0
    %4159 = vadd.xlane.f32.xlu0 %v4158
    %v4160 = vpop.xlane.xlu0 %4159
    %v4161 = vsel %vm501, %v4144, 0.0
    %4162 = vadd.xlane.f32.xlu0 %v4161
    %v4163 = vpop.xlane.xlu0 %4162
    %v4164 = vsel %vm501, %v4146, 0.0
    %4165 = vadd.xlane.f32.xlu0 %v4164
    %v4166 = vpop.xlane.xlu0 %4165
    %v4167 = vsel %vm501, %v4148, 0.0
    %4168 = vadd.xlane.f32.xlu0 %v4167
    %v4169 = vpop.xlane.xlu0 %4168
    %v4170 = vsel %vm501, %v4150, 0.0
    %4171 = vadd.xlane.f32.xlu0 %v4170
    %v4172 = vpop.xlane.xlu0 %4171
    %v4173 = vsel %vm501, %v4152, 0.0
    %4174 = vadd.xlane.f32.xlu0 %v4173
    %v4175 = vpop.xlane.xlu0 %4174
    %v4176 = vsel %vm501, %v4154, 0.0
    %4177 = vadd.xlane.f32.xlu0 %v4176
    %v4178 = vpop.xlane.xlu0 %4177
    %v4179 = vrcp.pop %v4157
    %v4180 = vmul.f32 %v4140, %v4179
    %v4181 = vrcp.pop %v4160
    %v4182 = vmul.f32 %v4142, %v4181
    %v4183 = vrcp.pop %v4163
    %v4184 = vmul.f32 %v4144, %v4183
    %v4185 = vrcp.pop %v4166
    %v4186 = vmul.f32 %v4146, %v4185
    %v4187 = vrcp.pop %v4169
    %v4188 = vmul.f32 %v4148, %v4187
    %v4189 = vrcp.pop %v4172
    %v4190 = vmul.f32 %v4150, %v4189
    %v4191 = vrcp.pop %v4175
    %v4192 = vmul.f32 %v4152, %v4191
    %v4193 = vrcp.pop %v4178
    %v4194 = vmul.f32 %v4154, %v4193
    %4195 = vrot.lane.b32.xlu0 %v3739, 96
    %v4196 = vpop.permute.xlu0 %4195
    %4197 = vrot.lane.b32.xlu0 %v3744, 96
    %v4198 = vpop.permute.xlu0 %4197
    %v4202 = vsel %vm501, %v4180, 0
    %v4205 = vsel %vm501, %v4182, 0
    %4207 = vmatprep.subr.mxu0 0.0
    %4208 = vmatpush1.msra.mxu0 0.0
    %4209 = vmatprep.subr.mxu0 0.0
    %4210 = vmatpush1.msra.mxu0 0.0
    %4211 = vmatprep.subr.mxu0 0.0
    %4212 = vmatpush1.msra.mxu0 0.0
    %4213 = vmatprep.subr.mxu0 0.0
    %4214 = vmatpush1.msra.mxu0 0.0
    %4215 = vmatprep.subr.mxu0 0.0
    %4216 = vmatpush1.msra.mxu0 0.0
    %4217 = vmatprep.subr.mxu0 0.0
    %4218 = vmatpush1.msra.mxu0 0.0
    %4219 = vmatprep.subr.mxu0 0.0
    %4220 = vmatpush1.msra.mxu0 0.0
    %4221 = vmatprep.subr.mxu0 0.0
    %4222 = vmatpush1.msra.mxu0 0.0
    %4223 = vmatprep.subr.mxu0 0.0
    %4224 = vmatpush1.msra.mxu0 0.0
    %4225 = vmatprep.subr.mxu0 0.0
    %4226 = vmatpush1.msra.mxu0 0.0
    %4227 = vmatprep.subr.mxu0 0.0
    %4228 = vmatpush1.msra.mxu0 0.0
    %4229 = vmatprep.subr.mxu0 0.0
    %4230 = vmatpush1.msra.mxu0 0.0
    %4231 = vmatprep.subr.mxu0 0.0
    %4232 = vmatpush1.msra.mxu0 0.0
    %4233 = vmatprep.subr.mxu0 0.0
    %4234 = vmatpush1.msra.mxu0 0.0
    %4235 = vmatprep.subr.mxu0 0.0
    %4236 = vmatpush1.msra.mxu0 %v4198
    %4237 = vmatprep.subr.mxu0 0.0
    %4238 = vmatpush1.msra.mxu0 %v4196
    %4239 = vmatprep.subr.mxu0 0.0
    %4240 = vmatpush2.msra.mxu0 0.0
    %4241 = vmatprep.subr.mxu0 0.0
    %4242 = vmatpush2.msra.mxu0 0.0
    %4243 = vmatprep.subr.mxu0 0.0
    %4244 = vmatpush2.msra.mxu0 0.0
    %4245 = vmatprep.subr.mxu0 0.0
    %4246 = vmatpush2.msra.mxu0 0.0
    %4247 = vmatprep.subr.mxu0 0.0
    %4248 = vmatpush2.msra.mxu0 0.0
    %4249 = vmatprep.subr.mxu0 0.0
    %4250 = vmatpush2.msra.mxu0 0.0
    %4251 = vmatprep.subr.mxu0 0.0
    %4252 = vmatpush2.msra.mxu0 0.0
    %4253 = vmatprep.subr.mxu0 0.0
    %4254 = vmatpush2.msra.mxu0 0.0
    %4255 = vmatprep.subr.mxu0 0.0
    %4256 = vmatpush2.msra.mxu0 0.0
    %4257 = vmatprep.subr.mxu0 0.0
    %4258 = vmatpush2.msra.mxu0 0.0
    %4259 = vmatprep.subr.mxu0 0.0
    %4260 = vmatpush2.msra.mxu0 0.0
    %4261 = vmatprep.subr.mxu0 0.0
    %4262 = vmatpush2.msra.mxu0 0.0
    %4263 = vmatprep.subr.mxu0 0.0
    %4264 = vmatpush2.msra.mxu0 0.0
    %4265 = vmatprep.subr.mxu0 0.0
    %4266 = vmatpush2.msra.mxu0 0.0
    %4267 = vmatprep.subr.mxu0 0.0
    %4268 = vmatpush2.msra.mxu0 0.0
    %4269 = vmatprep.subr.mxu0 0.0
    %4270 = vmatpush2.msra.mxu0 0.0
    %4271 = vmatprep.mubr.f32.mxu0 0.0
    %4272 = vmatmul.mubr.f32.gmra.mxu0 %v4202
    %v4273 = vpop.f32.mrf.mxu0
    %v4274 = vadd.f32 0.0, %v4273
    %v4275 = vpop.f32.mrf.mxu0
    %4276 = vmatprep.mubr.f32.mxu0 0.0
    %4277 = vmatmul.mubr.f32.gmra.mxu0 %v4205
    %v4278 = vpop.f32.mrf.mxu0
    %v4279 = vadd.f32 0.0, %v4278
    %v4280 = vpop.f32.mrf.mxu0
    %4281 = vdwg.mxu0
    %4282 = vrot.lane.b32.xlu0 %v3764, 96
    %v4283 = vpop.permute.xlu0 %4282
    %4284 = vrot.lane.b32.xlu0 %v3766, 96
    %v4285 = vpop.permute.xlu0 %4284
    %v4289 = vsel %vm501, %v4184, 0
    %v4292 = vsel %vm501, %v4186, 0
    %4294 = vmatprep.subr.mxu0 0.0
    %4295 = vmatpush1.msra.mxu0 0.0
    %4296 = vmatprep.subr.mxu0 0.0
    %4297 = vmatpush1.msra.mxu0 0.0
    %4298 = vmatprep.subr.mxu0 0.0
    %4299 = vmatpush1.msra.mxu0 0.0
    %4300 = vmatprep.subr.mxu0 0.0
    %4301 = vmatpush1.msra.mxu0 0.0
    %4302 = vmatprep.subr.mxu0 0.0
    %4303 = vmatpush1.msra.mxu0 0.0
    %4304 = vmatprep.subr.mxu0 0.0
    %4305 = vmatpush1.msra.mxu0 0.0
    %4306 = vmatprep.subr.mxu0 0.0
    %4307 = vmatpush1.msra.mxu0 0.0
    %4308 = vmatprep.subr.mxu0 0.0
    %4309 = vmatpush1.msra.mxu0 0.0
    %4310 = vmatprep.subr.mxu0 0.0
    %4311 = vmatpush1.msra.mxu0 0.0
    %4312 = vmatprep.subr.mxu0 0.0
    %4313 = vmatpush1.msra.mxu0 0.0
    %4314 = vmatprep.subr.mxu0 0.0
    %4315 = vmatpush1.msra.mxu0 0.0
    %4316 = vmatprep.subr.mxu0 0.0
    %4317 = vmatpush1.msra.mxu0 0.0
    %4318 = vmatprep.subr.mxu0 0.0
    %4319 = vmatpush1.msra.mxu0 0.0
    %4320 = vmatprep.subr.mxu0 0.0
    %4321 = vmatpush1.msra.mxu0 0.0
    %4322 = vmatprep.subr.mxu0 0.0
    %4323 = vmatpush1.msra.mxu0 %v4285
    %4324 = vmatprep.subr.mxu0 0.0
    %4325 = vmatpush1.msra.mxu0 %v4283
    %4326 = vmatprep.subr.mxu0 0.0
    %4327 = vmatpush2.msra.mxu0 0.0
    %4328 = vmatprep.subr.mxu0 0.0
    %4329 = vmatpush2.msra.mxu0 0.0
    %4330 = vmatprep.subr.mxu0 0.0
    %4331 = vmatpush2.msra.mxu0 0.0
    %4332 = vmatprep.subr.mxu0 0.0
    %4333 = vmatpush2.msra.mxu0 0.0
    %4334 = vmatprep.subr.mxu0 0.0
    %4335 = vmatpush2.msra.mxu0 0.0
    %4336 = vmatprep.subr.mxu0 0.0
    %4337 = vmatpush2.msra.mxu0 0.0
    %4338 = vmatprep.subr.mxu0 0.0
    %4339 = vmatpush2.msra.mxu0 0.0
    %4340 = vmatprep.subr.mxu0 0.0
    %4341 = vmatpush2.msra.mxu0 0.0
    %4342 = vmatprep.subr.mxu0 0.0
    %4343 = vmatpush2.msra.mxu0 0.0
    %4344 = vmatprep.subr.mxu0 0.0
    %4345 = vmatpush2.msra.mxu0 0.0
    %4346 = vmatprep.subr.mxu0 0.0
    %4347 = vmatpush2.msra.mxu0 0.0
    %4348 = vmatprep.subr.mxu0 0.0
    %4349 = vmatpush2.msra.mxu0 0.0
    %4350 = vmatprep.subr.mxu0 0.0
    %4351 = vmatpush2.msra.mxu0 0.0
    %4352 = vmatprep.subr.mxu0 0.0
    %4353 = vmatpush2.msra.mxu0 0.0
    %4354 = vmatprep.subr.mxu0 0.0
    %4355 = vmatpush2.msra.mxu0 0.0
    %4356 = vmatprep.subr.mxu0 0.0
    %4357 = vmatpush2.msra.mxu0 0.0
    %4358 = vmatprep.mubr.f32.mxu0 0.0
    %4359 = vmatmul.mubr.f32.gmra.mxu0 %v4289
    %v4360 = vpop.f32.mrf.mxu0
    %v4361 = vadd.f32 0.0, %v4360
    %v4362 = vpop.f32.mrf.mxu0
    %4363 = vmatprep.mubr.f32.mxu0 0.0
    %4364 = vmatmul.mubr.f32.gmra.mxu0 %v4292
    %v4365 = vpop.f32.mrf.mxu0
    %v4366 = vadd.f32 0.0, %v4365
    %v4367 = vpop.f32.mrf.mxu0
    %4368 = vdwg.mxu0
    %4369 = vrot.lane.b32.xlu0 %v3768, 96
    %v4370 = vpop.permute.xlu0 %4369
    %4371 = vrot.lane.b32.xlu0 %v3770, 96
    %v4372 = vpop.permute.xlu0 %4371
    %v4376 = vsel %vm501, %v4188, 0
    %v4379 = vsel %vm501, %v4190, 0
    %4381 = vmatprep.subr.mxu0 0.0
    %4382 = vmatpush1.msra.mxu0 0.0
    %4383 = vmatprep.subr.mxu0 0.0
    %4384 = vmatpush1.msra.mxu0 0.0
    %4385 = vmatprep.subr.mxu0 0.0
    %4386 = vmatpush1.msra.mxu0 0.0
    %4387 = vmatprep.subr.mxu0 0.0
    %4388 = vmatpush1.msra.mxu0 0.0
    %4389 = vmatprep.subr.mxu0 0.0
    %4390 = vmatpush1.msra.mxu0 0.0
    %4391 = vmatprep.subr.mxu0 0.0
    %4392 = vmatpush1.msra.mxu0 0.0
    %4393 = vmatprep.subr.mxu0 0.0
    %4394 = vmatpush1.msra.mxu0 0.0
    %4395 = vmatprep.subr.mxu0 0.0
    %4396 = vmatpush1.msra.mxu0 0.0
    %4397 = vmatprep.subr.mxu0 0.0
    %4398 = vmatpush1.msra.mxu0 0.0
    %4399 = vmatprep.subr.mxu0 0.0
    %4400 = vmatpush1.msra.mxu0 0.0
    %4401 = vmatprep.subr.mxu0 0.0
    %4402 = vmatpush1.msra.mxu0 0.0
    %4403 = vmatprep.subr.mxu0 0.0
    %4404 = vmatpush1.msra.mxu0 0.0
    %4405 = vmatprep.subr.mxu0 0.0
    %4406 = vmatpush1.msra.mxu0 0.0
    %4407 = vmatprep.subr.mxu0 0.0
    %4408 = vmatpush1.msra.mxu0 0.0
    %4409 = vmatprep.subr.mxu0 0.0
    %4410 = vmatpush1.msra.mxu0 %v4372
    %4411 = vmatprep.subr.mxu0 0.0
    %4412 = vmatpush1.msra.mxu0 %v4370
    %4413 = vmatprep.subr.mxu0 0.0
    %4414 = vmatpush2.msra.mxu0 0.0
    %4415 = vmatprep.subr.mxu0 0.0
    %4416 = vmatpush2.msra.mxu0 0.0
    %4417 = vmatprep.subr.mxu0 0.0
    %4418 = vmatpush2.msra.mxu0 0.0
    %4419 = vmatprep.subr.mxu0 0.0
    %4420 = vmatpush2.msra.mxu0 0.0
    %4421 = vmatprep.subr.mxu0 0.0
    %4422 = vmatpush2.msra.mxu0 0.0
    %4423 = vmatprep.subr.mxu0 0.0
    %4424 = vmatpush2.msra.mxu0 0.0
    %4425 = vmatprep.subr.mxu0 0.0
    %4426 = vmatpush2.msra.mxu0 0.0
    %4427 = vmatprep.subr.mxu0 0.0
    %4428 = vmatpush2.msra.mxu0 0.0
    %4429 = vmatprep.subr.mxu0 0.0
    %4430 = vmatpush2.msra.mxu0 0.0
    %4431 = vmatprep.subr.mxu0 0.0
    %4432 = vmatpush2.msra.mxu0 0.0
    %4433 = vmatprep.subr.mxu0 0.0
    %4434 = vmatpush2.msra.mxu0 0.0
    %4435 = vmatprep.subr.mxu0 0.0
    %4436 = vmatpush2.msra.mxu0 0.0
    %4437 = vmatprep.subr.mxu0 0.0
    %4438 = vmatpush2.msra.mxu0 0.0
    %4439 = vmatprep.subr.mxu0 0.0
    %4440 = vmatpush2.msra.mxu0 0.0
    %4441 = vmatprep.subr.mxu0 0.0
    %4442 = vmatpush2.msra.mxu0 0.0
    %4443 = vmatprep.subr.mxu0 0.0
    %4444 = vmatpush2.msra.mxu0 0.0
    %4445 = vmatprep.mubr.f32.mxu0 0.0
    %4446 = vmatmul.mubr.f32.gmra.mxu0 %v4376
    %v4447 = vpop.f32.mrf.mxu0
    %v4448 = vadd.f32 0.0, %v4447
    %v4449 = vpop.f32.mrf.mxu0
    %4450 = vmatprep.mubr.f32.mxu0 0.0
    %4451 = vmatmul.mubr.f32.gmra.mxu0 %v4379
    %v4452 = vpop.f32.mrf.mxu0
    %v4453 = vadd.f32 0.0, %v4452
    %v4454 = vpop.f32.mrf.mxu0
    %4455 = vdwg.mxu0
    %4456 = vrot.lane.b32.xlu0 %v3772, 96
    %v4457 = vpop.permute.xlu0 %4456
    %4458 = vrot.lane.b32.xlu0 %v3774, 96
    %v4459 = vpop.permute.xlu0 %4458
    %v4463 = vsel %vm501, %v4192, 0
    %v4466 = vsel %vm501, %v4194, 0
    %4468 = vmatprep.subr.mxu0 0.0
    %4469 = vmatpush1.msra.mxu0 0.0
    %4470 = vmatprep.subr.mxu0 0.0
    %4471 = vmatpush1.msra.mxu0 0.0
    %4472 = vmatprep.subr.mxu0 0.0
    %4473 = vmatpush1.msra.mxu0 0.0
    %4474 = vmatprep.subr.mxu0 0.0
    %4475 = vmatpush1.msra.mxu0 0.0
    %4476 = vmatprep.subr.mxu0 0.0
    %4477 = vmatpush1.msra.mxu0 0.0
    %4478 = vmatprep.subr.mxu0 0.0
    %4479 = vmatpush1.msra.mxu0 0.0
    %4480 = vmatprep.subr.mxu0 0.0
    %4481 = vmatpush1.msra.mxu0 0.0
    %4482 = vmatprep.subr.mxu0 0.0
    %4483 = vmatpush1.msra.mxu0 0.0
    %4484 = vmatprep.subr.mxu0 0.0
    %4485 = vmatpush1.msra.mxu0 0.0
    %4486 = vmatprep.subr.mxu0 0.0
    %4487 = vmatpush1.msra.mxu0 0.0
    %4488 = vmatprep.subr.mxu0 0.0
    %4489 = vmatpush1.msra.mxu0 0.0
    %4490 = vmatprep.subr.mxu0 0.0
    %4491 = vmatpush1.msra.mxu0 0.0
    %4492 = vmatprep.subr.mxu0 0.0
    %4493 = vmatpush1.msra.mxu0 0.0
    %4494 = vmatprep.subr.mxu0 0.0
    %4495 = vmatpush1.msra.mxu0 0.0
    %4496 = vmatprep.subr.mxu0 0.0
    %4497 = vmatpush1.msra.mxu0 %v4459
    %4498 = vmatprep.subr.mxu0 0.0
    %4499 = vmatpush1.msra.mxu0 %v4457
    %4500 = vmatprep.subr.mxu0 0.0
    %4501 = vmatpush2.msra.mxu0 0.0
    %4502 = vmatprep.subr.mxu0 0.0
    %4503 = vmatpush2.msra.mxu0 0.0
    %4504 = vmatprep.subr.mxu0 0.0
    %4505 = vmatpush2.msra.mxu0 0.0
    %4506 = vmatprep.subr.mxu0 0.0
    %4507 = vmatpush2.msra.mxu0 0.0
    %4508 = vmatprep.subr.mxu0 0.0
    %4509 = vmatpush2.msra.mxu0 0.0
    %4510 = vmatprep.subr.mxu0 0.0
    %4511 = vmatpush2.msra.mxu0 0.0
    %4512 = vmatprep.subr.mxu0 0.0
    %4513 = vmatpush2.msra.mxu0 0.0
    %4514 = vmatprep.subr.mxu0 0.0
    %4515 = vmatpush2.msra.mxu0 0.0
    %4516 = vmatprep.subr.mxu0 0.0
    %4517 = vmatpush2.msra.mxu0 0.0
    %4518 = vmatprep.subr.mxu0 0.0
    %4519 = vmatpush2.msra.mxu0 0.0
    %4520 = vmatprep.subr.mxu0 0.0
    %4521 = vmatpush2.msra.mxu0 0.0
    %4522 = vmatprep.subr.mxu0 0.0
    %4523 = vmatpush2.msra.mxu0 0.0
    %4524 = vmatprep.subr.mxu0 0.0
    %4525 = vmatpush2.msra.mxu0 0.0
    %4526 = vmatprep.subr.mxu0 0.0
    %4527 = vmatpush2.msra.mxu0 0.0
    %4528 = vmatprep.subr.mxu0 0.0
    %4529 = vmatpush2.msra.mxu0 0.0
    %4530 = vmatprep.subr.mxu0 0.0
    %4531 = vmatpush2.msra.mxu0 0.0
    %4532 = vmatprep.mubr.f32.mxu0 0.0
    %4533 = vmatmul.mubr.f32.gmra.mxu0 %v4463
    %v4534 = vpop.f32.mrf.mxu0
    %v4535 = vadd.f32 0.0, %v4534
    %v4536 = vpop.f32.mrf.mxu0
    %4537 = vmatprep.mubr.f32.mxu0 0.0
    %4538 = vmatmul.mubr.f32.gmra.mxu0 %v4466
    %v4539 = vpop.f32.mrf.mxu0
    %v4540 = vadd.f32 0.0, %v4539
    %v4541 = vpop.f32.mrf.mxu0
    %4542 = vdwg.mxu0
    %4545 = vrot.lane.b32.xlu0 %v4361, 8
    %v4546 = vpop.permute.xlu0 %4545
    %4547 = vrot.lane.b32.xlu0 %v4366, 8
    %v4548 = vpop.permute.xlu0 %4547
    %4553 = vrot.lane.b32.xlu0 %v4448, 16
    %v4554 = vpop.permute.xlu0 %4553
    %4555 = vrot.lane.b32.xlu0 %v4453, 16
    %v4556 = vpop.permute.xlu0 %4555
    %4561 = vrot.lane.b32.xlu0 %v4535, 24
    %v4562 = vpop.permute.xlu0 %4561
    %4563 = vrot.lane.b32.xlu0 %v4540, 24
    %v4564 = vpop.permute.xlu0 %4563
    %v4567 = vsel %vm156, %v4274, %v4546
    %v4568 = vsel %vm156, %v4279, %v4548
    %v4569 = vsel %vm501, %v4567, %v4554
    %v4570 = vsel %vm501, %v4568, %v4556
    %v4571 = vsel %vm966, %v4569, %v4562
    %v4572 = vsel %vm966, %v4570, %v4564
    %4573 = vrot.lane.b32.xlu0 %v2485, 32
    %v4574 = vpop.permute.xlu0 %4573
    %4575 = vrot.lane.b32.xlu0 %v2488, 32
    %v4576 = vpop.permute.xlu0 %4575
    %4577 = vrot.lane.b32.xlu0 %v2491, 32
    %v4578 = vpop.permute.xlu0 %4577
    %4579 = vrot.lane.b32.xlu0 %v2494, 32
    %v4580 = vpop.permute.xlu0 %4579
    %4585 = vrot.lane.b32.xlu0 %v3570, 32
    %v4586 = vpop.permute.xlu0 %4585
    %v4589 = vsel %vm56, %v4571, 0
    %v4592 = vsel %vm56, %v4572, 0
    %4594 = vmatprep.subr.mxu0 0.0
    %4595 = vmatpush1.msra.mxu0 0.0
    %4596 = vmatprep.subr.mxu0 0.0
    %4597 = vmatpush1.msra.mxu0 0.0
    %4598 = vmatprep.subr.mxu0 0.0
    %4599 = vmatpush1.msra.mxu0 0.0
    %4600 = vmatprep.subr.mxu0 0.0
    %4601 = vmatpush1.msra.mxu0 0.0
    %4602 = vmatprep.subr.mxu0 0.0
    %4603 = vmatpush1.msra.mxu0 0.0
    %4604 = vmatprep.subr.mxu0 0.0
    %4605 = vmatpush1.msra.mxu0 0.0
    %4606 = vmatprep.subr.mxu0 0.0
    %4607 = vmatpush1.msra.mxu0 0.0
    %4608 = vmatprep.subr.mxu0 0.0
    %4609 = vmatpush1.msra.mxu0 0.0
    %4610 = vmatprep.subr.mxu0 0.0
    %4611 = vmatpush1.msra.mxu0 0.0
    %4612 = vmatprep.subr.mxu0 0.0
    %4613 = vmatpush1.msra.mxu0 0.0
    %4614 = vmatprep.subr.mxu0 0.0
    %4615 = vmatpush1.msra.mxu0 0.0
    %4616 = vmatprep.subr.mxu0 0.0
    %4617 = vmatpush1.msra.mxu0 0.0
    %4618 = vmatprep.subr.mxu0 0.0
    %4619 = vmatpush1.msra.mxu0 %v4580
    %4620 = vmatprep.subr.mxu0 0.0
    %4621 = vmatpush1.msra.mxu0 %v4578
    %4622 = vmatprep.subr.mxu0 0.0
    %4623 = vmatpush1.msra.mxu0 %v4576
    %4624 = vmatprep.subr.mxu0 0.0
    %4625 = vmatpush1.msra.mxu0 %v4574
    %4626 = vmatprep.subr.mxu0 0.0
    %4627 = vmatpush2.msra.mxu0 0.0
    %4628 = vmatprep.subr.mxu0 0.0
    %4629 = vmatpush2.msra.mxu0 0.0
    %4630 = vmatprep.subr.mxu0 0.0
    %4631 = vmatpush2.msra.mxu0 0.0
    %4632 = vmatprep.subr.mxu0 0.0
    %4633 = vmatpush2.msra.mxu0 0.0
    %4634 = vmatprep.subr.mxu0 0.0
    %4635 = vmatpush2.msra.mxu0 0.0
    %4636 = vmatprep.subr.mxu0 0.0
    %4637 = vmatpush2.msra.mxu0 0.0
    %4638 = vmatprep.subr.mxu0 0.0
    %4639 = vmatpush2.msra.mxu0 0.0
    %4640 = vmatprep.subr.mxu0 0.0
    %4641 = vmatpush2.msra.mxu0 0.0
    %4642 = vmatprep.subr.mxu0 0.0
    %4643 = vmatpush2.msra.mxu0 0.0
    %4644 = vmatprep.subr.mxu0 0.0
    %4645 = vmatpush2.msra.mxu0 0.0
    %4646 = vmatprep.subr.mxu0 0.0
    %4647 = vmatpush2.msra.mxu0 0.0
    %4648 = vmatprep.subr.mxu0 0.0
    %4649 = vmatpush2.msra.mxu0 0.0
    %4650 = vmatprep.subr.mxu0 0.0
    %4651 = vmatpush2.msra.mxu0 0.0
    %4652 = vmatprep.subr.mxu0 0.0
    %4653 = vmatpush2.msra.mxu0 0.0
    %4654 = vmatprep.subr.mxu0 0.0
    %4655 = vmatpush2.msra.mxu0 0.0
    %4656 = vmatprep.subr.mxu0 0.0
    %4657 = vmatpush2.msra.mxu0 0.0
    %4658 = vmatprep.mubr.f32.mxu0 0.0
    %4659 = vmatmul.mubr.f32.gmra.mxu0 %v4589
    %v4660 = vpop.f32.mrf.mxu0
    %v4661 = vadd.f32 %v4586, %v4660
    %v4662 = vpop.f32.mrf.mxu0
    %4663 = vmatprep.mubr.f32.mxu0 0.0
    %4664 = vmatmul.mubr.f32.gmra.mxu0 %v4592
    %v4665 = vpop.f32.mrf.mxu0
    %v4666 = vadd.f32 %v4586, %v4665
    %v4667 = vpop.f32.mrf.mxu0
    %4668 = vdwg.mxu0
    %v4669 = vadd.f32 %v3565, %v4661
    %v4670 = vadd.f32 %v3566, %v4666
    %v4671 = vmul.f32 %v4669, %v4669
    %v4672 = vmul.f32 %v4670, %v4670
    %v4673 = vsel %vm56, %v4669, 0.0
    %4674 = vadd.xlane.f32.xlu0 %v4673
    %v4675 = vpop.xlane.xlu0 %4674
    %v4676 = vsel %vm56, %v4670, 0.0
    %4677 = vadd.xlane.f32.xlu0 %v4676
    %v4678 = vpop.xlane.xlu0 %4677
    %v4679 = vsel %vm56, %v4671, 0.0
    %4680 = vadd.xlane.f32.xlu0 %v4679
    %v4681 = vpop.xlane.xlu0 %4680
    %v4682 = vsel %vm56, %v4672, 0.0
    %4683 = vadd.xlane.f32.xlu0 %v4682
    %v4684 = vpop.xlane.xlu0 %4683
    %v4685 = vmul.f32 %v4675, 0.03125
    %v4686 = vmul.f32 %v4678, 0.03125
    %v4687 = vmul.f32 %v4681, 0.03125
    %v4688 = vmul.f32 %v4684, 0.03125
    %v4689 = vmul.f32 %v4685, %v4685
    %v4690 = vmul.f32 %v4686, %v4686
    %v4691 = vsub.f32 %v4687, %v4689
    %v4692 = vsub.f32 %v4688, %v4690
    %v4693 = vsub.f32 %v4669, %v4685
    %v4694 = vsub.f32 %v4670, %v4686
    %v4695 = vadd.f32 %v4691, 1e-05
    %v4696 = vadd.f32 %v4692, 1e-05
    %v4697 = vrsqrt.pop %v4695
    %v4698 = vrsqrt.pop %v4696
    %v4699 = vmul.f32 %v4693, %v4697
    %v4700 = vmul.f32 %v4694, %v4698
    %v4701 = vlaneseq
    %v4702 = vshrl.u32 %v4701, 7
    %v4703 = vsub.s32 2, %v4702
    %v4704 = vrot.slane %v2506, %v4703
    %v4705 = vmul.f32 %v4699, %v4704
    %v4706 = vmul.f32 %v4700, %v4704
    %v4707 = vlaneseq
    %v4708 = vshrl.u32 %v4707, 7
    %v4709 = vsub.s32 5, %v4708
    %v4710 = vrot.slane %v2506, %v4709
    %v4711 = vadd.f32 %v4705, %v4710
    %v4712 = vadd.f32 %v4706, %v4710
    %v4713 = vlaneseq
    %v4714 = vshrl.u32 %v4713, 7
    %v4715 = vsub.s32 0, %v4714
    %v4716 = vrot.slane %v2508, %v4715
    %v4718 = vsel %vm56, %v4711, 0
    %v4721 = vsel %vm56, %v4712, 0
    %4723 = vmatprep.subr.mxu0 0.0
    %4724 = vmatpush1.msra.mxu0 0.0
    %4725 = vmatprep.subr.mxu0 0.0
    %4726 = vmatpush1.msra.mxu0 0.0
    %4727 = vmatprep.subr.mxu0 0.0
    %4728 = vmatpush1.msra.mxu0 0.0
    %4729 = vmatprep.subr.mxu0 0.0
    %4730 = vmatpush1.msra.mxu0 0.0
    %4731 = vmatprep.subr.mxu0 0.0
    %4732 = vmatpush1.msra.mxu0 0.0
    %4733 = vmatprep.subr.mxu0 0.0
    %4734 = vmatpush1.msra.mxu0 0.0
    %4735 = vmatprep.subr.mxu0 0.0
    %4736 = vmatpush1.msra.mxu0 0.0
    %4737 = vmatprep.subr.mxu0 0.0
    %4738 = vmatpush1.msra.mxu0 0.0
    %4739 = vmatprep.subr.mxu0 0.0
    %4740 = vmatpush1.msra.mxu0 0.0
    %4741 = vmatprep.subr.mxu0 0.0
    %4742 = vmatpush1.msra.mxu0 0.0
    %4743 = vmatprep.subr.mxu0 0.0
    %4744 = vmatpush1.msra.mxu0 0.0
    %4745 = vmatprep.subr.mxu0 0.0
    %4746 = vmatpush1.msra.mxu0 0.0
    %4747 = vmatprep.subr.mxu0 0.0
    %4748 = vmatpush1.msra.mxu0 %v2495
    %4749 = vmatprep.subr.mxu0 0.0
    %4750 = vmatpush1.msra.mxu0 %v2492
    %4751 = vmatprep.subr.mxu0 0.0
    %4752 = vmatpush1.msra.mxu0 %v2489
    %4753 = vmatprep.subr.mxu0 0.0
    %4754 = vmatpush1.msra.mxu0 %v2486
    %4755 = vmatprep.subr.mxu0 0.0
    %4756 = vmatpush2.msra.mxu0 0.0
    %4757 = vmatprep.subr.mxu0 0.0
    %4758 = vmatpush2.msra.mxu0 0.0
    %4759 = vmatprep.subr.mxu0 0.0
    %4760 = vmatpush2.msra.mxu0 0.0
    %4761 = vmatprep.subr.mxu0 0.0
    %4762 = vmatpush2.msra.mxu0 0.0
    %4763 = vmatprep.subr.mxu0 0.0
    %4764 = vmatpush2.msra.mxu0 0.0
    %4765 = vmatprep.subr.mxu0 0.0
    %4766 = vmatpush2.msra.mxu0 0.0
    %4767 = vmatprep.subr.mxu0 0.0
    %4768 = vmatpush2.msra.mxu0 0.0
    %4769 = vmatprep.subr.mxu0 0.0
    %4770 = vmatpush2.msra.mxu0 0.0
    %4771 = vmatprep.subr.mxu0 0.0
    %4772 = vmatpush2.msra.mxu0 0.0
    %4773 = vmatprep.subr.mxu0 0.0
    %4774 = vmatpush2.msra.mxu0 0.0
    %4775 = vmatprep.subr.mxu0 0.0
    %4776 = vmatpush2.msra.mxu0 0.0
    %4777 = vmatprep.subr.mxu0 0.0
    %4778 = vmatpush2.msra.mxu0 0.0
    %4779 = vmatprep.subr.mxu0 0.0
    %4780 = vmatpush2.msra.mxu0 0.0
    %4781 = vmatprep.subr.mxu0 0.0
    %4782 = vmatpush2.msra.mxu0 0.0
    %4783 = vmatprep.subr.mxu0 0.0
    %4784 = vmatpush2.msra.mxu0 0.0
    %4785 = vmatprep.subr.mxu0 0.0
    %4786 = vmatpush2.msra.mxu0 0.0
    %4787 = vmatprep.mubr.f32.mxu0 0.0
    %4788 = vmatmul.mubr.f32.gmra.mxu0 %v4718
    %v4789 = vpop.f32.mrf.mxu0
    %v4790 = vadd.f32 %v4716, %v4789
    %v4791 = vpop.f32.mrf.mxu0
    %4792 = vmatprep.mubr.f32.mxu0 0.0
    %4793 = vmatmul.mubr.f32.gmra.mxu0 %v4721
    %v4794 = vpop.f32.mrf.mxu0
    %v4795 = vadd.f32 %v4716, %v4794
    %v4796 = vpop.f32.mrf.mxu0
    %4797 = vdwg.mxu0
    %v4798 = vmax.f32 %v4790, 0.0
    %v4799 = vmax.f32 %v4795, 0.0
    %4801 = vrot.lane.b32.xlu0 %v4716, 64
    %v4802 = vpop.permute.xlu0 %4801
    %v4805 = vsel %vm2357, %v4798, 0
    %v4808 = vsel %vm2357, %v4799, 0
    %4810 = vmatprep.subr.mxu0 0.0
    %4811 = vmatpush1.msra.mxu0 0.0
    %4812 = vmatprep.subr.mxu0 0.0
    %4813 = vmatpush1.msra.mxu0 0.0
    %4814 = vmatprep.subr.mxu0 0.0
    %4815 = vmatpush1.msra.mxu0 0.0
    %4816 = vmatprep.subr.mxu0 0.0
    %4817 = vmatpush1.msra.mxu0 0.0
    %4818 = vmatprep.subr.mxu0 0.0
    %4819 = vmatpush1.msra.mxu0 0.0
    %4820 = vmatprep.subr.mxu0 0.0
    %4821 = vmatpush1.msra.mxu0 0.0
    %4822 = vmatprep.subr.mxu0 0.0
    %4823 = vmatpush1.msra.mxu0 0.0
    %4824 = vmatprep.subr.mxu0 0.0
    %4825 = vmatpush1.msra.mxu0 0.0
    %4826 = vmatprep.subr.mxu0 0.0
    %4827 = vmatpush1.msra.mxu0 %v2504
    %4828 = vmatprep.subr.mxu0 0.0
    %4829 = vmatpush1.msra.mxu0 %v2503
    %4830 = vmatprep.subr.mxu0 0.0
    %4831 = vmatpush1.msra.mxu0 %v2502
    %4832 = vmatprep.subr.mxu0 0.0
    %4833 = vmatpush1.msra.mxu0 %v2501
    %4834 = vmatprep.subr.mxu0 0.0
    %4835 = vmatpush1.msra.mxu0 %v2500
    %4836 = vmatprep.subr.mxu0 0.0
    %4837 = vmatpush1.msra.mxu0 %v2499
    %4838 = vmatprep.subr.mxu0 0.0
    %4839 = vmatpush1.msra.mxu0 %v2498
    %4840 = vmatprep.subr.mxu0 0.0
    %4841 = vmatpush1.msra.mxu0 %v2497
    %4842 = vmatprep.subr.mxu0 0.0
    %4843 = vmatpush2.msra.mxu0 0.0
    %4844 = vmatprep.subr.mxu0 0.0
    %4845 = vmatpush2.msra.mxu0 0.0
    %4846 = vmatprep.subr.mxu0 0.0
    %4847 = vmatpush2.msra.mxu0 0.0
    %4848 = vmatprep.subr.mxu0 0.0
    %4849 = vmatpush2.msra.mxu0 0.0
    %4850 = vmatprep.subr.mxu0 0.0
    %4851 = vmatpush2.msra.mxu0 0.0
    %4852 = vmatprep.subr.mxu0 0.0
    %4853 = vmatpush2.msra.mxu0 0.0
    %4854 = vmatprep.subr.mxu0 0.0
    %4855 = vmatpush2.msra.mxu0 0.0
    %4856 = vmatprep.subr.mxu0 0.0
    %4857 = vmatpush2.msra.mxu0 0.0
    %4858 = vmatprep.subr.mxu0 0.0
    %4859 = vmatpush2.msra.mxu0 0.0
    %4860 = vmatprep.subr.mxu0 0.0
    %4861 = vmatpush2.msra.mxu0 0.0
    %4862 = vmatprep.subr.mxu0 0.0
    %4863 = vmatpush2.msra.mxu0 0.0
    %4864 = vmatprep.subr.mxu0 0.0
    %4865 = vmatpush2.msra.mxu0 0.0
    %4866 = vmatprep.subr.mxu0 0.0
    %4867 = vmatpush2.msra.mxu0 0.0
    %4868 = vmatprep.subr.mxu0 0.0
    %4869 = vmatpush2.msra.mxu0 0.0
    %4870 = vmatprep.subr.mxu0 0.0
    %4871 = vmatpush2.msra.mxu0 0.0
    %4872 = vmatprep.subr.mxu0 0.0
    %4873 = vmatpush2.msra.mxu0 0.0
    %4874 = vmatprep.mubr.f32.mxu0 0.0
    %4875 = vmatmul.mubr.f32.gmra.mxu0 %v4805
    %v4876 = vpop.f32.mrf.mxu0
    %v4877 = vadd.f32 %v4802, %v4876
    %v4878 = vpop.f32.mrf.mxu0
    %4879 = vmatprep.mubr.f32.mxu0 0.0
    %4880 = vmatmul.mubr.f32.gmra.mxu0 %v4808
    %v4881 = vpop.f32.mrf.mxu0
    %v4882 = vadd.f32 %v4802, %v4881
    %v4883 = vpop.f32.mrf.mxu0
    %4884 = vdwg.mxu0
    %v4885 = vadd.f32 %v4711, %v4877
    %v4886 = vadd.f32 %v4712, %v4882
    %v4887 = vmul.f32 %v4885, %v4885
    %v4888 = vmul.f32 %v4886, %v4886
    %v4889 = vsel %vm56, %v4885, 0.0
    %4890 = vadd.xlane.f32.xlu0 %v4889
    %v4891 = vpop.xlane.xlu0 %4890
    %v4892 = vsel %vm56, %v4886, 0.0
    %4893 = vadd.xlane.f32.xlu0 %v4892
    %v4894 = vpop.xlane.xlu0 %4893
    %v4895 = vsel %vm56, %v4887, 0.0
    %4896 = vadd.xlane.f32.xlu0 %v4895
    %v4897 = vpop.xlane.xlu0 %4896
    %v4898 = vsel %vm56, %v4888, 0.0
    %4899 = vadd.xlane.f32.xlu0 %v4898
    %v4900 = vpop.xlane.xlu0 %4899
    %v4901 = vmul.f32 %v4891, 0.03125
    %v4902 = vmul.f32 %v4894, 0.03125
    %v4903 = vmul.f32 %v4897, 0.03125
    %v4904 = vmul.f32 %v4900, 0.03125
    %v4905 = vmul.f32 %v4901, %v4901
    %v4906 = vmul.f32 %v4902, %v4902
    %v4907 = vsub.f32 %v4903, %v4905
    %v4908 = vsub.f32 %v4904, %v4906
    %v4909 = vsub.f32 %v4885, %v4901
    %v4910 = vsub.f32 %v4886, %v4902
    %v4911 = vadd.f32 %v4907, 1e-05
    %v4912 = vadd.f32 %v4908, 1e-05
    %v4913 = vrsqrt.pop %v4911
    %v4914 = vrsqrt.pop %v4912
    %v4915 = vmul.f32 %v4909, %v4913
    %v4916 = vmul.f32 %v4910, %v4914
    %v4917 = vlaneseq
    %v4918 = vshrl.u32 %v4917, 7
    %v4919 = vsub.s32 3, %v4918
    %v4920 = vrot.slane %v2506, %v4919
    %v4921 = vmul.f32 %v4915, %v4920
    %v4922 = vmul.f32 %v4916, %v4920
    %v4923 = vlaneseq
    %v4924 = vshrl.u32 %v4923, 7
    %v4925 = vsub.s32 6, %v4924
    %v4926 = vrot.slane %v2506, %v4925
    %v4927 = vadd.f32 %v4921, %v4926
    %v4928 = vadd.f32 %v4922, %v4926
    %4929 = vst.msk [vmem:[#allocation2] sm:$0xff] %vm56, %v4927
    %4930 = vst.msk [vmem:[#allocation2 + $0x8] sm:$0xff] %vm56, %v4928
    // Predicated region
    $region22: #{decoder.1} parent=1 // pred_check
      _
    $region23: #{decoder.1} parent=1 // pred_check_branch
      %4932 = sbr.rel (0) target = $region25
    $region24: #{decoder.1} parent=1 // pred_region
      %s4934 = ssub.s32 256, 256
      %4935 = vsyncadd [#allocation3], %s4934
      %s4936 = sshll.u32 [#allocation2], 4
      %s4937 = int_to_ptr.vmem [resolvable:$true] %s4936
      %4942 = dma.vmem_to_hbm [thread:$0]  %s4937, 256, %s5, [#allocation3], 128, 128, 8
    $region25: #{decoder.1} parent=1 // pred_fallthru
      _
    // Predicated region
    $region26: #{decoder.1} parent=1 // pred_check
      _
    $region27: #{decoder.1} parent=1 // pred_check_branch
      %4944 = sbr.rel (0) target = $region29
    $region28: #{decoder.1} parent=1 // pred_region
      %4945 = dma.done [#allocation3], 256
    $region29: #{decoder.1} parent=1 // pred_fallthru
      _
    %4946 = vsyncpa [#allocation3], 1

</llo_original>
